<compile_context>
chip_gen: v6e
topology: v6e:2x2x1
jax: 0.10.0
libtpu: 0.0.40
codegen_flags: <defaults>
</compile_context>

<pallas_src>
import functools

import jax
import jax.numpy as jnp
import numpy as np
from jax.experimental import pallas as pl
from jax.experimental.pallas import tpu as pltpu

_EPS = 1e-5
_SLOPE = 0.01                      # nn.LeakyReLU default negative_slope
_VMEM_LIMIT = 32 * 1024 * 1024


def _leaky(z):
    return jnp.where(z >= 0, z, _SLOPE * z)


def _pick_tile_l(l_pad):
    # Largest lane tile (multiple of 128) dividing the padded length, capped at
    # 512 so double-buffered blocks stay well inside v7x's 64 MiB VMEM.
    for cand in (512, 256, 128):
        if l_pad % cand == 0:
            return cand
    return 128


def _fold_bn(ssum, ssq, count, gamma, beta):
    """Fold training-mode BN (biased var) into a per-channel scale/shift."""
    mean = ssum / count
    var = ssq / count - mean * mean
    scale = gamma * jax.lax.rsqrt(var + _EPS)
    shift = beta - mean * scale
    return scale[:, None], shift[:, None]          # (C, 1) for lane broadcast


def _make_kernels(tl, l_real, needs_mask):
    """Build the three kernel bodies, closing over static tiling config."""

    def bn1_h(y, sc1, sh1):
        return _leaky(y.astype(jnp.float32) * sc1 + sh1)

    def expand_z(ysq_ref, pe_ref, ne_ref, sc1_ref, sh1_ref, wp_ref, wc_ref, wn_ref):
        lt = pl.program_id(1)
        last = pl.num_programs(1) - 1
        sc1 = sc1_ref[...]
        sh1 = sh1_ref[...]
        h = bn1_h(ysq_ref[...], sc1, sh1)                             # (Csq, TL)
        col = jax.lax.broadcasted_iota(jnp.int32, (1, tl), 1)
        valid = None
        if needs_mask:
            valid = (col + lt * tl) < l_real
            h = jnp.where(valid, h, 0.0)            # padded columns act as conv zero-pad
        # 1-column halos: h just outside this tile.  At the true sequence ends the
        # halo is the Conv1d(padding=1) zero pad.
        hp = jnp.where(lt == 0, 0.0, bn1_h(pe_ref[...], sc1, sh1))    # (Csq, 1)
        hn = jnp.where(lt == last, 0.0, bn1_h(ne_ref[...], sc1, sh1))
        h_prev = jnp.where(col == 0, hp, pltpu.roll(h, shift=1, axis=1))
        h_next = jnp.where(col == tl - 1, hn, pltpu.roll(h, shift=tl - 1, axis=1))
        # expand1x1 + expand3x3 fused as three accumulated dots (no 3*Csq concat).
        z = jnp.dot(wc_ref[...], h, preferred_element_type=jnp.float32)
        z = z + jnp.dot(wp_ref[...], h_prev, preferred_element_type=jnp.float32)
        z = z + jnp.dot(wn_ref[...], h_next, preferred_element_type=jnp.float32)
        return z, valid

    # ----- pass 1: squeeze conv + BN1 stats (accumulated in scratch) -----
    def squeeze_kernel(x_ref, wsq_ref, ysq_ref, s1_ref, q1_ref, s_acc, q_acc):
        lt = pl.program_id(1)
        y = jnp.dot(wsq_ref[...], x_ref[...], preferred_element_type=jnp.float32)
        ysq_ref[...] = y.astype(ysq_ref.dtype)
        # Padded x columns are zero and the conv bias is dropped, so y is exactly
        # zero there -> sums need no masking; count uses the real L.
        ps = jnp.sum(y, axis=1, keepdims=True)
        pq = jnp.sum(y * y, axis=1, keepdims=True)

        @pl.when(lt == 0)
        def _():
            s_acc[...] = jnp.zeros_like(s_acc)
            q_acc[...] = jnp.zeros_like(q_acc)

        s_acc[...] += ps
        q_acc[...] += pq

        @pl.when(lt == pl.num_programs(1) - 1)
        def _():
            s1_ref[...] = s_acc[...]
            q1_ref[...] = q_acc[...]

    # ----- pass 2: BN2/BN3 stats only (z is recomputed in pass 3, never stored) -----
    def expand_stats_kernel(ysq_ref, pe_ref, ne_ref, sc1_ref, sh1_ref,
                            wp_ref, wc_ref, wn_ref, s2_ref, q2_ref, s_acc, q_acc):
        lt = pl.program_id(1)
        z, valid = expand_z(ysq_ref, pe_ref, ne_ref, sc1_ref, sh1_ref,
                            wp_ref, wc_ref, wn_ref)
        if valid is not None:
            z = jnp.where(valid, z, 0.0)            # exclude padded columns from stats
        ps = jnp.sum(z, axis=1, keepdims=True)
        pq = jnp.sum(z * z, axis=1, keepdims=True)

        @pl.when(lt == 0)
        def _():
            s_acc[...] = jnp.zeros_like(s_acc)
            q_acc[...] = jnp.zeros_like(q_acc)

        s_acc[...] += ps
        q_acc[...] += pq

        @pl.when(lt == pl.num_programs(1) - 1)
        def _():
            s2_ref[...] = s_acc[...]
            q2_ref[...] = q_acc[...]

    # ----- pass 3: folded BN2/BN3 + fused LeakyReLUs + residual + output -----
    def output_kernel(ysq_ref, pe_ref, ne_ref, x_ref, sc1_ref, sh1_ref,
                      sc23_ref, sh23_ref, wp_ref, wc_ref, wn_ref,
                      wres_ref, bres_ref, out_ref):
        z, _ = expand_z(ysq_ref, pe_ref, ne_ref, sc1_ref, sh1_ref,
                        wp_ref, wc_ref, wn_ref)
        t = z * sc23_ref[...] + sh23_ref[...]
        # leaky(leaky(t)) fused into a single select.
        fire = jnp.where(t >= 0, t, (_SLOPE * _SLOPE) * t)
        res = jnp.dot(wres_ref[...], x_ref[...],
                      preferred_element_type=jnp.float32) + bres_ref[...]
        out_ref[...] = _leaky(fire + res).astype(out_ref.dtype)

    return squeeze_kernel, expand_stats_kernel, output_kernel


@functools.partial(jax.jit, static_argnames=("store_dtype",))
def residual_fire(x, params, store_dtype=jnp.bfloat16):
    """x: (N, Cin, L) float32, PyTorch Conv1d layout.  Returns (N, Cout, L)."""
    x = x.astype(jnp.float32)
    N, Cin, L = x.shape
    Csq = params["wsq"].shape[0]
    Ce1 = params["we1"].shape[0]
    Ce3 = params["we3"].shape[0]
    Cout = Ce1 + Ce3
    count = float(N * L)

    # Lane-dense padding of L to a multiple of 128 (never a sub-128 lane tile).
    L_pad = max(128, ((L + 127) // 128) * 128)
    needs_mask = L_pad != L
    x_p = jnp.pad(x, ((0, 0), (0, 0), (0, L_pad - L))) if needs_mask else x
    TL = _pick_tile_l(L_pad)
    nLT = L_pad // TL

    squeeze_kernel, expand_stats_kernel, output_kernel = _make_kernels(TL, L, needs_mask)

    # Pre-sliced expand weights: rows = [expand1x1 ; expand3x3]; taps prev/center/next.
    zeros_e1 = jnp.zeros((Ce1, Csq), jnp.float32)
    wp = jnp.concatenate([zeros_e1, params["we3"][:, :, 0]], axis=0)   # h[l-1] tap
    wc = jnp.concatenate([params["we1"], params["we3"][:, :, 1]], axis=0)
    wn = jnp.concatenate([zeros_e1, params["we3"][:, :, 2]], axis=0)   # h[l+1] tap

    if params.get("wres", None) is not None:
        wres = params["wres"].astype(jnp.float32)
        bres = params["bres"].astype(jnp.float32)
    else:
        # inplanes == expand1x1+expand3x3: the module uses the identity residual.
        wres = jnp.eye(Cout, dtype=jnp.float32)
        bres = jnp.zeros((Cout,), jnp.float32)

    cp_red = pltpu.CompilerParams(dimension_semantics=("parallel", "arbitrary"),
                                  vmem_limit_bytes=_VMEM_LIMIT)
    cp_par = pltpu.CompilerParams(dimension_semantics=("parallel", "parallel"),
                                  vmem_limit_bytes=_VMEM_LIMIT)

    # -------- pass 1: squeeze conv + BN1 stats --------
    ysq, s1, q1 = pl.pallas_call(
        squeeze_kernel,
        grid=(N, nLT),
        in_specs=[
            pl.BlockSpec((None, Cin, TL), lambda n, lt: (n, 0, lt)),
            pl.BlockSpec((Csq, Cin), lambda n, lt: (0, 0)),            # resident weight
        ],
        out_specs=[
            pl.BlockSpec((None, Csq, TL), lambda n, lt: (n, 0, lt)),
            pl.BlockSpec((None, Csq, 1), lambda n, lt: (n, 0, 0)),     # once per sample
            pl.BlockSpec((None, Csq, 1), lambda n, lt: (n, 0, 0)),
        ],
        out_shape=[
            jax.ShapeDtypeStruct((N, Csq, L_pad), store_dtype),
            jax.ShapeDtypeStruct((N, Csq, 1), jnp.float32),
            jax.ShapeDtypeStruct((N, Csq, 1), jnp.float32),
        ],
        scratch_shapes=[pltpu.VMEM((Csq, 1), jnp.float32),
                        pltpu.VMEM((Csq, 1), jnp.float32)],
        compiler_params=cp_red,
    )(x_p, params["wsq"].astype(jnp.float32))

    sc1, sh1 = _fold_bn(jnp.sum(s1[:, :, 0], axis=0), jnp.sum(q1[:, :, 0], axis=0),
                        count, params["g1"], params["bt1"])

    # 1-column halos for the k=3 expand conv: first/last ysq column of every L-tile.
    ysq_t = ysq.reshape(N, Csq, nLT, TL)
    r_edge = jnp.transpose(ysq_t[:, :, :, TL - 1], (0, 2, 1))[:, :, :, None]  # (N,nLT,Csq,1)
    l_edge = jnp.transpose(ysq_t[:, :, :, 0], (0, 2, 1))[:, :, :, None]

    ysq_spec = pl.BlockSpec((None, Csq, TL), lambda n, lt: (n, 0, lt))
    pe_spec = pl.BlockSpec((None, None, Csq, 1),
                           lambda n, lt: (n, jnp.maximum(lt - 1, 0), 0, 0))
    ne_spec = pl.BlockSpec((None, None, Csq, 1),
                           lambda n, lt: (n, jnp.minimum(lt + 1, nLT - 1), 0, 0))
    vec_csq = pl.BlockSpec((Csq, 1), lambda n, lt: (0, 0))
    vec_cout = pl.BlockSpec((Cout, 1), lambda n, lt: (0, 0))
    w_exp = pl.BlockSpec((Cout, Csq), lambda n, lt: (0, 0))

    # -------- pass 2: fused expand conv -> BN2/BN3 stats only (z not stored) --------
    s2, q2 = pl.pallas_call(
        expand_stats_kernel,
        grid=(N, nLT),
        in_specs=[ysq_spec, pe_spec, ne_spec, vec_csq, vec_csq, w_exp, w_exp, w_exp],
        out_specs=[
            pl.BlockSpec((None, Cout, 1), lambda n, lt: (n, 0, 0)),
            pl.BlockSpec((None, Cout, 1), lambda n, lt: (n, 0, 0)),
        ],
        out_shape=[
            jax.ShapeDtypeStruct((N, Cout, 1), jnp.float32),
            jax.ShapeDtypeStruct((N, Cout, 1), jnp.float32),
        ],
        scratch_shapes=[pltpu.VMEM((Cout, 1), jnp.float32),
                        pltpu.VMEM((Cout, 1), jnp.float32)],
        compiler_params=cp_red,
    )(ysq, r_edge, l_edge, sc1, sh1, wp, wc, wn)

    gamma23 = jnp.concatenate([params["g2"], params["g3"]])
    beta23 = jnp.concatenate([params["bt2"], params["bt3"]])
    sc23, sh23 = _fold_bn(jnp.sum(s2[:, :, 0], axis=0), jnp.sum(q2[:, :, 0], axis=0),
                          count, gamma23, beta23)

    # -------- pass 3: recompute z, folded BN2/BN3, residual conv, output --------
    out_p = pl.pallas_call(
        output_kernel,
        grid=(N, nLT),
        in_specs=[ysq_spec, pe_spec, ne_spec,
                  pl.BlockSpec((None, Cin, TL), lambda n, lt: (n, 0, lt)),
                  vec_csq, vec_csq, vec_cout, vec_cout,
                  w_exp, w_exp, w_exp,
                  pl.BlockSpec((Cout, Cin), lambda n, lt: (0, 0)),
                  vec_cout],
        out_specs=pl.BlockSpec((None, Cout, TL), lambda n, lt: (n, 0, lt)),
        out_shape=jax.ShapeDtypeStruct((N, Cout, L_pad), jnp.float32),
        compiler_params=cp_par,
    )(ysq, r_edge, l_edge, x_p, sc1, sh1, sc23, sh23, wp, wc, wn, wres, bres[:, None])

    return out_p[:, :, :L] if needs_mask else out_p


# ----------------------------------------------------------------------------
# Deterministic parameters (PyTorch Conv1d weight orientation: (Cout, Cin[, k])).
# ----------------------------------------------------------------------------
def init_params(key, cin, csq, ce1, ce3):
    cout = ce1 + ce3
    k0, k1, k2, k3 = jax.random.split(key, 4)

    def w(k, shape, fan_in):
        return (jax.random.normal(k, shape, jnp.float32) / np.sqrt(fan_in)).astype(jnp.float32)

    def vec(c, scale, offset=0.0):
        return offset + scale * jnp.arange(c, dtype=jnp.float32)

    return dict(
        wsq=w(k0, (csq, cin), cin),           bsq=vec(csq, 0.01),
        g1=vec(csq, 0.03, 1.0),               bt1=vec(csq, 0.02, -0.05),
        we1=w(k1, (ce1, csq), csq),           be1=vec(ce1, 0.01, 0.02),
        g2=vec(ce1, -0.02, 1.1),              bt2=vec(ce1, 0.015, 0.03),
        we3=w(k2, (ce3, csq, 3), 3 * csq),    be3=vec(ce3, -0.01, 0.05),
        g3=vec(ce3, 0.025, 0.9),              bt3=vec(ce3, -0.02, 0.04),
        wres=w(k3, (cout, cin), cin),         bres=vec(cout, 0.005, -0.02),
    )


# ----------------------------------------------------------------------------
# Pure-JAX reference mirroring the PyTorch forward exactly (incl. conv biases,
# two-pass training-mode BN) in NCL layout; HIGHEST matmul precision.
# ----------------------------------------------------------------------------
def reference(x, p):
    x = x.astype(jnp.float32)
    L = x.shape[2]
    hi = jax.lax.Precision.HIGHEST

    def leaky(z):
        return jnp.where(z >= 0, z, _SLOPE * z)

    def bn(y, g, b):
        mean = jnp.mean(y, axis=(0, 2), keepdims=True)
        var = jnp.mean(jnp.square(y - mean), axis=(0, 2), keepdims=True)
        return (y - mean) / jnp.sqrt(var + _EPS) * g[None, :, None] + b[None, :, None]

    def conv1x1(y, w, b):
        return jnp.einsum("oc,ncl->nol", w, y, precision=hi) + b[None, :, None]

    h = leaky(bn(conv1x1(x, p["wsq"], p["bsq"]), p["g1"], p["bt1"]))
    o1 = leaky(bn(conv1x1(h, p["we1"], p["be1"]), p["g2"], p["bt2"]))

    hp = jnp.pad(h, ((0, 0), (0, 0), (1, 1)))
    c3 = sum(jnp.einsum("oc,ncl->nol", p["we3"][:, :, k], hp[:, :, k:k + L], precision=hi)
             for k in range(3)) + p["be3"][None, :, None]
    o3 = leaky(bn(c3, p["g3"], p["bt3"]))

    fire = leaky(jnp.concatenate([o1, o3], axis=1))
    res = conv1x1(x, p["wres"], p["bres"])
    return leaky(fire + res)


if __name__ == "__main__":
    # Conv1d-consistent small shapes; inplanes != expand1x1+expand3x3 -> residual conv.
    N, CIN, L_SMALL, L_TILED = 2, 4, 16, 384
    CSQ, CE1, CE3 = 8, 16, 16

    key = jax.random.PRNGKey(0)
    kx1, kx2, kp = jax.random.split(key, 3)
    params = init_params(kp, CIN, CSQ, CE1, CE3)

    # Tolerance note: 1e-2 for f32-intermediate runs covers possible MXU-vs-XLA
    # matmul precision differences; 3e-2 for the bf16-intermediate (perf-default)
    # run additionally covers bf16 storage of the squeeze activations.

    # Case 1: L=16 (padded to one 128-lane tile; exercises padding masks), f32 storage.
    x1 = jax.random.normal(kx1, (N, CIN, L_SMALL), jnp.float32)
    out1 = jax.block_until_ready(residual_fire(x1, params, store_dtype=jnp.float32))
    ref1 = jax.block_until_ready(reference(x1, params))
    assert out1.shape == (N, CE1 + CE3, L_SMALL), out1.shape
    np.testing.assert_allclose(np.asarray(out1), np.asarray(ref1), rtol=1e-2, atol=1e-2)

    # Case 2: L=384 (three 128-lane tiles; exercises halos + stat accumulation), f32 storage.
    x2 = jax.random.normal(kx2, (N, CIN, L_TILED), jnp.float32)
    out2 = jax.block_until_ready(residual_fire(x2, params, store_dtype=jnp.float32))
    ref2 = jax.block_until_ready(reference(x2, params))
    assert out2.shape == (N, CE1 + CE3, L_TILED), out2.shape
    np.testing.assert_allclose(np.asarray(out2), np.asarray(ref2), rtol=1e-2, atol=1e-2)

    # Case 3: perf default (bf16 intermediate storage), looser tolerance.
    out3 = jax.block_until_ready(residual_fire(x2, params))
    np.testing.assert_allclose(np.asarray(out3), np.asarray(ref2), rtol=3e-2, atol=3e-2)

    print("KERNEL_OK")
</pallas_src>

<mosaic_0001>
module attributes {stable_mosaic.version = 11 : i64} {
  func.func @squeeze_kernel(%arg0: i32, %arg1: i32, %arg2: memref<1x4x128xf32, #tpu.memory_space<vmem>>, %arg3: memref<8x4xf32, #tpu.memory_space<vmem>>, %arg4: memref<1x8x128xf32, #tpu.memory_space<vmem>>, %arg5: memref<1x8x1xf32, #tpu.memory_space<vmem>>, %arg6: memref<1x8x1xf32, #tpu.memory_space<vmem>>, %arg7: memref<8x1xf32, #tpu.memory_space<vmem>>, %arg8: memref<8x1xf32, #tpu.memory_space<vmem>>) attributes {dimension_semantics = [#tpu.dimension_semantics<parallel>, #tpu.dimension_semantics<arbitrary>], iteration_bounds = array<i64: 2, 1>, scalar_prefetch = 0 : i64, scratch_operands = 2 : i64, tpu.core_type = #tpu.core_type<tc>, window_params = [{transform_indices = @transform_0, window_bounds = array<i64: 1, 4, 128>}, {pipeline_mode = #tpu.pipeline_mode<synchronous>, transform_indices = @transform_1, window_bounds = array<i64: 8, 4>}, {transform_indices = @transform_2, window_bounds = array<i64: 1, 8, 128>}, {transform_indices = @transform_3, window_bounds = array<i64: 1, 8, 1>}, {transform_indices = @transform_4, window_bounds = array<i64: 1, 8, 1>}]} {
    %c0 = arith.constant 0 : index
    %c0_0 = arith.constant 0 : index
    %0 = vector.load %arg3[%c0, %c0_0] : memref<8x4xf32, #tpu.memory_space<vmem>>, vector<8x4xf32>
    %c0_1 = arith.constant 0 : index
    %c0_2 = arith.constant 0 : index
    %c0_3 = arith.constant 0 : index
    %1 = vector.load %arg2[%c0_1, %c0_2, %c0_3] : memref<1x4x128xf32, #tpu.memory_space<vmem>>, vector<1x4x128xf32>
    %2 = vector.shape_cast %1 : vector<1x4x128xf32> to vector<4x128xf32>
    %cst = arith.constant dense<0.000000e+00> : vector<8x128xf32>
    %3 = tpu.matmul %0, %2, %cst {dimension_numbers = #tpu.dot_dimension_numbers<[1], [0], [0], [1], [0, 0, 1, 1], [], []>} : vector<8x4xf32>, vector<4x128xf32>, vector<8x128xf32> -> vector<8x128xf32>
    %c0_4 = arith.constant 0 : index
    %c0_5 = arith.constant 0 : index
    %c0_6 = arith.constant 0 : index
    %4 = vector.load %arg4[%c0_4, %c0_5, %c0_6] : memref<1x8x128xf32, #tpu.memory_space<vmem>>, vector<1x8x128xf32>
    %5 = vector.shape_cast %4 : vector<1x8x128xf32> to vector<8x128xf32>
    %6 = vector.shape_cast %3 : vector<8x128xf32> to vector<1x8x128xf32>
    tpu.vector_store %arg4[%c0_4, %c0_5, %c0_6], %6 {strides = array<i32>} : memref<1x8x128xf32, #tpu.memory_space<vmem>>, vector<1x8x128xf32>,
    %cst_7 = arith.constant dense<0.000000e+00> : vector<8xf32>
    %7 = vector.multi_reduction <add>, %3, %cst_7 [1] : vector<8x128xf32> to vector<8xf32>
    %8 = vector.shape_cast %7 : vector<8xf32> to vector<8x1xf32>
    %9 = arith.mulf %3, %3 : vector<8x128xf32>
    %cst_8 = arith.constant dense<0.000000e+00> : vector<8xf32>
    %10 = vector.multi_reduction <add>, %9, %cst_8 [1] : vector<8x128xf32> to vector<8xf32>
    %11 = vector.shape_cast %10 : vector<8xf32> to vector<8x1xf32>
    %c0_i32 = arith.constant 0 : i32
    %12 = arith.cmpi eq, %arg1, %c0_i32 : i32
    %13 = arith.extui %12 : i1 to i32
    %c0_i32_9 = arith.constant 0 : i32
    %14 = arith.cmpi ne, %13, %c0_i32_9 : i32
    scf.if %14 {
      %cst_20 = arith.constant 0.000000e+00 : f32
      %24 = vector.broadcast %cst_20 : f32 to vector<8x1xf32>
      %c0_21 = arith.constant 0 : index
      %c0_22 = arith.constant 0 : index
      %25 = vector.load %arg7[%c0_21, %c0_22] : memref<8x1xf32, #tpu.memory_space<vmem>>, vector<8x1xf32>
      tpu.vector_store %arg7[%c0_21, %c0_22], %24 {strides = array<i32>} : memref<8x1xf32, #tpu.memory_space<vmem>>, vector<8x1xf32>,
      %cst_23 = arith.constant 0.000000e+00 : f32
      %26 = vector.broadcast %cst_23 : f32 to vector<8x1xf32>
      %c0_24 = arith.constant 0 : index
      %c0_25 = arith.constant 0 : index
      %27 = vector.load %arg8[%c0_24, %c0_25] : memref<8x1xf32, #tpu.memory_space<vmem>>, vector<8x1xf32>
      tpu.vector_store %arg8[%c0_24, %c0_25], %26 {strides = array<i32>} : memref<8x1xf32, #tpu.memory_space<vmem>>, vector<8x1xf32>,
    } else {
    }
    %c0_10 = arith.constant 0 : index
    %c0_11 = arith.constant 0 : index
    %15 = vector.load %arg7[%c0_10, %c0_11] : memref<8x1xf32, #tpu.memory_space<vmem>>, vector<8x1xf32>
    %16 = arith.addf %15, %8 : vector<8x1xf32>
    %c0_12 = arith.constant 0 : index
    %c0_13 = arith.constant 0 : index
    %17 = vector.load %arg7[%c0_12, %c0_13] : memref<8x1xf32, #tpu.memory_space<vmem>>, vector<8x1xf32>
    tpu.vector_store %arg7[%c0_12, %c0_13], %16 {strides = array<i32>} : memref<8x1xf32, #tpu.memory_space<vmem>>, vector<8x1xf32>,
    %c0_14 = arith.constant 0 : index
    %c0_15 = arith.constant 0 : index
    %18 = vector.load %arg8[%c0_14, %c0_15] : memref<8x1xf32, #tpu.memory_space<vmem>>, vector<8x1xf32>
    %19 = arith.addf %18, %11 : vector<8x1xf32>
    %c0_16 = arith.constant 0 : index
    %c0_17 = arith.constant 0 : index
    %20 = vector.load %arg8[%c0_16, %c0_17] : memref<8x1xf32, #tpu.memory_space<vmem>>, vector<8x1xf32>
    tpu.vector_store %arg8[%c0_16, %c0_17], %19 {strides = array<i32>} : memref<8x1xf32, #tpu.memory_space<vmem>>, vector<8x1xf32>,
    %c0_i32_18 = arith.constant 0 : i32
    %21 = arith.cmpi eq, %arg1, %c0_i32_18 : i32
    %22 = arith.extui %21 : i1 to i32
    %c0_i32_19 = arith.constant 0 : i32
    %23 = arith.cmpi ne, %22, %c0_i32_19 : i32
    scf.if %23 {
      %c0_20 = arith.constant 0 : index
      %c0_21 = arith.constant 0 : index
      %24 = vector.load %arg7[%c0_20, %c0_21] : memref<8x1xf32, #tpu.memory_space<vmem>>, vector<8x1xf32>
      %c0_22 = arith.constant 0 : index
      %c0_23 = arith.constant 0 : index
      %c0_24 = arith.constant 0 : index
      %25 = vector.load %arg5[%c0_22, %c0_23, %c0_24] : memref<1x8x1xf32, #tpu.memory_space<vmem>>, vector<1x8x1xf32>
      %26 = vector.shape_cast %25 : vector<1x8x1xf32> to vector<8x1xf32>
      %27 = vector.shape_cast %24 : vector<8x1xf32> to vector<1x8x1xf32>
      tpu.vector_store %arg5[%c0_22, %c0_23, %c0_24], %27 {strides = array<i32>} : memref<1x8x1xf32, #tpu.memory_space<vmem>>, vector<1x8x1xf32>,
      %c0_25 = arith.constant 0 : index
      %c0_26 = arith.constant 0 : index
      %28 = vector.load %arg8[%c0_25, %c0_26] : memref<8x1xf32, #tpu.memory_space<vmem>>, vector<8x1xf32>
      %c0_27 = arith.constant 0 : index
      %c0_28 = arith.constant 0 : index
      %c0_29 = arith.constant 0 : index
      %29 = vector.load %arg6[%c0_27, %c0_28, %c0_29] : memref<1x8x1xf32, #tpu.memory_space<vmem>>, vector<1x8x1xf32>
      %30 = vector.shape_cast %29 : vector<1x8x1xf32> to vector<8x1xf32>
      %31 = vector.shape_cast %28 : vector<8x1xf32> to vector<1x8x1xf32>
      tpu.vector_store %arg6[%c0_27, %c0_28, %c0_29], %31 {strides = array<i32>} : memref<1x8x1xf32, #tpu.memory_space<vmem>>, vector<1x8x1xf32>,
    } else {
    }
    return
  }
  func.func @transform_0(%arg0: i32, %arg1: i32) -> (i32, i32, i32) {
    %c0_i32 = arith.constant 0 : i32
    %c0_i32_0 = arith.constant 0 : i32
    return %arg0, %c0_i32, %arg1 : i32, i32, i32
  }
  func.func @transform_1(%arg0: i32, %arg1: i32) -> (i32, i32) {
    %c0_i32 = arith.constant 0 : i32
    %c0_i32_0 = arith.constant 0 : i32
    %c0_i32_1 = arith.constant 0 : i32
    return %c0_i32, %c0_i32_0 : i32, i32
  }
  func.func @transform_2(%arg0: i32, %arg1: i32) -> (i32, i32, i32) {
    %c0_i32 = arith.constant 0 : i32
    %c0_i32_0 = arith.constant 0 : i32
    return %arg0, %c0_i32, %arg1 : i32, i32, i32
  }
  func.func @transform_3(%arg0: i32, %arg1: i32) -> (i32, i32, i32) {
    %c0_i32 = arith.constant 0 : i32
    %c0_i32_0 = arith.constant 0 : i32
    %c0_i32_1 = arith.constant 0 : i32
    return %arg0, %c0_i32, %c0_i32_0 : i32, i32, i32
  }
  func.func @transform_4(%arg0: i32, %arg1: i32) -> (i32, i32, i32) {
    %c0_i32 = arith.constant 0 : i32
    %c0_i32_0 = arith.constant 0 : i32
    %c0_i32_1 = arith.constant 0 : i32
    return %arg0, %c0_i32, %c0_i32_0 : i32, i32, i32
  }
}

module attributes {stable_mosaic.version = 11 : i64} {
  func.func @expand_stats_kernel(%arg0: i32, %arg1: i32, %arg2: memref<1x8x128xf32, #tpu.memory_space<vmem>>, %arg3: memref<1x1x8x1xf32, #tpu.memory_space<vmem>>, %arg4: memref<1x1x8x1xf32, #tpu.memory_space<vmem>>, %arg5: memref<8x1xf32, #tpu.memory_space<vmem>>, %arg6: memref<8x1xf32, #tpu.memory_space<vmem>>, %arg7: memref<32x8xf32, #tpu.memory_space<vmem>>, %arg8: memref<32x8xf32, #tpu.memory_space<vmem>>, %arg9: memref<32x8xf32, #tpu.memory_space<vmem>>, %arg10: memref<1x32x1xf32, #tpu.memory_space<vmem>>, %arg11: memref<1x32x1xf32, #tpu.memory_space<vmem>>, %arg12: memref<32x1xf32, #tpu.memory_space<vmem>>, %arg13: memref<32x1xf32, #tpu.memory_space<vmem>>) attributes {dimension_semantics = [#tpu.dimension_semantics<parallel>, #tpu.dimension_semantics<arbitrary>], iteration_bounds = array<i64: 2, 1>, scalar_prefetch = 0 : i64, scratch_operands = 2 : i64, tpu.core_type = #tpu.core_type<tc>, window_params = [{transform_indices = @transform_0, window_bounds = array<i64: 1, 8, 128>}, {transform_indices = @transform_1, window_bounds = array<i64: 1, 1, 8, 1>}, {transform_indices = @transform_2, window_bounds = array<i64: 1, 1, 8, 1>}, {pipeline_mode = #tpu.pipeline_mode<synchronous>, transform_indices = @transform_3, window_bounds = array<i64: 8, 1>}, {pipeline_mode = #tpu.pipeline_mode<synchronous>, transform_indices = @transform_4, window_bounds = array<i64: 8, 1>}, {pipeline_mode = #tpu.pipeline_mode<synchronous>, transform_indices = @transform_5, window_bounds = array<i64: 32, 8>}, {pipeline_mode = #tpu.pipeline_mode<synchronous>, transform_indices = @transform_6, window_bounds = array<i64: 32, 8>}, {pipeline_mode = #tpu.pipeline_mode<synchronous>, transform_indices = @transform_7, window_bounds = array<i64: 32, 8>}, {transform_indices = @transform_8, window_bounds = array<i64: 1, 32, 1>}, {transform_indices = @transform_9, window_bounds = array<i64: 1, 32, 1>}]} {
    %c0 = arith.constant 0 : index
    %c0_0 = arith.constant 0 : index
    %0 = vector.load %arg5[%c0, %c0_0] : memref<8x1xf32, #tpu.memory_space<vmem>>, vector<8x1xf32>
    %c0_1 = arith.constant 0 : index
    %c0_2 = arith.constant 0 : index
    %1 = vector.load %arg6[%c0_1, %c0_2] : memref<8x1xf32, #tpu.memory_space<vmem>>, vector<8x1xf32>
    %c0_3 = arith.constant 0 : index
    %c0_4 = arith.constant 0 : index
    %c0_5 = arith.constant 0 : index
    %2 = vector.load %arg2[%c0_3, %c0_4, %c0_5] : memref<1x8x128xf32, #tpu.memory_space<vmem>>, vector<1x8x128xf32>
    %3 = vector.shape_cast %2 : vector<1x8x128xf32> to vector<8x128xf32>
    %4 = vector.broadcast %0 : vector<8x1xf32> to vector<8x128xf32>
    %5 = arith.mulf %3, %4 : vector<8x128xf32>
    %6 = vector.broadcast %1 : vector<8x1xf32> to vector<8x128xf32>
    %7 = arith.addf %5, %6 : vector<8x128xf32>
    %cst = arith.constant 0.000000e+00 : f32
    %8 = vector.broadcast %cst : f32 to vector<8x128xf32>
    %9 = arith.cmpf oge, %7, %8 : vector<8x128xf32>
    %cst_6 = arith.constant 0.00999999977 : f32
    %10 = vector.broadcast %cst_6 : f32 to vector<8x128xf32>
    %11 = arith.mulf %10, %7 : vector<8x128xf32>
    %12 = arith.select %9, %7, %11 : vector<8x128xi1>, vector<8x128xf32>
    %13 = tpu.iota {dimensions = array<i32: 1>} : vector<1x128xi32>
    %c128_i32 = arith.constant 128 : i32
    %14 = arith.muli %arg1, %c128_i32 : i32
    %15 = vector.broadcast %14 : i32 to vector<1x128xi32>
    %16 = arith.addi %13, %15 : vector<1x128xi32>
    %c16_i32 = arith.constant 16 : i32
    %17 = vector.broadcast %c16_i32 : i32 to vector<1x128xi32>
    %18 = arith.cmpi slt, %16, %17 : vector<1x128xi32>
    %cst_7 = arith.constant 0.000000e+00 : f32
    %19 = vector.shape_cast %18 : vector<1x128xi1> to vector<1x128xi1>
    %20 = vector.broadcast %19 : vector<1x128xi1> to vector<8x128xi1>
    %21 = vector.broadcast %cst_7 : f32 to vector<8x128xf32>
    %22 = arith.select %20, %12, %21 : vector<8x128xi1>, vector<8x128xf32>
    %c0_i32 = arith.constant 0 : i32
    %23 = arith.cmpi eq, %arg1, %c0_i32 : i32
    %c0_8 = arith.constant 0 : index
    %c0_9 = arith.constant 0 : index
    %c0_10 = arith.constant 0 : index
    %c0_11 = arith.constant 0 : index
    %24 = vector.load %arg3[%c0_8, %c0_9, %c0_10, %c0_11] : memref<1x1x8x1xf32, #tpu.memory_space<vmem>>, vector<1x1x8x1xf32>
    %25 = vector.shape_cast %24 : vector<1x1x8x1xf32> to vector<8x1xf32>
    %26 = arith.mulf %25, %0 : vector<8x1xf32>
    %27 = arith.addf %26, %1 : vector<8x1xf32>
    %cst_12 = arith.constant 0.000000e+00 : f32
    %28 = vector.broadcast %cst_12 : f32 to vector<8x1xf32>
    %29 = arith.cmpf oge, %27, %28 : vector<8x1xf32>
    %cst_13 = arith.constant 0.00999999977 : f32
    %30 = vector.broadcast %cst_13 : f32 to vector<8x1xf32>
    %31 = arith.mulf %30, %27 : vector<8x1xf32>
    %32 = arith.select %29, %27, %31 : vector<8x1xi1>, vector<8x1xf32>
    %cst_14 = arith.constant 0.000000e+00 : f32
    %33 = vector.broadcast %cst_14 : f32 to vector<8x1xf32>
    %34 = arith.select %23, %33, %32 : vector<8x1xf32>
    %c0_i32_15 = arith.constant 0 : i32
    %35 = arith.cmpi eq, %arg1, %c0_i32_15 : i32
    %c0_16 = arith.constant 0 : index
    %c0_17 = arith.constant 0 : index
    %c0_18 = arith.constant 0 : index
    %c0_19 = arith.constant 0 : index
    %36 = vector.load %arg4[%c0_16, %c0_17, %c0_18, %c0_19] : memref<1x1x8x1xf32, #tpu.memory_space<vmem>>, vector<1x1x8x1xf32>
    %37 = vector.shape_cast %36 : vector<1x1x8x1xf32> to vector<8x1xf32>
    %38 = arith.mulf %37, %0 : vector<8x1xf32>
    %39 = arith.addf %38, %1 : vector<8x1xf32>
    %cst_20 = arith.constant 0.000000e+00 : f32
    %40 = vector.broadcast %cst_20 : f32 to vector<8x1xf32>
    %41 = arith.cmpf oge, %39, %40 : vector<8x1xf32>
    %cst_21 = arith.constant 0.00999999977 : f32
    %42 = vector.broadcast %cst_21 : f32 to vector<8x1xf32>
    %43 = arith.mulf %42, %39 : vector<8x1xf32>
    %44 = arith.select %41, %39, %43 : vector<8x1xi1>, vector<8x1xf32>
    %cst_22 = arith.constant 0.000000e+00 : f32
    %45 = vector.broadcast %cst_22 : f32 to vector<8x1xf32>
    %46 = arith.select %35, %45, %44 : vector<8x1xf32>
    %c0_i32_23 = arith.constant 0 : i32
    %47 = vector.broadcast %c0_i32_23 : i32 to vector<1x128xi32>
    %48 = arith.cmpi eq, %13, %47 : vector<1x128xi32>
    %c1_i32 = arith.constant 1 : i32
    %49 = tpu.dynamic_rotate %22 by %c1_i32 dim 1 : vector<8x128xf32>, i32 -> vector<8x128xf32>
    %50 = vector.shape_cast %48 : vector<1x128xi1> to vector<1x128xi1>
    %51 = vector.broadcast %50 : vector<1x128xi1> to vector<8x128xi1>
    %52 = vector.shape_cast %34 : vector<8x1xf32> to vector<8x1xf32>
    %53 = vector.broadcast %52 : vector<8x1xf32> to vector<8x128xf32>
    %54 = arith.select %51, %53, %49 : vector<8x128xi1>, vector<8x128xf32>
    %c127_i32 = arith.constant 127 : i32
    %55 = vector.broadcast %c127_i32 : i32 to vector<1x128xi32>
    %56 = arith.cmpi eq, %13, %55 : vector<1x128xi32>
    %c127_i32_24 = arith.constant 127 : i32
    %57 = tpu.dynamic_rotate %22 by %c127_i32_24 dim 1 : vector<8x128xf32>, i32 -> vector<8x128xf32>
    %58 = vector.shape_cast %56 : vector<1x128xi1> to vector<1x128xi1>
    %59 = vector.broadcast %58 : vector<1x128xi1> to vector<8x128xi1>
    %60 = vector.shape_cast %46 : vector<8x1xf32> to vector<8x1xf32>
    %61 = vector.broadcast %60 : vector<8x1xf32> to vector<8x128xf32>
    %62 = arith.select %59, %61, %57 : vector<8x128xi1>, vector<8x128xf32>
    %c0_25 = arith.constant 0 : index
    %c0_26 = arith.constant 0 : index
    %63 = vector.load %arg8[%c0_25, %c0_26] : memref<32x8xf32, #tpu.memory_space<vmem>>, vector<32x8xf32>
    %cst_27 = arith.constant dense<0.000000e+00> : vector<32x128xf32>
    %64 = tpu.matmul %63, %22, %cst_27 {dimension_numbers = #tpu.dot_dimension_numbers<[1], [0], [0], [1], [0, 0, 1, 1], [], []>} : vector<32x8xf32>, vector<8x128xf32>, vector<32x128xf32> -> vector<32x128xf32>
    %c0_28 = arith.constant 0 : index
    %c0_29 = arith.constant 0 : index
    %65 = vector.load %arg7[%c0_28, %c0_29] : memref<32x8xf32, #tpu.memory_space<vmem>>, vector<32x8xf32>
    %cst_30 = arith.constant dense<0.000000e+00> : vector<32x128xf32>
    %66 = tpu.matmul %65, %54, %cst_30 {dimension_numbers = #tpu.dot_dimension_numbers<[1], [0], [0], [1], [0, 0, 1, 1], [], []>} : vector<32x8xf32>, vector<8x128xf32>, vector<32x128xf32> -> vector<32x128xf32>
    %67 = arith.addf %64, %66 : vector<32x128xf32>
    %c0_31 = arith.constant 0 : index
    %c0_32 = arith.constant 0 : index
    %68 = vector.load %arg9[%c0_31, %c0_32] : memref<32x8xf32, #tpu.memory_space<vmem>>, vector<32x8xf32>
    %cst_33 = arith.constant dense<0.000000e+00> : vector<32x128xf32>
    %69 = tpu.matmul %68, %62, %cst_33 {dimension_numbers = #tpu.dot_dimension_numbers<[1], [0], [0], [1], [0, 0, 1, 1], [], []>} : vector<32x8xf32>, vector<8x128xf32>, vector<32x128xf32> -> vector<32x128xf32>
    %70 = arith.addf %67, %69 : vector<32x128xf32>
    %cst_34 = arith.constant 0.000000e+00 : f32
    %71 = vector.shape_cast %18 : vector<1x128xi1> to vector<1x128xi1>
    %72 = vector.broadcast %71 : vector<1x128xi1> to vector<32x128xi1>
    %73 = vector.broadcast %cst_34 : f32 to vector<32x128xf32>
    %74 = arith.select %72, %70, %73 : vector<32x128xi1>, vector<32x128xf32>
    %cst_35 = arith.constant dense<0.000000e+00> : vector<32xf32>
    %75 = vector.multi_reduction <add>, %74, %cst_35 [1] : vector<32x128xf32> to vector<32xf32>
    %76 = vector.shape_cast %75 : vector<32xf32> to vector<32x1xf32>
    %77 = arith.mulf %74, %74 : vector<32x128xf32>
    %cst_36 = arith.constant dense<0.000000e+00> : vector<32xf32>
    %78 = vector.multi_reduction <add>, %77, %cst_36 [1] : vector<32x128xf32> to vector<32xf32>
    %79 = vector.shape_cast %78 : vector<32xf32> to vector<32x1xf32>
    %c0_i32_37 = arith.constant 0 : i32
    %80 = arith.cmpi eq, %arg1, %c0_i32_37 : i32
    %81 = arith.extui %80 : i1 to i32
    %c0_i32_38 = arith.constant 0 : i32
    %82 = arith.cmpi ne, %81, %c0_i32_38 : i32
    scf.if %82 {
      %cst_49 = arith.constant 0.000000e+00 : f32
      %92 = vector.broadcast %cst_49 : f32 to vector<32x1xf32>
      %c0_50 = arith.constant 0 : index
      %c0_51 = arith.constant 0 : index
      %93 = vector.load %arg12[%c0_50, %c0_51] : memref<32x1xf32, #tpu.memory_space<vmem>>, vector<32x1xf32>
      tpu.vector_store %arg12[%c0_50, %c0_51], %92 {strides = array<i32>} : memref<32x1xf32, #tpu.memory_space<vmem>>, vector<32x1xf32>,
      %cst_52 = arith.constant 0.000000e+00 : f32
      %94 = vector.broadcast %cst_52 : f32 to vector<32x1xf32>
      %c0_53 = arith.constant 0 : index
      %c0_54 = arith.constant 0 : index
      %95 = vector.load %arg13[%c0_53, %c0_54] : memref<32x1xf32, #tpu.memory_space<vmem>>, vector<32x1xf32>
      tpu.vector_store %arg13[%c0_53, %c0_54], %94 {strides = array<i32>} : memref<32x1xf32, #tpu.memory_space<vmem>>, vector<32x1xf32>,
    } else {
    }
    %c0_39 = arith.constant 0 : index
    %c0_40 = arith.constant 0 : index
    %83 = vector.load %arg12[%c0_39, %c0_40] : memref<32x1xf32, #tpu.memory_space<vmem>>, vector<32x1xf32>
    %84 = arith.addf %83, %76 : vector<32x1xf32>
    %c0_41 = arith.constant 0 : index
    %c0_42 = arith.constant 0 : index
    %85 = vector.load %arg12[%c0_41, %c0_42] : memref<32x1xf32, #tpu.memory_space<vmem>>, vector<32x1xf32>
    tpu.vector_store %arg12[%c0_41, %c0_42], %84 {strides = array<i32>} : memref<32x1xf32, #tpu.memory_space<vmem>>, vector<32x1xf32>,
    %c0_43 = arith.constant 0 : index
    %c0_44 = arith.constant 0 : index
    %86 = vector.load %arg13[%c0_43, %c0_44] : memref<32x1xf32, #tpu.memory_space<vmem>>, vector<32x1xf32>
    %87 = arith.addf %86, %79 : vector<32x1xf32>
    %c0_45 = arith.constant 0 : index
    %c0_46 = arith.constant 0 : index
    %88 = vector.load %arg13[%c0_45, %c0_46] : memref<32x1xf32, #tpu.memory_space<vmem>>, vector<32x1xf32>
    tpu.vector_store %arg13[%c0_45, %c0_46], %87 {strides = array<i32>} : memref<32x1xf32, #tpu.memory_space<vmem>>, vector<32x1xf32>,
    %c0_i32_47 = arith.constant 0 : i32
    %89 = arith.cmpi eq, %arg1, %c0_i32_47 : i32
    %90 = arith.extui %89 : i1 to i32
    %c0_i32_48 = arith.constant 0 : i32
    %91 = arith.cmpi ne, %90, %c0_i32_48 : i32
    scf.if %91 {
      %c0_49 = arith.constant 0 : index
      %c0_50 = arith.constant 0 : index
      %92 = vector.load %arg12[%c0_49, %c0_50] : memref<32x1xf32, #tpu.memory_space<vmem>>, vector<32x1xf32>
      %c0_51 = arith.constant 0 : index
      %c0_52 = arith.constant 0 : index
      %c0_53 = arith.constant 0 : index
      %93 = vector.load %arg10[%c0_51, %c0_52, %c0_53] : memref<1x32x1xf32, #tpu.memory_space<vmem>>, vector<1x32x1xf32>
      %94 = vector.shape_cast %93 : vector<1x32x1xf32> to vector<32x1xf32>
      %95 = vector.shape_cast %92 : vector<32x1xf32> to vector<1x32x1xf32>
      tpu.vector_store %arg10[%c0_51, %c0_52, %c0_53], %95 {strides = array<i32>} : memref<1x32x1xf32, #tpu.memory_space<vmem>>, vector<1x32x1xf32>,
      %c0_54 = arith.constant 0 : index
      %c0_55 = arith.constant 0 : index
      %96 = vector.load %arg13[%c0_54, %c0_55] : memref<32x1xf32, #tpu.memory_space<vmem>>, vector<32x1xf32>
      %c0_56 = arith.constant 0 : index
      %c0_57 = arith.constant 0 : index
      %c0_58 = arith.constant 0 : index
      %97 = vector.load %arg11[%c0_56, %c0_57, %c0_58] : memref<1x32x1xf32, #tpu.memory_space<vmem>>, vector<1x32x1xf32>
      %98 = vector.shape_cast %97 : vector<1x32x1xf32> to vector<32x1xf32>
      %99 = vector.shape_cast %96 : vector<32x1xf32> to vector<1x32x1xf32>
      tpu.vector_store %arg11[%c0_56, %c0_57, %c0_58], %99 {strides = array<i32>} : memref<1x32x1xf32, #tpu.memory_space<vmem>>, vector<1x32x1xf32>,
    } else {
    }
    return
  }
  func.func @transform_0(%arg0: i32, %arg1: i32) -> (i32, i32, i32) {
    %c0_i32 = arith.constant 0 : i32
    %c0_i32_0 = arith.constant 0 : i32
    return %arg0, %c0_i32, %arg1 : i32, i32, i32
  }
  func.func @transform_1(%arg0: i32, %arg1: i32) -> (i32, i32, i32, i32) {
    %c1_i32 = arith.constant 1 : i32
    %0 = arith.subi %arg1, %c1_i32 : i32
    %c0_i32 = arith.constant 0 : i32
    %1 = arith.maxsi %0, %c0_i32 : i32
    %c0_i32_0 = arith.constant 0 : i32
    %c0_i32_1 = arith.constant 0 : i32
    %c0_i32_2 = arith.constant 0 : i32
    return %arg0, %1, %c0_i32_0, %c0_i32_1 : i32, i32, i32, i32
  }
  func.func @transform_2(%arg0: i32, %arg1: i32) -> (i32, i32, i32, i32) {
    %c1_i32 = arith.constant 1 : i32
    %0 = arith.addi %arg1, %c1_i32 : i32
    %c0_i32 = arith.constant 0 : i32
    %1 = arith.minsi %0, %c0_i32 : i32
    %c0_i32_0 = arith.constant 0 : i32
    %c0_i32_1 = arith.constant 0 : i32
    %c0_i32_2 = arith.constant 0 : i32
    return %arg0, %1, %c0_i32_0, %c0_i32_1 : i32, i32, i32, i32
  }
  func.func @transform_3(%arg0: i32, %arg1: i32) -> (i32, i32) {
    %c0_i32 = arith.constant 0 : i32
    %c0_i32_0 = arith.constant 0 : i32
    %c0_i32_1 = arith.constant 0 : i32
    return %c0_i32, %c0_i32_0 : i32, i32
  }
  func.func @transform_4(%arg0: i32, %arg1: i32) -> (i32, i32) {
    %c0_i32 = arith.constant 0 : i32
    %c0_i32_0 = arith.constant 0 : i32
    %c0_i32_1 = arith.constant 0 : i32
    return %c0_i32, %c0_i32_0 : i32, i32
  }
  func.func @transform_5(%arg0: i32, %arg1: i32) -> (i32, i32) {
    %c0_i32 = arith.constant 0 : i32
    %c0_i32_0 = arith.constant 0 : i32
    %c0_i32_1 = arith.constant 0 : i32
    return %c0_i32, %c0_i32_0 : i32, i32
  }
  func.func @transform_6(%arg0: i32, %arg1: i32) -> (i32, i32) {
    %c0_i32 = arith.constant 0 : i32
    %c0_i32_0 = arith.constant 0 : i32
    %c0_i32_1 = arith.constant 0 : i32
    return %c0_i32, %c0_i32_0 : i32, i32
  }
  func.func @transform_7(%arg0: i32, %arg1: i32) -> (i32, i32) {
    %c0_i32 = arith.constant 0 : i32
    %c0_i32_0 = arith.constant 0 : i32
    %c0_i32_1 = arith.constant 0 : i32
    return %c0_i32, %c0_i32_0 : i32, i32
  }
  func.func @transform_8(%arg0: i32, %arg1: i32) -> (i32, i32, i32) {
    %c0_i32 = arith.constant 0 : i32
    %c0_i32_0 = arith.constant 0 : i32
    %c0_i32_1 = arith.constant 0 : i32
    return %arg0, %c0_i32, %c0_i32_0 : i32, i32, i32
  }
  func.func @transform_9(%arg0: i32, %arg1: i32) -> (i32, i32, i32) {
    %c0_i32 = arith.constant 0 : i32
    %c0_i32_0 = arith.constant 0 : i32
    %c0_i32_1 = arith.constant 0 : i32
    return %arg0, %c0_i32, %c0_i32_0 : i32, i32, i32
  }
}

module attributes {stable_mosaic.version = 11 : i64} {
  func.func @output_kernel(%arg0: i32, %arg1: i32, %arg2: memref<1x8x128xf32, #tpu.memory_space<vmem>>, %arg3: memref<1x1x8x1xf32, #tpu.memory_space<vmem>>, %arg4: memref<1x1x8x1xf32, #tpu.memory_space<vmem>>, %arg5: memref<1x4x128xf32, #tpu.memory_space<vmem>>, %arg6: memref<8x1xf32, #tpu.memory_space<vmem>>, %arg7: memref<8x1xf32, #tpu.memory_space<vmem>>, %arg8: memref<32x1xf32, #tpu.memory_space<vmem>>, %arg9: memref<32x1xf32, #tpu.memory_space<vmem>>, %arg10: memref<32x8xf32, #tpu.memory_space<vmem>>, %arg11: memref<32x8xf32, #tpu.memory_space<vmem>>, %arg12: memref<32x8xf32, #tpu.memory_space<vmem>>, %arg13: memref<32x4xf32, #tpu.memory_space<vmem>>, %arg14: memref<32x1xf32, #tpu.memory_space<vmem>>, %arg15: memref<1x32x128xf32, #tpu.memory_space<vmem>>) attributes {dimension_semantics = [#tpu.dimension_semantics<parallel>, #tpu.dimension_semantics<parallel>], iteration_bounds = array<i64: 2, 1>, scalar_prefetch = 0 : i64, scratch_operands = 0 : i64, tpu.core_type = #tpu.core_type<tc>, window_params = [{transform_indices = @transform_0, window_bounds = array<i64: 1, 8, 128>}, {transform_indices = @transform_1, window_bounds = array<i64: 1, 1, 8, 1>}, {transform_indices = @transform_2, window_bounds = array<i64: 1, 1, 8, 1>}, {transform_indices = @transform_3, window_bounds = array<i64: 1, 4, 128>}, {pipeline_mode = #tpu.pipeline_mode<synchronous>, transform_indices = @transform_4, window_bounds = array<i64: 8, 1>}, {pipeline_mode = #tpu.pipeline_mode<synchronous>, transform_indices = @transform_5, window_bounds = array<i64: 8, 1>}, {pipeline_mode = #tpu.pipeline_mode<synchronous>, transform_indices = @transform_6, window_bounds = array<i64: 32, 1>}, {pipeline_mode = #tpu.pipeline_mode<synchronous>, transform_indices = @transform_7, window_bounds = array<i64: 32, 1>}, {pipeline_mode = #tpu.pipeline_mode<synchronous>, transform_indices = @transform_8, window_bounds = array<i64: 32, 8>}, {pipeline_mode = #tpu.pipeline_mode<synchronous>, transform_indices = @transform_9, window_bounds = array<i64: 32, 8>}, {pipeline_mode = #tpu.pipeline_mode<synchronous>, transform_indices = @transform_10, window_bounds = array<i64: 32, 8>}, {pipeline_mode = #tpu.pipeline_mode<synchronous>, transform_indices = @transform_11, window_bounds = array<i64: 32, 4>}, {pipeline_mode = #tpu.pipeline_mode<synchronous>, transform_indices = @transform_12, window_bounds = array<i64: 32, 1>}, {transform_indices = @transform_13, window_bounds = array<i64: 1, 32, 128>}]} {
    %c0 = arith.constant 0 : index
    %c0_0 = arith.constant 0 : index
    %0 = vector.load %arg6[%c0, %c0_0] : memref<8x1xf32, #tpu.memory_space<vmem>>, vector<8x1xf32>
    %c0_1 = arith.constant 0 : index
    %c0_2 = arith.constant 0 : index
    %1 = vector.load %arg7[%c0_1, %c0_2] : memref<8x1xf32, #tpu.memory_space<vmem>>, vector<8x1xf32>
    %c0_3 = arith.constant 0 : index
    %c0_4 = arith.constant 0 : index
    %c0_5 = arith.constant 0 : index
    %2 = vector.load %arg2[%c0_3, %c0_4, %c0_5] : memref<1x8x128xf32, #tpu.memory_space<vmem>>, vector<1x8x128xf32>
    %3 = vector.shape_cast %2 : vector<1x8x128xf32> to vector<8x128xf32>
    %4 = vector.broadcast %0 : vector<8x1xf32> to vector<8x128xf32>
    %5 = arith.mulf %3, %4 : vector<8x128xf32>
    %6 = vector.broadcast %1 : vector<8x1xf32> to vector<8x128xf32>
    %7 = arith.addf %5, %6 : vector<8x128xf32>
    %cst = arith.constant 0.000000e+00 : f32
    %8 = vector.broadcast %cst : f32 to vector<8x128xf32>
    %9 = arith.cmpf oge, %7, %8 : vector<8x128xf32>
    %cst_6 = arith.constant 0.00999999977 : f32
    %10 = vector.broadcast %cst_6 : f32 to vector<8x128xf32>
    %11 = arith.mulf %10, %7 : vector<8x128xf32>
    %12 = arith.select %9, %7, %11 : vector<8x128xi1>, vector<8x128xf32>
    %13 = tpu.iota {dimensions = array<i32: 1>} : vector<1x128xi32>
    %c128_i32 = arith.constant 128 : i32
    %14 = arith.muli %arg1, %c128_i32 : i32
    %15 = vector.broadcast %14 : i32 to vector<1x128xi32>
    %16 = arith.addi %13, %15 : vector<1x128xi32>
    %c16_i32 = arith.constant 16 : i32
    %17 = vector.broadcast %c16_i32 : i32 to vector<1x128xi32>
    %18 = arith.cmpi slt, %16, %17 : vector<1x128xi32>
    %cst_7 = arith.constant 0.000000e+00 : f32
    %19 = vector.shape_cast %18 : vector<1x128xi1> to vector<1x128xi1>
    %20 = vector.broadcast %19 : vector<1x128xi1> to vector<8x128xi1>
    %21 = vector.broadcast %cst_7 : f32 to vector<8x128xf32>
    %22 = arith.select %20, %12, %21 : vector<8x128xi1>, vector<8x128xf32>
    %c0_i32 = arith.constant 0 : i32
    %23 = arith.cmpi eq, %arg1, %c0_i32 : i32
    %c0_8 = arith.constant 0 : index
    %c0_9 = arith.constant 0 : index
    %c0_10 = arith.constant 0 : index
    %c0_11 = arith.constant 0 : index
    %24 = vector.load %arg3[%c0_8, %c0_9, %c0_10, %c0_11] : memref<1x1x8x1xf32, #tpu.memory_space<vmem>>, vector<1x1x8x1xf32>
    %25 = vector.shape_cast %24 : vector<1x1x8x1xf32> to vector<8x1xf32>
    %26 = arith.mulf %25, %0 : vector<8x1xf32>
    %27 = arith.addf %26, %1 : vector<8x1xf32>
    %cst_12 = arith.constant 0.000000e+00 : f32
    %28 = vector.broadcast %cst_12 : f32 to vector<8x1xf32>
    %29 = arith.cmpf oge, %27, %28 : vector<8x1xf32>
    %cst_13 = arith.constant 0.00999999977 : f32
    %30 = vector.broadcast %cst_13 : f32 to vector<8x1xf32>
    %31 = arith.mulf %30, %27 : vector<8x1xf32>
    %32 = arith.select %29, %27, %31 : vector<8x1xi1>, vector<8x1xf32>
    %cst_14 = arith.constant 0.000000e+00 : f32
    %33 = vector.broadcast %cst_14 : f32 to vector<8x1xf32>
    %34 = arith.select %23, %33, %32 : vector<8x1xf32>
    %c0_i32_15 = arith.constant 0 : i32
    %35 = arith.cmpi eq, %arg1, %c0_i32_15 : i32
    %c0_16 = arith.constant 0 : index
    %c0_17 = arith.constant 0 : index
    %c0_18 = arith.constant 0 : index
    %c0_19 = arith.constant 0 : index
    %36 = vector.load %arg4[%c0_16, %c0_17, %c0_18, %c0_19] : memref<1x1x8x1xf32, #tpu.memory_space<vmem>>, vector<1x1x8x1xf32>
    %37 = vector.shape_cast %36 : vector<1x1x8x1xf32> to vector<8x1xf32>
    %38 = arith.mulf %37, %0 : vector<8x1xf32>
    %39 = arith.addf %38, %1 : vector<8x1xf32>
    %cst_20 = arith.constant 0.000000e+00 : f32
    %40 = vector.broadcast %cst_20 : f32 to vector<8x1xf32>
    %41 = arith.cmpf oge, %39, %40 : vector<8x1xf32>
    %cst_21 = arith.constant 0.00999999977 : f32
    %42 = vector.broadcast %cst_21 : f32 to vector<8x1xf32>
    %43 = arith.mulf %42, %39 : vector<8x1xf32>
    %44 = arith.select %41, %39, %43 : vector<8x1xi1>, vector<8x1xf32>
    %cst_22 = arith.constant 0.000000e+00 : f32
    %45 = vector.broadcast %cst_22 : f32 to vector<8x1xf32>
    %46 = arith.select %35, %45, %44 : vector<8x1xf32>
    %c0_i32_23 = arith.constant 0 : i32
    %47 = vector.broadcast %c0_i32_23 : i32 to vector<1x128xi32>
    %48 = arith.cmpi eq, %13, %47 : vector<1x128xi32>
    %c1_i32 = arith.constant 1 : i32
    %49 = tpu.dynamic_rotate %22 by %c1_i32 dim 1 : vector<8x128xf32>, i32 -> vector<8x128xf32>
    %50 = vector.shape_cast %48 : vector<1x128xi1> to vector<1x128xi1>
    %51 = vector.broadcast %50 : vector<1x128xi1> to vector<8x128xi1>
    %52 = vector.shape_cast %34 : vector<8x1xf32> to vector<8x1xf32>
    %53 = vector.broadcast %52 : vector<8x1xf32> to vector<8x128xf32>
    %54 = arith.select %51, %53, %49 : vector<8x128xi1>, vector<8x128xf32>
    %c127_i32 = arith.constant 127 : i32
    %55 = vector.broadcast %c127_i32 : i32 to vector<1x128xi32>
    %56 = arith.cmpi eq, %13, %55 : vector<1x128xi32>
    %c127_i32_24 = arith.constant 127 : i32
    %57 = tpu.dynamic_rotate %22 by %c127_i32_24 dim 1 : vector<8x128xf32>, i32 -> vector<8x128xf32>
    %58 = vector.shape_cast %56 : vector<1x128xi1> to vector<1x128xi1>
    %59 = vector.broadcast %58 : vector<1x128xi1> to vector<8x128xi1>
    %60 = vector.shape_cast %46 : vector<8x1xf32> to vector<8x1xf32>
    %61 = vector.broadcast %60 : vector<8x1xf32> to vector<8x128xf32>
    %62 = arith.select %59, %61, %57 : vector<8x128xi1>, vector<8x128xf32>
    %c0_25 = arith.constant 0 : index
    %c0_26 = arith.constant 0 : index
    %63 = vector.load %arg11[%c0_25, %c0_26] : memref<32x8xf32, #tpu.memory_space<vmem>>, vector<32x8xf32>
    %cst_27 = arith.constant dense<0.000000e+00> : vector<32x128xf32>
    %64 = tpu.matmul %63, %22, %cst_27 {dimension_numbers = #tpu.dot_dimension_numbers<[1], [0], [0], [1], [0, 0, 1, 1], [], []>} : vector<32x8xf32>, vector<8x128xf32>, vector<32x128xf32> -> vector<32x128xf32>
    %c0_28 = arith.constant 0 : index
    %c0_29 = arith.constant 0 : index
    %65 = vector.load %arg10[%c0_28, %c0_29] : memref<32x8xf32, #tpu.memory_space<vmem>>, vector<32x8xf32>
    %cst_30 = arith.constant dense<0.000000e+00> : vector<32x128xf32>
    %66 = tpu.matmul %65, %54, %cst_30 {dimension_numbers = #tpu.dot_dimension_numbers<[1], [0], [0], [1], [0, 0, 1, 1], [], []>} : vector<32x8xf32>, vector<8x128xf32>, vector<32x128xf32> -> vector<32x128xf32>
    %67 = arith.addf %64, %66 : vector<32x128xf32>
    %c0_31 = arith.constant 0 : index
    %c0_32 = arith.constant 0 : index
    %68 = vector.load %arg12[%c0_31, %c0_32] : memref<32x8xf32, #tpu.memory_space<vmem>>, vector<32x8xf32>
    %cst_33 = arith.constant dense<0.000000e+00> : vector<32x128xf32>
    %69 = tpu.matmul %68, %62, %cst_33 {dimension_numbers = #tpu.dot_dimension_numbers<[1], [0], [0], [1], [0, 0, 1, 1], [], []>} : vector<32x8xf32>, vector<8x128xf32>, vector<32x128xf32> -> vector<32x128xf32>
    %70 = arith.addf %67, %69 : vector<32x128xf32>
    %c0_34 = arith.constant 0 : index
    %c0_35 = arith.constant 0 : index
    %71 = vector.load %arg8[%c0_34, %c0_35] : memref<32x1xf32, #tpu.memory_space<vmem>>, vector<32x1xf32>
    %72 = vector.broadcast %71 : vector<32x1xf32> to vector<32x128xf32>
    %73 = arith.mulf %70, %72 : vector<32x128xf32>
    %c0_36 = arith.constant 0 : index
    %c0_37 = arith.constant 0 : index
    %74 = vector.load %arg9[%c0_36, %c0_37] : memref<32x1xf32, #tpu.memory_space<vmem>>, vector<32x1xf32>
    %75 = vector.broadcast %74 : vector<32x1xf32> to vector<32x128xf32>
    %76 = arith.addf %73, %75 : vector<32x128xf32>
    %cst_38 = arith.constant 0.000000e+00 : f32
    %77 = vector.broadcast %cst_38 : f32 to vector<32x128xf32>
    %78 = arith.cmpf oge, %76, %77 : vector<32x128xf32>
    %cst_39 = arith.constant 9.99999974E-5 : f32
    %79 = vector.broadcast %cst_39 : f32 to vector<32x128xf32>
    %80 = arith.mulf %79, %76 : vector<32x128xf32>
    %81 = arith.select %78, %76, %80 : vector<32x128xi1>, vector<32x128xf32>
    %c0_40 = arith.constant 0 : index
    %c0_41 = arith.constant 0 : index
    %82 = vector.load %arg13[%c0_40, %c0_41] : memref<32x4xf32, #tpu.memory_space<vmem>>, vector<32x4xf32>
    %c0_42 = arith.constant 0 : index
    %c0_43 = arith.constant 0 : index
    %c0_44 = arith.constant 0 : index
    %83 = vector.load %arg5[%c0_42, %c0_43, %c0_44] : memref<1x4x128xf32, #tpu.memory_space<vmem>>, vector<1x4x128xf32>
    %84 = vector.shape_cast %83 : vector<1x4x128xf32> to vector<4x128xf32>
    %cst_45 = arith.constant dense<0.000000e+00> : vector<32x128xf32>
    %85 = tpu.matmul %82, %84, %cst_45 {dimension_numbers = #tpu.dot_dimension_numbers<[1], [0], [0], [1], [0, 0, 1, 1], [], []>} : vector<32x4xf32>, vector<4x128xf32>, vector<32x128xf32> -> vector<32x128xf32>
    %c0_46 = arith.constant 0 : index
    %c0_47 = arith.constant 0 : index
    %86 = vector.load %arg14[%c0_46, %c0_47] : memref<32x1xf32, #tpu.memory_space<vmem>>, vector<32x1xf32>
    %87 = vector.broadcast %86 : vector<32x1xf32> to vector<32x128xf32>
    %88 = arith.addf %85, %87 : vector<32x128xf32>
    %89 = arith.addf %81, %88 : vector<32x128xf32>
    %cst_48 = arith.constant 0.000000e+00 : f32
    %90 = vector.broadcast %cst_48 : f32 to vector<32x128xf32>
    %91 = arith.cmpf oge, %89, %90 : vector<32x128xf32>
    %cst_49 = arith.constant 0.00999999977 : f32
    %92 = vector.broadcast %cst_49 : f32 to vector<32x128xf32>
    %93 = arith.mulf %92, %89 : vector<32x128xf32>
    %94 = arith.select %91, %89, %93 : vector<32x128xi1>, vector<32x128xf32>
    %c0_50 = arith.constant 0 : index
    %c0_51 = arith.constant 0 : index
    %c0_52 = arith.constant 0 : index
    %95 = vector.load %arg15[%c0_50, %c0_51, %c0_52] : memref<1x32x128xf32, #tpu.memory_space<vmem>>, vector<1x32x128xf32>
    %96 = vector.shape_cast %95 : vector<1x32x128xf32> to vector<32x128xf32>
    %97 = vector.shape_cast %94 : vector<32x128xf32> to vector<1x32x128xf32>
    tpu.vector_store %arg15[%c0_50, %c0_51, %c0_52], %97 {strides = array<i32>} : memref<1x32x128xf32, #tpu.memory_space<vmem>>, vector<1x32x128xf32>,
    return
  }
  func.func @transform_0(%arg0: i32, %arg1: i32) -> (i32, i32, i32) {
    %c0_i32 = arith.constant 0 : i32
    %c0_i32_0 = arith.constant 0 : i32
    return %arg0, %c0_i32, %arg1 : i32, i32, i32
  }
  func.func @transform_1(%arg0: i32, %arg1: i32) -> (i32, i32, i32, i32) {
    %c1_i32 = arith.constant 1 : i32
    %0 = arith.subi %arg1, %c1_i32 : i32
    %c0_i32 = arith.constant 0 : i32
    %1 = arith.maxsi %0, %c0_i32 : i32
    %c0_i32_0 = arith.constant 0 : i32
    %c0_i32_1 = arith.constant 0 : i32
    %c0_i32_2 = arith.constant 0 : i32
    return %arg0, %1, %c0_i32_0, %c0_i32_1 : i32, i32, i32, i32
  }
  func.func @transform_2(%arg0: i32, %arg1: i32) -> (i32, i32, i32, i32) {
    %c1_i32 = arith.constant 1 : i32
    %0 = arith.addi %arg1, %c1_i32 : i32
    %c0_i32 = arith.constant 0 : i32
    %1 = arith.minsi %0, %c0_i32 : i32
    %c0_i32_0 = arith.constant 0 : i32
    %c0_i32_1 = arith.constant 0 : i32
    %c0_i32_2 = arith.constant 0 : i32
    return %arg0, %1, %c0_i32_0, %c0_i32_1 : i32, i32, i32, i32
  }
  func.func @transform_3(%arg0: i32, %arg1: i32) -> (i32, i32, i32) {
    %c0_i32 = arith.constant 0 : i32
    %c0_i32_0 = arith.constant 0 : i32
    return %arg0, %c0_i32, %arg1 : i32, i32, i32
  }
  func.func @transform_4(%arg0: i32, %arg1: i32) -> (i32, i32) {
    %c0_i32 = arith.constant 0 : i32
    %c0_i32_0 = arith.constant 0 : i32
    %c0_i32_1 = arith.constant 0 : i32
    return %c0_i32, %c0_i32_0 : i32, i32
  }
  func.func @transform_5(%arg0: i32, %arg1: i32) -> (i32, i32) {
    %c0_i32 = arith.constant 0 : i32
    %c0_i32_0 = arith.constant 0 : i32
    %c0_i32_1 = arith.constant 0 : i32
    return %c0_i32, %c0_i32_0 : i32, i32
  }
  func.func @transform_6(%arg0: i32, %arg1: i32) -> (i32, i32) {
    %c0_i32 = arith.constant 0 : i32
    %c0_i32_0 = arith.constant 0 : i32
    %c0_i32_1 = arith.constant 0 : i32
    return %c0_i32, %c0_i32_0 : i32, i32
  }
  func.func @transform_7(%arg0: i32, %arg1: i32) -> (i32, i32) {
    %c0_i32 = arith.constant 0 : i32
    %c0_i32_0 = arith.constant 0 : i32
    %c0_i32_1 = arith.constant 0 : i32
    return %c0_i32, %c0_i32_0 : i32, i32
  }
  func.func @transform_8(%arg0: i32, %arg1: i32) -> (i32, i32) {
    %c0_i32 = arith.constant 0 : i32
    %c0_i32_0 = arith.constant 0 : i32
    %c0_i32_1 = arith.constant 0 : i32
    return %c0_i32, %c0_i32_0 : i32, i32
  }
  func.func @transform_9(%arg0: i32, %arg1: i32) -> (i32, i32) {
    %c0_i32 = arith.constant 0 : i32
    %c0_i32_0 = arith.constant 0 : i32
    %c0_i32_1 = arith.constant 0 : i32
    return %c0_i32, %c0_i32_0 : i32, i32
  }
  func.func @transform_10(%arg0: i32, %arg1: i32) -> (i32, i32) {
    %c0_i32 = arith.constant 0 : i32
    %c0_i32_0 = arith.constant 0 : i32
    %c0_i32_1 = arith.constant 0 : i32
    return %c0_i32, %c0_i32_0 : i32, i32
  }
  func.func @transform_11(%arg0: i32, %arg1: i32) -> (i32, i32) {
    %c0_i32 = arith.constant 0 : i32
    %c0_i32_0 = arith.constant 0 : i32
    %c0_i32_1 = arith.constant 0 : i32
    return %c0_i32, %c0_i32_0 : i32, i32
  }
  func.func @transform_12(%arg0: i32, %arg1: i32) -> (i32, i32) {
    %c0_i32 = arith.constant 0 : i32
    %c0_i32_0 = arith.constant 0 : i32
    %c0_i32_1 = arith.constant 0 : i32
    return %c0_i32, %c0_i32_0 : i32, i32
  }
  func.func @transform_13(%arg0: i32, %arg1: i32) -> (i32, i32, i32) {
    %c0_i32 = arith.constant 0 : i32
    %c0_i32_0 = arith.constant 0 : i32
    return %arg0, %c0_i32, %arg1 : i32, i32, i32
  }
}

</mosaic_0001>

<llo_original>
// kernel: residual_fire.3
$region0: #{residual_fire.3}
  #allocation0 [shape = 'u32[]', space=smem, size = 0x4, offset = 0x4, fixed_abs, tag = 'smem constant byte address 0x4 - core index']
  #allocation1 [shape = 'u32[144,128]{1,0:T(1,128)}', space=vmem, size = 0x12000, scoped, tag = 'internal scratch']
  #allocation2 [shape = 'f32[8,1]{1,0:T(8,128)}', space=vmem, size = 0x1000, scoped, tag = 'scratch operand']
  #allocation3 [shape = 'f32[8,1]{1,0:T(8,128)}', space=vmem, size = 0x1000, scoped, tag = 'scratch operand']
  %s0 = inlined_call_operand.vmem [shape: f32[2,4,128], index: 0, kind: input, shape index: {}]
  %s1 = inlined_call_operand.vmem [shape: f32[8,4], index: 1, kind: input, shape index: {}]
  %s2 = inlined_call_operand.vmem [shape: f32[2,8,128], index: 2, kind: output, shape index: {0}]
  %s3 = inlined_call_operand.vmem [shape: f32[2,8,1], index: 3, kind: output, shape index: {1}]
  %s4 = inlined_call_operand.vmem [shape: f32[2,8,1], index: 4, kind: output, shape index: {2}]
  %5 = xla_tuple %s2, %s3, %s4
  %s6 = sld [smem:[#allocation0]]
  $region65: #{residual_fire.3} parent=0
    _
  %s8 = ssub.s32 1, %s6
  %s9 = scalar_select 0, %s8, %s6
  loop: start=0, step=1, limit=4
  $region2: #{residual_fire.3} parent=0 // loop_pre_header
    _
  $region3: #{residual_fire.3} parent=0 // loop_header
    %s11 = sphi 0, %s15
    %p12 = scmp.ge.s32.totalorder %s11, 4
    %s18 = sphi 0, %s30
    %s19 = sphi 0, %s26
    %s20 = sphi 0, %s18
    %s21 = sphi 0, %s19
    %s22 = sphi 0, %s20
    %s23 = sphi 0, %s21
    %s35 = sphi 0, %s37
    %s38 = sphi 0, %s35
    %s39 = sphi 0, %s38
    %s55 = sphi 0, %s39
    %s59 = sphi 0, %s59
    %s61 = sphi 0, %s59
    %s62 = sphi 0, %s61
    %s76 = sphi 0, %s62
    %s84 = sphi 0, %s86
    %s87 = sphi 0, %s84
    %s88 = sphi 0, %s87
    %s104 = sphi 0, %s88
    %s110 = sphi 0, %s112
    %s113 = sphi 0, %s110
    %s114 = sphi 0, %s113
    %s130 = sphi 0, %s114
    %s136 = sphi 0, %s138
    %s139 = sphi 0, %s136
    %s140 = sphi 0, %s139
    %s156 = sphi 0, %s140
  $region4: #{residual_fire.3} parent=0 // loop_header_branch
    %14 = sbr.rel (%p12) target = $region8
  $region5: #{residual_fire.3} parent=0 // loop_body
    %s16 = ssub.s32 %s11, 1
    %s17 = ssub.s32 %s11, 2
    %s24 = sadd.s32 1, %s19
    %p25 = scmp.ge.s32.totalorder %s24, 1
    %s26 = scalar_select %p25, 0, %s24
    %s27 = sadd.s32 1, %s18
    %s28 = scalar_select %p25, %s27, %s18
    %p29 = scmp.ge.s32.totalorder %s28, 2
    %s30 = scalar_select %p29, 0, %s28
    %s31 = ssub.s32 %s18, %s30
    %s32 = ssub.s32 %s19, %s26
    %s33 = sor.u32 %s31, %s32
    %p34 = scmp.eq.s32.totalorder %s33, 0
    %s36 = sadd.s32 %s35, 1
    %s37 = scalar_select %p34, %s35, %s36
    %p40 = pneg %p34
    %p41 = scmp.eq.s32.totalorder %s11, 1
    %p42 = por %p40, %p41
    %p43 = scmp.ne.s32.totalorder %s35, %s38
    %p44 = scmp.eq.s32.totalorder %s11, 0
    %p45 = por %p43, %p44
    %p46 = scmp.ne.s32.totalorder %s35, %s38
    %p47 = scmp.eq.s32.totalorder %s16, 1
    %p48 = por %p46, %p47
    %p49 = scmp.ne.s32.totalorder %s38, %s39
    %p50 = scmp.eq.s32.totalorder %s16, 0
    %p51 = por %p49, %p50
    %p52 = scmp.ne.s32.totalorder %s38, %s39
    %p53 = scmp.eq.s32.totalorder %s17, 1
    %p54 = por %p52, %p53
    %p56 = scmp.ne.s32.totalorder %s39, %s55
    %p57 = scmp.eq.s32.totalorder %s17, 0
    %p58 = por %p56, %p57
    %s60 = sadd.s32 %s59, 1
    %p63 = scmp.eq.s32.totalorder %s11, 1
    %p64 = scmp.ne.s32.totalorder %s59, %s61
    %p65 = scmp.eq.s32.totalorder %s11, 0
    %p66 = por %p64, %p65
    %p67 = scmp.ne.s32.totalorder %s59, %s61
    %p68 = scmp.eq.s32.totalorder %s16, 1
    %p69 = por %p67, %p68
    %p70 = scmp.ne.s32.totalorder %s61, %s62
    %p71 = scmp.eq.s32.totalorder %s16, 0
    %p72 = por %p70, %p71
    %p73 = scmp.ne.s32.totalorder %s61, %s62
    %p74 = scmp.eq.s32.totalorder %s17, 1
    %p75 = por %p73, %p74
    %p77 = scmp.ne.s32.totalorder %s62, %s76
    %p78 = scmp.eq.s32.totalorder %s17, 0
    %p79 = por %p77, %p78
    %s80 = ssub.s32 %s18, %s30
    %s81 = ssub.s32 %s19, %s26
    %s82 = sor.u32 %s80, %s81
    %p83 = scmp.eq.s32.totalorder %s82, 0
    %s85 = sadd.s32 %s84, 1
    %s86 = scalar_select %p83, %s84, %s85
    %p89 = pneg %p83
    %p90 = scmp.eq.s32.totalorder %s11, 1
    %p91 = por %p89, %p90
    %p92 = scmp.ne.s32.totalorder %s84, %s87
    %p93 = scmp.eq.s32.totalorder %s11, 0
    %p94 = por %p92, %p93
    %p95 = scmp.ne.s32.totalorder %s84, %s87
    %p96 = scmp.eq.s32.totalorder %s16, 1
    %p97 = por %p95, %p96
    %p98 = scmp.ne.s32.totalorder %s87, %s88
    %p99 = scmp.eq.s32.totalorder %s16, 0
    %p100 = por %p98, %p99
    %p101 = scmp.ne.s32.totalorder %s87, %s88
    %p102 = scmp.eq.s32.totalorder %s17, 1
    %p103 = por %p101, %p102
    %p105 = scmp.ne.s32.totalorder %s88, %s104
    %p106 = scmp.eq.s32.totalorder %s17, 0
    %p107 = por %p105, %p106
    %s108 = ssub.s32 %s18, %s30
    %p109 = scmp.eq.s32.totalorder %s108, 0
    %s111 = sadd.s32 %s110, 1
    %s112 = scalar_select %p109, %s110, %s111
    %p115 = pneg %p109
    %p116 = scmp.eq.s32.totalorder %s11, 1
    %p117 = por %p115, %p116
    %p118 = scmp.ne.s32.totalorder %s110, %s113
    %p119 = scmp.eq.s32.totalorder %s11, 0
    %p120 = por %p118, %p119
    %p121 = scmp.ne.s32.totalorder %s110, %s113
    %p122 = scmp.eq.s32.totalorder %s16, 1
    %p123 = por %p121, %p122
    %p124 = scmp.ne.s32.totalorder %s113, %s114
    %p125 = scmp.eq.s32.totalorder %s16, 0
    %p126 = por %p124, %p125
    %p127 = scmp.ne.s32.totalorder %s113, %s114
    %p128 = scmp.eq.s32.totalorder %s17, 1
    %p129 = por %p127, %p128
    %p131 = scmp.ne.s32.totalorder %s114, %s130
    %p132 = scmp.eq.s32.totalorder %s17, 0
    %p133 = por %p131, %p132
    %s134 = ssub.s32 %s18, %s30
    %p135 = scmp.eq.s32.totalorder %s134, 0
    %s137 = sadd.s32 %s136, 1
    %s138 = scalar_select %p135, %s136, %s137
    %p141 = pneg %p135
    %p142 = scmp.eq.s32.totalorder %s11, 1
    %p143 = por %p141, %p142
    %p144 = scmp.ne.s32.totalorder %s136, %s139
    %p145 = scmp.eq.s32.totalorder %s11, 0
    %p146 = por %p144, %p145
    %p147 = scmp.ne.s32.totalorder %s136, %s139
    %p148 = scmp.eq.s32.totalorder %s16, 1
    %p149 = por %p147, %p148
    %p150 = scmp.ne.s32.totalorder %s139, %s140
    %p151 = scmp.eq.s32.totalorder %s16, 0
    %p152 = por %p150, %p151
    %p153 = scmp.ne.s32.totalorder %s139, %s140
    %p154 = scmp.eq.s32.totalorder %s17, 1
    %p155 = por %p153, %p154
    %p157 = scmp.ne.s32.totalorder %s140, %s156
    %p158 = scmp.eq.s32.totalorder %s17, 0
    %p159 = por %p157, %p158
    %p160 = scmp.le.s32.totalorder 1, %s11
    %p161 = scmp.lt.s32.totalorder %s11, 3
    %p162 = pnand %p160, %p161
    %p163 = pneg %p162
    // Predicated region
    $region9: #{residual_fire.3} parent=5 // pred_check
      _
    $region10: #{residual_fire.3} parent=5 // pred_check_branch
      %165 = sbr.rel (%p162) target = $region12
    $region11: #{residual_fire.3} parent=5 // pred_region
      %s166 = ssub.s32 %s11, 1
      // Predicated region
      $region13: #{residual_fire.3} parent=11 // pred_check
        %p167 = pneg %p72
      $region14: #{residual_fire.3} parent=11 // pred_check_branch
        %169 = sbr.rel (%p167) target = $region16
      $region15: #{residual_fire.3} parent=11 // pred_region
        _
      $region16: #{residual_fire.3} parent=11 // pred_fallthru
        _
    $region12: #{residual_fire.3} parent=5 // pred_fallthru
      _
    %p170 = scmp.lt.s32.totalorder %s11, 2
    // Predicated region
    $region17: #{residual_fire.3} parent=5 // pred_check
      %p171 = pneg %p170
    $region18: #{residual_fire.3} parent=5 // pred_check_branch
      %173 = sbr.rel (%p171) target = $region20
    $region19: #{residual_fire.3} parent=5 // pred_region
      // Predicated region
      $region21: #{residual_fire.3} parent=19 // pred_check
        %p174 = pneg %p45
      $region22: #{residual_fire.3} parent=19 // pred_check_branch
        %176 = sbr.rel (%p174) target = $region24
      $region23: #{residual_fire.3} parent=19 // pred_region
        %p177 = scmp.lt.s32.totalorder %s18, 1
        %s178 = scalar_select %p177, %s18, 1
        %p179 = scmp.lt.s32.totalorder %s19, 0
        %s180 = scalar_select %p179, %s19, 0
        %s181 = sadd.s32 %s180, %s178
        %s182 = smul.addr %s181, 4
        %s183 = scalar_lea.vmem %s0, %s182
      $region24: #{residual_fire.3} parent=19 // pred_fallthru
        _
    $region20: #{residual_fire.3} parent=5 // pred_fallthru
      _
    %p184 = scmp.le.s32.totalorder 1, %s11
    %p185 = scmp.lt.s32.totalorder %s11, 3
    %p186 = pnand %p184, %p185
    %p187 = pneg %p186
    // Predicated region
    $region25: #{residual_fire.3} parent=5 // pred_check
      _
    $region26: #{residual_fire.3} parent=5 // pred_check_branch
      %189 = sbr.rel (%p186) target = $region28
    $region27: #{residual_fire.3} parent=5 // pred_region
      %s190 = ssub.s32 %s11, 1
      %p191 = scmp.lt.s32.totalorder %s20, 1
      %s192 = scalar_select %p191, %s20, 1
      %p193 = scmp.lt.s32.totalorder %s21, 0
      %s194 = scalar_select %p193, %s21, 0
      %s195 = sadd.s32 %s194, %s192
      %s196 = smul.addr %s195, 4
      %s197 = scalar_lea.vmem %s0, %s196
      %p198 = pneg %p51
      %p199 = pneg %p48
      %p200 = pneg %p72
      %p201 = pneg %p69
      %p202 = pneg %p100
      %p203 = pneg %p97
      %p204 = scmp.lt.s32.totalorder %s20, 1
      %s205 = scalar_select %p204, %s20, 1
      %p206 = scmp.lt.s32.totalorder %s21, 0
      %s207 = scalar_select %p206, %s21, 0
      %s208 = sadd.s32 %s207, %s205
      %s209 = smul.addr %s208, 8
      %s210 = scalar_lea.vmem %s2, %s209
      %p211 = pneg %p126
      %p212 = pneg %p123
      %p213 = scmp.lt.s32.totalorder %s20, 1
      %s214 = scalar_select %p213, %s20, 1
      %s215 = smul.addr %s214, 8
      %s216 = scalar_lea.vmem %s3, %s215
      %p217 = pneg %p152
      %p218 = pneg %p149
      %p219 = scmp.lt.s32.totalorder %s20, 1
      %s220 = scalar_select %p219, %s20, 1
      %s221 = smul.addr %s220, 8
      %s222 = scalar_lea.vmem %s4, %s221
      %p223 = scmp.lt.s32.totalorder %s20, 1
      %s224 = scalar_select %p223, %s20, 1
      %p225 = scmp.lt.s32.totalorder %s21, 0
      %s226 = scalar_select %p225, %s21, 0
      %s227 = sadd.s32 %s226, %s224
      %s228 = smul.addr %s227, 4
      %s229 = scalar_lea.vmem %s0, %s228
      %p230 = scmp.lt.s32.totalorder %s20, 1
      %s231 = scalar_select %p230, %s20, 1
      %p232 = scmp.lt.s32.totalorder %s21, 0
      %s233 = scalar_select %p232, %s21, 0
      %s234 = sadd.s32 %s233, %s231
      %s235 = smul.addr %s234, 8
      %s236 = scalar_lea.vmem %s2, %s235
      %p237 = scmp.lt.s32.totalorder %s20, 1
      %s238 = scalar_select %p237, %s20, 1
      %s239 = smul.addr %s238, 8
      %s240 = scalar_lea.vmem %s3, %s239
      %p241 = scmp.lt.s32.totalorder %s20, 1
      %s242 = scalar_select %p241, %s20, 1
      %s243 = smul.addr %s242, 8
      %s244 = scalar_lea.vmem %s4, %s243
      %v245 = vld [vmem:[%s1] sm:$0xff]
      %v246 = vld [vmem:[%s229] sm:$0xf]
      %vm247 = vcmask 31744
      %v249 = vsel %vm247, %v245, 0
      %vm251 = vcmask 1043456
      %v253 = vsel %vm251, %v246, 0
      %255 = vmatprep.subr.mxu0 0.0
      %256 = vmatpush1.msra.mxu0 0.0
      %257 = vmatprep.subr.mxu0 0.0
      %258 = vmatpush1.msra.mxu0 0.0
      %259 = vmatprep.subr.mxu0 0.0
      %260 = vmatpush1.msra.mxu0 0.0
      %261 = vmatprep.subr.mxu0 0.0
      %262 = vmatpush1.msra.mxu0 0.0
      %263 = vmatprep.subr.mxu0 0.0
      %264 = vmatpush1.msra.mxu0 0.0
      %265 = vmatprep.subr.mxu0 0.0
      %266 = vmatpush1.msra.mxu0 0.0
      %267 = vmatprep.subr.mxu0 0.0
      %268 = vmatpush1.msra.mxu0 0.0
      %269 = vmatprep.subr.mxu0 0.0
      %270 = vmatpush1.msra.mxu0 0.0
      %271 = vmatprep.subr.mxu0 0.0
      %272 = vmatpush1.msra.mxu0 0.0
      %273 = vmatprep.subr.mxu0 0.0
      %274 = vmatpush1.msra.mxu0 0.0
      %275 = vmatprep.subr.mxu0 0.0
      %276 = vmatpush1.msra.mxu0 0.0
      %277 = vmatprep.subr.mxu0 0.0
      %278 = vmatpush1.msra.mxu0 0.0
      %279 = vmatprep.subr.mxu0 0.0
      %280 = vmatpush1.msra.mxu0 0.0
      %281 = vmatprep.subr.mxu0 0.0
      %282 = vmatpush1.msra.mxu0 0.0
      %283 = vmatprep.subr.mxu0 0.0
      %284 = vmatpush1.msra.mxu0 0.0
      %285 = vmatprep.subr.mxu0 0.0
      %286 = vmatpush1.msra.mxu0 %v253
      %287 = vmatprep.subr.mxu0 0.0
      %288 = vmatpush2.msra.mxu0 0.0
      %289 = vmatprep.subr.mxu0 0.0
      %290 = vmatpush2.msra.mxu0 0.0
      %291 = vmatprep.subr.mxu0 0.0
      %292 = vmatpush2.msra.mxu0 0.0
      %293 = vmatprep.subr.mxu0 0.0
      %294 = vmatpush2.msra.mxu0 0.0
      %295 = vmatprep.subr.mxu0 0.0
      %296 = vmatpush2.msra.mxu0 0.0
      %297 = vmatprep.subr.mxu0 0.0
      %298 = vmatpush2.msra.mxu0 0.0
      %299 = vmatprep.subr.mxu0 0.0
      %300 = vmatpush2.msra.mxu0 0.0
      %301 = vmatprep.subr.mxu0 0.0
      %302 = vmatpush2.msra.mxu0 0.0
      %303 = vmatprep.subr.mxu0 0.0
      %304 = vmatpush2.msra.mxu0 0.0
      %305 = vmatprep.subr.mxu0 0.0
      %306 = vmatpush2.msra.mxu0 0.0
      %307 = vmatprep.subr.mxu0 0.0
      %308 = vmatpush2.msra.mxu0 0.0
      %309 = vmatprep.subr.mxu0 0.0
      %310 = vmatpush2.msra.mxu0 0.0
      %311 = vmatprep.subr.mxu0 0.0
      %312 = vmatpush2.msra.mxu0 0.0
      %313 = vmatprep.subr.mxu0 0.0
      %314 = vmatpush2.msra.mxu0 0.0
      %315 = vmatprep.subr.mxu0 0.0
      %316 = vmatpush2.msra.mxu0 0.0
      %317 = vmatprep.subr.mxu0 0.0
      %318 = vmatpush2.msra.mxu0 0.0
      %319 = vmatprep.mubr.f32.mxu0 0.0
      %320 = vmatmul.mubr.f32.gmra.mxu0 %v249
      %v321 = vpop.f32.mrf.mxu0
      %v322 = vadd.f32 0.0, %v321
      %v323 = vpop.f32.mrf.mxu0
      %324 = vdwg.mxu0
      %325 = vst [vmem:[%s236] sm:$0xff] %v322
      %326 = vadd.xlane.f32.xlu0 %v322
      %v327 = vpop.xlane.xlu0 %326
      %v328 = vmul.f32 %v322, %v322
      %329 = vadd.xlane.f32.xlu0 %v328
      %v330 = vpop.xlane.xlu0 %329
      %p331 = scmp.eq.s32.totalorder %s21, 0
      // Predicated region
      $region29: #{residual_fire.3} parent=27 // pred_check
        %p332 = pneg %p331
      $region30: #{residual_fire.3} parent=27 // pred_check_branch
        %334 = sbr.rel (%p332) target = $region32
      $region31: #{residual_fire.3} parent=27 // pred_region
        %vm335 = vcmask 7168
        %336 = vst.msk [vmem:[#allocation2] sm:$0xff] %vm335, 0.0
        %337 = vst.msk [vmem:[#allocation3] sm:$0xff] %vm335, 0.0
      $region32: #{residual_fire.3} parent=27 // pred_fallthru
        _
      %v338 = vld [vmem:[#allocation2] sm:$0xff]
      %v339 = vadd.f32 %v338, %v327
      %vm340 = vcmask 7168
      %341 = vst.msk [vmem:[#allocation2] sm:$0xff] %vm340, %v339
      %v342 = vld [vmem:[#allocation3] sm:$0xff]
      %v343 = vadd.f32 %v342, %v330
      %344 = vst.msk [vmem:[#allocation3] sm:$0xff] %vm340, %v343
      // Predicated region
      $region33: #{residual_fire.3} parent=27 // pred_check
        %p345 = pneg %p331
      $region34: #{residual_fire.3} parent=27 // pred_check_branch
        %347 = sbr.rel (%p345) target = $region36
      $region35: #{residual_fire.3} parent=27 // pred_region
        %v348 = vld [vmem:[#allocation2] sm:$0xff]
        %349 = vst.msk [vmem:[%s240] sm:$0xff] %vm340, %v348
        %v350 = vld [vmem:[#allocation3] sm:$0xff]
        %351 = vst.msk [vmem:[%s244] sm:$0xff] %vm340, %v350
      $region36: #{residual_fire.3} parent=27 // pred_fallthru
        _
      %p352 = scmp.lt.s32.totalorder %s20, 1
      %s353 = scalar_select %p352, %s20, 1
      %p354 = scmp.lt.s32.totalorder %s21, 0
      %s355 = scalar_select %p354, %s21, 0
      %s356 = sadd.s32 %s355, %s353
      %s357 = smul.addr %s356, 8
      %s358 = scalar_lea.vmem %s2, %s357
      %p359 = scmp.lt.s32.totalorder %s20, 1
      %s360 = scalar_select %p359, %s20, 1
      %s361 = smul.addr %s360, 8
      %s362 = scalar_lea.vmem %s3, %s361
      %p363 = scmp.lt.s32.totalorder %s20, 1
      %s364 = scalar_select %p363, %s20, 1
      %s365 = smul.addr %s364, 8
      %s366 = scalar_lea.vmem %s4, %s365
      // Predicated region
      $region37: #{residual_fire.3} parent=27 // pred_check
        %p367 = pneg %p97
      $region38: #{residual_fire.3} parent=27 // pred_check_branch
        %369 = sbr.rel (%p367) target = $region40
      $region39: #{residual_fire.3} parent=27 // pred_region
        _
      $region40: #{residual_fire.3} parent=27 // pred_fallthru
        _
      // Predicated region
      $region41: #{residual_fire.3} parent=27 // pred_check
        %p370 = pneg %p123
      $region42: #{residual_fire.3} parent=27 // pred_check_branch
        %372 = sbr.rel (%p370) target = $region44
      $region43: #{residual_fire.3} parent=27 // pred_region
        _
      $region44: #{residual_fire.3} parent=27 // pred_fallthru
        _
      // Predicated region
      $region45: #{residual_fire.3} parent=27 // pred_check
        %p373 = pneg %p149
      $region46: #{residual_fire.3} parent=27 // pred_check_branch
        %375 = sbr.rel (%p373) target = $region48
      $region47: #{residual_fire.3} parent=27 // pred_region
        _
      $region48: #{residual_fire.3} parent=27 // pred_fallthru
        _
    $region28: #{residual_fire.3} parent=5 // pred_fallthru
      _
    %p376 = scmp.le.s32.totalorder 2, %s11
    // Predicated region
    $region49: #{residual_fire.3} parent=5 // pred_check
      %p377 = pneg %p376
    $region50: #{residual_fire.3} parent=5 // pred_check_branch
      %379 = sbr.rel (%p377) target = $region52
    $region51: #{residual_fire.3} parent=5 // pred_region
      %s380 = ssub.s32 %s11, 2
      // Predicated region
      $region53: #{residual_fire.3} parent=51 // pred_check
        %p381 = pneg %p103
      $region54: #{residual_fire.3} parent=51 // pred_check_branch
        %383 = sbr.rel (%p381) target = $region56
      $region55: #{residual_fire.3} parent=51 // pred_region
        %p384 = scmp.lt.s32.totalorder %s22, 1
        %s385 = scalar_select %p384, %s22, 1
        %p386 = scmp.lt.s32.totalorder %s23, 0
        %s387 = scalar_select %p386, %s23, 0
        %s388 = sadd.s32 %s387, %s385
        %s389 = smul.addr %s388, 8
        %s390 = scalar_lea.vmem %s2, %s389
      $region56: #{residual_fire.3} parent=51 // pred_fallthru
        _
      // Predicated region
      $region57: #{residual_fire.3} parent=51 // pred_check
        %p391 = pneg %p129
      $region58: #{residual_fire.3} parent=51 // pred_check_branch
        %393 = sbr.rel (%p391) target = $region60
      $region59: #{residual_fire.3} parent=51 // pred_region
        %p394 = scmp.lt.s32.totalorder %s22, 1
        %s395 = scalar_select %p394, %s22, 1
        %s396 = smul.addr %s395, 8
        %s397 = scalar_lea.vmem %s3, %s396
      $region60: #{residual_fire.3} parent=51 // pred_fallthru
        _
      // Predicated region
      $region61: #{residual_fire.3} parent=51 // pred_check
        %p398 = pneg %p155
      $region62: #{residual_fire.3} parent=51 // pred_check_branch
        %400 = sbr.rel (%p398) target = $region64
      $region63: #{residual_fire.3} parent=51 // pred_region
        %p401 = scmp.lt.s32.totalorder %s22, 1
        %s402 = scalar_select %p401, %s22, 1
        %s403 = smul.addr %s402, 8
        %s404 = scalar_lea.vmem %s4, %s403
      $region64: #{residual_fire.3} parent=51 // pred_fallthru
        _
    $region52: #{residual_fire.3} parent=5 // pred_fallthru
      _
  $region6: #{residual_fire.3} parent=0 // loop_footer
    %s15 = sadd.s32 1, %s11
  $region7: #{residual_fire.3} parent=0 // loop_footer_branch
    %10 = sbr.rel target = $region3
  $region8: #{residual_fire.3} parent=0 // loop_exit
    _

// kernel: residual_fire.4
$region0: #{residual_fire.4}
  #allocation0 [shape = 'u32[]', space=smem, size = 0x4, offset = 0x4, fixed_abs, tag = 'smem constant byte address 0x4 - core index']
  #allocation1 [shape = 'u32[144,128]{1,0:T(1,128)}', space=vmem, size = 0x12000, scoped, tag = 'internal scratch']
  #allocation2 [shape = 'f32[32,1]{1,0:T(8,128)}', space=vmem, size = 0x4000, scoped, tag = 'scratch operand']
  #allocation3 [shape = 'f32[32,1]{1,0:T(8,128)}', space=vmem, size = 0x4000, scoped, tag = 'scratch operand']
  %s0 = inlined_call_operand.vmem [shape: f32[2,8,128], index: 0, kind: input, shape index: {}]
  %s1 = inlined_call_operand.vmem [shape: f32[2,1,8,1], index: 1, kind: input, shape index: {}]
  %s2 = inlined_call_operand.vmem [shape: f32[2,1,8,1], index: 2, kind: input, shape index: {}]
  %s3 = inlined_call_operand.vmem [shape: f32[8,1], index: 3, kind: input, shape index: {}]
  %s4 = inlined_call_operand.vmem [shape: f32[8,1], index: 4, kind: input, shape index: {}]
  %s5 = inlined_call_operand.vmem [shape: f32[32,8], index: 5, kind: input, shape index: {}]
  %s6 = inlined_call_operand.vmem [shape: f32[32,8], index: 6, kind: input, shape index: {}]
  %s7 = inlined_call_operand.vmem [shape: f32[32,8], index: 7, kind: input, shape index: {}]
  %s8 = inlined_call_operand.vmem [shape: f32[2,32,1], index: 8, kind: output, shape index: {0}]
  %s9 = inlined_call_operand.vmem [shape: f32[2,32,1], index: 9, kind: output, shape index: {1}]
  %10 = xla_tuple %s8, %s9
  %s11 = sld [smem:[#allocation0]]
  $region81: #{residual_fire.4} parent=0
    _
  %s13 = ssub.s32 1, %s11
  %s14 = scalar_select 0, %s13, %s11
  loop: start=0, step=1, limit=4
  $region2: #{residual_fire.4} parent=0 // loop_pre_header
    _
  $region3: #{residual_fire.4} parent=0 // loop_header
    %s16 = sphi 0, %s20
    %p17 = scmp.ge.s32.totalorder %s16, 4
    %s23 = sphi 0, %s35
    %s24 = sphi 0, %s31
    %s25 = sphi 0, %s23
    %s26 = sphi 0, %s24
    %s27 = sphi 0, %s25
    %s28 = sphi 0, %s26
    %s40 = sphi 0, %s42
    %s43 = sphi 0, %s40
    %s44 = sphi 0, %s43
    %s60 = sphi 0, %s44
    %s74 = sphi 0, %s76
    %s77 = sphi 0, %s74
    %s78 = sphi 0, %s77
    %s94 = sphi 0, %s78
    %s108 = sphi 0, %s110
    %s111 = sphi 0, %s108
    %s112 = sphi 0, %s111
    %s128 = sphi 0, %s112
    %s132 = sphi 0, %s132
    %s134 = sphi 0, %s132
    %s135 = sphi 0, %s134
    %s149 = sphi 0, %s135
    %s153 = sphi 0, %s153
    %s155 = sphi 0, %s153
    %s156 = sphi 0, %s155
    %s170 = sphi 0, %s156
    %s174 = sphi 0, %s174
    %s176 = sphi 0, %s174
    %s177 = sphi 0, %s176
    %s191 = sphi 0, %s177
    %s195 = sphi 0, %s195
    %s197 = sphi 0, %s195
    %s198 = sphi 0, %s197
    %s212 = sphi 0, %s198
    %s216 = sphi 0, %s216
    %s218 = sphi 0, %s216
    %s219 = sphi 0, %s218
    %s233 = sphi 0, %s219
    %s239 = sphi 0, %s241
    %s242 = sphi 0, %s239
    %s243 = sphi 0, %s242
    %s259 = sphi 0, %s243
    %s265 = sphi 0, %s267
    %s268 = sphi 0, %s265
    %s269 = sphi 0, %s268
    %s285 = sphi 0, %s269
  $region4: #{residual_fire.4} parent=0 // loop_header_branch
    %19 = sbr.rel (%p17) target = $region8
  $region5: #{residual_fire.4} parent=0 // loop_body
    %s21 = ssub.s32 %s16, 1
    %s22 = ssub.s32 %s16, 2
    %s29 = sadd.s32 1, %s24
    %p30 = scmp.ge.s32.totalorder %s29, 1
    %s31 = scalar_select %p30, 0, %s29
    %s32 = sadd.s32 1, %s23
    %s33 = scalar_select %p30, %s32, %s23
    %p34 = scmp.ge.s32.totalorder %s33, 2
    %s35 = scalar_select %p34, 0, %s33
    %s36 = ssub.s32 %s23, %s35
    %s37 = ssub.s32 %s24, %s31
    %s38 = sor.u32 %s36, %s37
    %p39 = scmp.eq.s32.totalorder %s38, 0
    %s41 = sadd.s32 %s40, 1
    %s42 = scalar_select %p39, %s40, %s41
    %p45 = pneg %p39
    %p46 = scmp.eq.s32.totalorder %s16, 1
    %p47 = por %p45, %p46
    %p48 = scmp.ne.s32.totalorder %s40, %s43
    %p49 = scmp.eq.s32.totalorder %s16, 0
    %p50 = por %p48, %p49
    %p51 = scmp.ne.s32.totalorder %s40, %s43
    %p52 = scmp.eq.s32.totalorder %s21, 1
    %p53 = por %p51, %p52
    %p54 = scmp.ne.s32.totalorder %s43, %s44
    %p55 = scmp.eq.s32.totalorder %s21, 0
    %p56 = por %p54, %p55
    %p57 = scmp.ne.s32.totalorder %s43, %s44
    %p58 = scmp.eq.s32.totalorder %s22, 1
    %p59 = por %p57, %p58
    %p61 = scmp.ne.s32.totalorder %s44, %s60
    %p62 = scmp.eq.s32.totalorder %s22, 0
    %p63 = por %p61, %p62
    %s64 = ssub.s32 %s24, 1
    %p65 = scmp.gt.s32.totalorder %s64, 0
    %s66 = scalar_select %p65, %s64, 0
    %s67 = ssub.s32 %s31, 1
    %p68 = scmp.gt.s32.totalorder %s67, 0
    %s69 = scalar_select %p68, %s67, 0
    %s70 = ssub.s32 %s23, %s35
    %s71 = ssub.s32 %s66, %s69
    %s72 = sor.u32 %s70, %s71
    %p73 = scmp.eq.s32.totalorder %s72, 0
    %s75 = sadd.s32 %s74, 1
    %s76 = scalar_select %p73, %s74, %s75
    %p79 = pneg %p73
    %p80 = scmp.eq.s32.totalorder %s16, 1
    %p81 = por %p79, %p80
    %p82 = scmp.ne.s32.totalorder %s74, %s77
    %p83 = scmp.eq.s32.totalorder %s16, 0
    %p84 = por %p82, %p83
    %p85 = scmp.ne.s32.totalorder %s74, %s77
    %p86 = scmp.eq.s32.totalorder %s21, 1
    %p87 = por %p85, %p86
    %p88 = scmp.ne.s32.totalorder %s77, %s78
    %p89 = scmp.eq.s32.totalorder %s21, 0
    %p90 = por %p88, %p89
    %p91 = scmp.ne.s32.totalorder %s77, %s78
    %p92 = scmp.eq.s32.totalorder %s22, 1
    %p93 = por %p91, %p92
    %p95 = scmp.ne.s32.totalorder %s78, %s94
    %p96 = scmp.eq.s32.totalorder %s22, 0
    %p97 = por %p95, %p96
    %s98 = sadd.s32 %s24, 1
    %p99 = scmp.lt.s32.totalorder %s98, 0
    %s100 = scalar_select %p99, %s98, 0
    %s101 = sadd.s32 %s31, 1
    %p102 = scmp.lt.s32.totalorder %s101, 0
    %s103 = scalar_select %p102, %s101, 0
    %s104 = ssub.s32 %s23, %s35
    %s105 = ssub.s32 %s100, %s103
    %s106 = sor.u32 %s104, %s105
    %p107 = scmp.eq.s32.totalorder %s106, 0
    %s109 = sadd.s32 %s108, 1
    %s110 = scalar_select %p107, %s108, %s109
    %p113 = pneg %p107
    %p114 = scmp.eq.s32.totalorder %s16, 1
    %p115 = por %p113, %p114
    %p116 = scmp.ne.s32.totalorder %s108, %s111
    %p117 = scmp.eq.s32.totalorder %s16, 0
    %p118 = por %p116, %p117
    %p119 = scmp.ne.s32.totalorder %s108, %s111
    %p120 = scmp.eq.s32.totalorder %s21, 1
    %p121 = por %p119, %p120
    %p122 = scmp.ne.s32.totalorder %s111, %s112
    %p123 = scmp.eq.s32.totalorder %s21, 0
    %p124 = por %p122, %p123
    %p125 = scmp.ne.s32.totalorder %s111, %s112
    %p126 = scmp.eq.s32.totalorder %s22, 1
    %p127 = por %p125, %p126
    %p129 = scmp.ne.s32.totalorder %s112, %s128
    %p130 = scmp.eq.s32.totalorder %s22, 0
    %p131 = por %p129, %p130
    %s133 = sadd.s32 %s132, 1
    %p136 = scmp.eq.s32.totalorder %s16, 1
    %p137 = scmp.ne.s32.totalorder %s132, %s134
    %p138 = scmp.eq.s32.totalorder %s16, 0
    %p139 = por %p137, %p138
    %p140 = scmp.ne.s32.totalorder %s132, %s134
    %p141 = scmp.eq.s32.totalorder %s21, 1
    %p142 = por %p140, %p141
    %p143 = scmp.ne.s32.totalorder %s134, %s135
    %p144 = scmp.eq.s32.totalorder %s21, 0
    %p145 = por %p143, %p144
    %p146 = scmp.ne.s32.totalorder %s134, %s135
    %p147 = scmp.eq.s32.totalorder %s22, 1
    %p148 = por %p146, %p147
    %p150 = scmp.ne.s32.totalorder %s135, %s149
    %p151 = scmp.eq.s32.totalorder %s22, 0
    %p152 = por %p150, %p151
    %s154 = sadd.s32 %s153, 1
    %p157 = scmp.eq.s32.totalorder %s16, 1
    %p158 = scmp.ne.s32.totalorder %s153, %s155
    %p159 = scmp.eq.s32.totalorder %s16, 0
    %p160 = por %p158, %p159
    %p161 = scmp.ne.s32.totalorder %s153, %s155
    %p162 = scmp.eq.s32.totalorder %s21, 1
    %p163 = por %p161, %p162
    %p164 = scmp.ne.s32.totalorder %s155, %s156
    %p165 = scmp.eq.s32.totalorder %s21, 0
    %p166 = por %p164, %p165
    %p167 = scmp.ne.s32.totalorder %s155, %s156
    %p168 = scmp.eq.s32.totalorder %s22, 1
    %p169 = por %p167, %p168
    %p171 = scmp.ne.s32.totalorder %s156, %s170
    %p172 = scmp.eq.s32.totalorder %s22, 0
    %p173 = por %p171, %p172
    %s175 = sadd.s32 %s174, 1
    %p178 = scmp.eq.s32.totalorder %s16, 1
    %p179 = scmp.ne.s32.totalorder %s174, %s176
    %p180 = scmp.eq.s32.totalorder %s16, 0
    %p181 = por %p179, %p180
    %p182 = scmp.ne.s32.totalorder %s174, %s176
    %p183 = scmp.eq.s32.totalorder %s21, 1
    %p184 = por %p182, %p183
    %p185 = scmp.ne.s32.totalorder %s176, %s177
    %p186 = scmp.eq.s32.totalorder %s21, 0
    %p187 = por %p185, %p186
    %p188 = scmp.ne.s32.totalorder %s176, %s177
    %p189 = scmp.eq.s32.totalorder %s22, 1
    %p190 = por %p188, %p189
    %p192 = scmp.ne.s32.totalorder %s177, %s191
    %p193 = scmp.eq.s32.totalorder %s22, 0
    %p194 = por %p192, %p193
    %s196 = sadd.s32 %s195, 1
    %p199 = scmp.eq.s32.totalorder %s16, 1
    %p200 = scmp.ne.s32.totalorder %s195, %s197
    %p201 = scmp.eq.s32.totalorder %s16, 0
    %p202 = por %p200, %p201
    %p203 = scmp.ne.s32.totalorder %s195, %s197
    %p204 = scmp.eq.s32.totalorder %s21, 1
    %p205 = por %p203, %p204
    %p206 = scmp.ne.s32.totalorder %s197, %s198
    %p207 = scmp.eq.s32.totalorder %s21, 0
    %p208 = por %p206, %p207
    %p209 = scmp.ne.s32.totalorder %s197, %s198
    %p210 = scmp.eq.s32.totalorder %s22, 1
    %p211 = por %p209, %p210
    %p213 = scmp.ne.s32.totalorder %s198, %s212
    %p214 = scmp.eq.s32.totalorder %s22, 0
    %p215 = por %p213, %p214
    %s217 = sadd.s32 %s216, 1
    %p220 = scmp.eq.s32.totalorder %s16, 1
    %p221 = scmp.ne.s32.totalorder %s216, %s218
    %p222 = scmp.eq.s32.totalorder %s16, 0
    %p223 = por %p221, %p222
    %p224 = scmp.ne.s32.totalorder %s216, %s218
    %p225 = scmp.eq.s32.totalorder %s21, 1
    %p226 = por %p224, %p225
    %p227 = scmp.ne.s32.totalorder %s218, %s219
    %p228 = scmp.eq.s32.totalorder %s21, 0
    %p229 = por %p227, %p228
    %p230 = scmp.ne.s32.totalorder %s218, %s219
    %p231 = scmp.eq.s32.totalorder %s22, 1
    %p232 = por %p230, %p231
    %p234 = scmp.ne.s32.totalorder %s219, %s233
    %p235 = scmp.eq.s32.totalorder %s22, 0
    %p236 = por %p234, %p235
    %s237 = ssub.s32 %s23, %s35
    %p238 = scmp.eq.s32.totalorder %s237, 0
    %s240 = sadd.s32 %s239, 1
    %s241 = scalar_select %p238, %s239, %s240
    %p244 = pneg %p238
    %p245 = scmp.eq.s32.totalorder %s16, 1
    %p246 = por %p244, %p245
    %p247 = scmp.ne.s32.totalorder %s239, %s242
    %p248 = scmp.eq.s32.totalorder %s16, 0
    %p249 = por %p247, %p248
    %p250 = scmp.ne.s32.totalorder %s239, %s242
    %p251 = scmp.eq.s32.totalorder %s21, 1
    %p252 = por %p250, %p251
    %p253 = scmp.ne.s32.totalorder %s242, %s243
    %p254 = scmp.eq.s32.totalorder %s21, 0
    %p255 = por %p253, %p254
    %p256 = scmp.ne.s32.totalorder %s242, %s243
    %p257 = scmp.eq.s32.totalorder %s22, 1
    %p258 = por %p256, %p257
    %p260 = scmp.ne.s32.totalorder %s243, %s259
    %p261 = scmp.eq.s32.totalorder %s22, 0
    %p262 = por %p260, %p261
    %s263 = ssub.s32 %s23, %s35
    %p264 = scmp.eq.s32.totalorder %s263, 0
    %s266 = sadd.s32 %s265, 1
    %s267 = scalar_select %p264, %s265, %s266
    %p270 = pneg %p264
    %p271 = scmp.eq.s32.totalorder %s16, 1
    %p272 = por %p270, %p271
    %p273 = scmp.ne.s32.totalorder %s265, %s268
    %p274 = scmp.eq.s32.totalorder %s16, 0
    %p275 = por %p273, %p274
    %p276 = scmp.ne.s32.totalorder %s265, %s268
    %p277 = scmp.eq.s32.totalorder %s21, 1
    %p278 = por %p276, %p277
    %p279 = scmp.ne.s32.totalorder %s268, %s269
    %p280 = scmp.eq.s32.totalorder %s21, 0
    %p281 = por %p279, %p280
    %p282 = scmp.ne.s32.totalorder %s268, %s269
    %p283 = scmp.eq.s32.totalorder %s22, 1
    %p284 = por %p282, %p283
    %p286 = scmp.ne.s32.totalorder %s269, %s285
    %p287 = scmp.eq.s32.totalorder %s22, 0
    %p288 = por %p286, %p287
    %p289 = scmp.le.s32.totalorder 1, %s16
    %p290 = scmp.lt.s32.totalorder %s16, 3
    %p291 = pnand %p289, %p290
    %p292 = pneg %p291
    // Predicated region
    $region9: #{residual_fire.4} parent=5 // pred_check
      _
    $region10: #{residual_fire.4} parent=5 // pred_check_branch
      %294 = sbr.rel (%p291) target = $region12
    $region11: #{residual_fire.4} parent=5 // pred_region
      %s295 = ssub.s32 %s16, 1
      // Predicated region
      $region13: #{residual_fire.4} parent=11 // pred_check
        %p296 = pneg %p145
      $region14: #{residual_fire.4} parent=11 // pred_check_branch
        %298 = sbr.rel (%p296) target = $region16
      $region15: #{residual_fire.4} parent=11 // pred_region
        _
      $region16: #{residual_fire.4} parent=11 // pred_fallthru
        _
      // Predicated region
      $region17: #{residual_fire.4} parent=11 // pred_check
        %p299 = pneg %p166
      $region18: #{residual_fire.4} parent=11 // pred_check_branch
        %301 = sbr.rel (%p299) target = $region20
      $region19: #{residual_fire.4} parent=11 // pred_region
        _
      $region20: #{residual_fire.4} parent=11 // pred_fallthru
        _
      // Predicated region
      $region21: #{residual_fire.4} parent=11 // pred_check
        %p302 = pneg %p187
      $region22: #{residual_fire.4} parent=11 // pred_check_branch
        %304 = sbr.rel (%p302) target = $region24
      $region23: #{residual_fire.4} parent=11 // pred_region
        _
      $region24: #{residual_fire.4} parent=11 // pred_fallthru
        _
      // Predicated region
      $region25: #{residual_fire.4} parent=11 // pred_check
        %p305 = pneg %p208
      $region26: #{residual_fire.4} parent=11 // pred_check_branch
        %307 = sbr.rel (%p305) target = $region28
      $region27: #{residual_fire.4} parent=11 // pred_region
        _
      $region28: #{residual_fire.4} parent=11 // pred_fallthru
        _
      // Predicated region
      $region29: #{residual_fire.4} parent=11 // pred_check
        %p308 = pneg %p229
      $region30: #{residual_fire.4} parent=11 // pred_check_branch
        %310 = sbr.rel (%p308) target = $region32
      $region31: #{residual_fire.4} parent=11 // pred_region
        _
      $region32: #{residual_fire.4} parent=11 // pred_fallthru
        _
    $region12: #{residual_fire.4} parent=5 // pred_fallthru
      _
    %p311 = scmp.lt.s32.totalorder %s16, 2
    // Predicated region
    $region33: #{residual_fire.4} parent=5 // pred_check
      %p312 = pneg %p311
    $region34: #{residual_fire.4} parent=5 // pred_check_branch
      %314 = sbr.rel (%p312) target = $region36
    $region35: #{residual_fire.4} parent=5 // pred_region
      // Predicated region
      $region37: #{residual_fire.4} parent=35 // pred_check
        %p315 = pneg %p50
      $region38: #{residual_fire.4} parent=35 // pred_check_branch
        %317 = sbr.rel (%p315) target = $region40
      $region39: #{residual_fire.4} parent=35 // pred_region
        %p318 = scmp.lt.s32.totalorder %s23, 1
        %s319 = scalar_select %p318, %s23, 1
        %p320 = scmp.lt.s32.totalorder %s24, 0
        %s321 = scalar_select %p320, %s24, 0
        %s322 = sadd.s32 %s321, %s319
        %s323 = smul.addr %s322, 8
        %s324 = scalar_lea.vmem %s0, %s323
      $region40: #{residual_fire.4} parent=35 // pred_fallthru
        _
      // Predicated region
      $region41: #{residual_fire.4} parent=35 // pred_check
        %p325 = pneg %p84
      $region42: #{residual_fire.4} parent=35 // pred_check_branch
        %327 = sbr.rel (%p325) target = $region44
      $region43: #{residual_fire.4} parent=35 // pred_region
        %s328 = ssub.s32 %s24, 1
        %p329 = scmp.gt.s32.totalorder %s328, 0
        %s330 = scalar_select %p329, %s328, 0
        %p331 = scmp.lt.s32.totalorder %s23, 1
        %s332 = scalar_select %p331, %s23, 1
        %p333 = scmp.lt.s32.totalorder %s330, 0
        %s334 = scalar_select %p333, %s330, 0
        %s335 = sadd.s32 %s334, %s332
        %s336 = smul.addr %s335, 8
        %s337 = scalar_lea.vmem %s1, %s336
        %s338 = ssub.s32 %s24, 1
        %p339 = scmp.gt.s32.totalorder %s338, 0
        %s340 = scalar_select %p339, %s338, 0
      $region44: #{residual_fire.4} parent=35 // pred_fallthru
        _
      // Predicated region
      $region45: #{residual_fire.4} parent=35 // pred_check
        %p341 = pneg %p118
      $region46: #{residual_fire.4} parent=35 // pred_check_branch
        %343 = sbr.rel (%p341) target = $region48
      $region47: #{residual_fire.4} parent=35 // pred_region
        %s344 = sadd.s32 %s24, 1
        %p345 = scmp.lt.s32.totalorder %s344, 0
        %s346 = scalar_select %p345, %s344, 0
        %p347 = scmp.lt.s32.totalorder %s23, 1
        %s348 = scalar_select %p347, %s23, 1
        %p349 = scmp.lt.s32.totalorder %s346, 0
        %s350 = scalar_select %p349, %s346, 0
        %s351 = sadd.s32 %s350, %s348
        %s352 = smul.addr %s351, 8
        %s353 = scalar_lea.vmem %s2, %s352
        %s354 = sadd.s32 %s24, 1
        %p355 = scmp.lt.s32.totalorder %s354, 0
        %s356 = scalar_select %p355, %s354, 0
      $region48: #{residual_fire.4} parent=35 // pred_fallthru
        _
    $region36: #{residual_fire.4} parent=5 // pred_fallthru
      _
    %p357 = scmp.le.s32.totalorder 1, %s16
    %p358 = scmp.lt.s32.totalorder %s16, 3
    %p359 = pnand %p357, %p358
    %p360 = pneg %p359
    // Predicated region
    $region49: #{residual_fire.4} parent=5 // pred_check
      _
    $region50: #{residual_fire.4} parent=5 // pred_check_branch
      %362 = sbr.rel (%p359) target = $region52
    $region51: #{residual_fire.4} parent=5 // pred_region
      %s363 = ssub.s32 %s16, 1
      %p364 = scmp.lt.s32.totalorder %s25, 1
      %s365 = scalar_select %p364, %s25, 1
      %p366 = scmp.lt.s32.totalorder %s26, 0
      %s367 = scalar_select %p366, %s26, 0
      %s368 = sadd.s32 %s367, %s365
      %s369 = smul.addr %s368, 8
      %s370 = scalar_lea.vmem %s0, %s369
      %p371 = pneg %p56
      %p372 = pneg %p53
      %s373 = ssub.s32 %s26, 1
      %p374 = scmp.gt.s32.totalorder %s373, 0
      %s375 = scalar_select %p374, %s373, 0
      %p376 = scmp.lt.s32.totalorder %s25, 1
      %s377 = scalar_select %p376, %s25, 1
      %p378 = scmp.lt.s32.totalorder %s375, 0
      %s379 = scalar_select %p378, %s375, 0
      %s380 = sadd.s32 %s379, %s377
      %s381 = smul.addr %s380, 8
      %s382 = scalar_lea.vmem %s1, %s381
      %p383 = pneg %p90
      %p384 = pneg %p87
      %s385 = sadd.s32 %s26, 1
      %p386 = scmp.lt.s32.totalorder %s385, 0
      %s387 = scalar_select %p386, %s385, 0
      %p388 = scmp.lt.s32.totalorder %s25, 1
      %s389 = scalar_select %p388, %s25, 1
      %p390 = scmp.lt.s32.totalorder %s387, 0
      %s391 = scalar_select %p390, %s387, 0
      %s392 = sadd.s32 %s391, %s389
      %s393 = smul.addr %s392, 8
      %s394 = scalar_lea.vmem %s2, %s393
      %p395 = pneg %p124
      %p396 = pneg %p121
      %p397 = pneg %p145
      %p398 = pneg %p142
      %p399 = pneg %p166
      %p400 = pneg %p163
      %p401 = pneg %p187
      %p402 = pneg %p184
      %p403 = pneg %p208
      %p404 = pneg %p205
      %p405 = pneg %p229
      %p406 = pneg %p226
      %p407 = pneg %p255
      %p408 = pneg %p252
      %p409 = scmp.lt.s32.totalorder %s25, 1
      %s410 = scalar_select %p409, %s25, 1
      %s411 = smul.addr %s410, 4
      %s412 = smul.addr %s411, 8
      %s413 = scalar_lea.vmem %s8, %s412
      %p414 = pneg %p281
      %p415 = pneg %p278
      %p416 = scmp.lt.s32.totalorder %s25, 1
      %s417 = scalar_select %p416, %s25, 1
      %s418 = smul.addr %s417, 4
      %s419 = smul.addr %s418, 8
      %s420 = scalar_lea.vmem %s9, %s419
      %p421 = scmp.lt.s32.totalorder %s25, 1
      %s422 = scalar_select %p421, %s25, 1
      %p423 = scmp.lt.s32.totalorder %s26, 0
      %s424 = scalar_select %p423, %s26, 0
      %s425 = sadd.s32 %s424, %s422
      %s426 = smul.addr %s425, 8
      %s427 = scalar_lea.vmem %s0, %s426
      %s428 = ssub.s32 %s26, 1
      %p429 = scmp.gt.s32.totalorder %s428, 0
      %s430 = scalar_select %p429, %s428, 0
      %p431 = scmp.lt.s32.totalorder %s25, 1
      %s432 = scalar_select %p431, %s25, 1
      %p433 = scmp.lt.s32.totalorder %s430, 0
      %s434 = scalar_select %p433, %s430, 0
      %s435 = sadd.s32 %s434, %s432
      %s436 = smul.addr %s435, 8
      %s437 = scalar_lea.vmem %s1, %s436
      %s438 = ssub.s32 %s26, 1
      %p439 = scmp.gt.s32.totalorder %s438, 0
      %s440 = scalar_select %p439, %s438, 0
      %s441 = sadd.s32 %s26, 1
      %p442 = scmp.lt.s32.totalorder %s441, 0
      %s443 = scalar_select %p442, %s441, 0
      %p444 = scmp.lt.s32.totalorder %s25, 1
      %s445 = scalar_select %p444, %s25, 1
      %p446 = scmp.lt.s32.totalorder %s443, 0
      %s447 = scalar_select %p446, %s443, 0
      %s448 = sadd.s32 %s447, %s445
      %s449 = smul.addr %s448, 8
      %s450 = scalar_lea.vmem %s2, %s449
      %s451 = sadd.s32 %s26, 1
      %p452 = scmp.lt.s32.totalorder %s451, 0
      %s453 = scalar_select %p452, %s451, 0
      %p454 = scmp.lt.s32.totalorder %s25, 1
      %s455 = scalar_select %p454, %s25, 1
      %s456 = smul.addr %s455, 4
      %s457 = smul.addr %s456, 8
      %s458 = scalar_lea.vmem %s8, %s457
      %p459 = scmp.lt.s32.totalorder %s25, 1
      %s460 = scalar_select %p459, %s25, 1
      %s461 = smul.addr %s460, 4
      %s462 = smul.addr %s461, 8
      %s463 = scalar_lea.vmem %s9, %s462
      %v464 = vld [vmem:[%s3] sm:$0xff]
      %v465 = vld [vmem:[%s4] sm:$0xff]
      %v466 = vld [vmem:[%s427] sm:$0xff]
      %468 = vset.pattern.permute.xlu0 0
      %469 = vperm.xlu0 %468, %v464
      %v470 = vpop.permute.xlu0 %469
      %v472 = vmul.f32 %v466, %v470
      %474 = vset.pattern.permute.xlu0 0
      %475 = vperm.xlu0 %474, %v465
      %v476 = vpop.permute.xlu0 %475
      %v478 = vadd.f32 %v472, %v476
      %vm479 = vcmp.ge.f32.partialorder %v478, 0.0
      %v480 = vmul.f32 %v478, 0.01
      %v481 = vsel %vm479, %v478, %v480
      %v482 = vlaneseq
      %v483 = vand.u32 %v482, 127
      %s484 = smul.u32 %s26, 128
      %v485 = vstv %s484
      %v486 = vadd.s32 %v483, %v485
      %vm487 = vcmp.lt.s32.totalorder %v486, 16
      %v488 = vsel %vm487, 1, 0
      %vm489 = vcmp.eq.s32.totalorder %v488, 1
      %v490 = vsel %vm489, %v481, 0.0
      %p491 = scmp.eq.s32.totalorder %s26, 0
      %v492 = vld [vmem:[%s437] sm:$0xff]
      %v493 = vmul.f32 %v492, %v464
      %v494 = vadd.f32 %v493, %v465
      %vm495 = vcmp.ge.f32.partialorder %v494, 0.0
      %v496 = vmul.f32 %v494, 0.01
      %v497 = vsel %vm495, %v494, %v496
      %s498 = scalar_select %p491, 1, 0
      %v499 = vstv %s498
      %vm500 = vcmp.eq.s32.totalorder %v499, 1
      %v501 = vsel %vm500, 0.0, %v497
      %v502 = vld [vmem:[%s450] sm:$0xff]
      %v503 = vmul.f32 %v502, %v464
      %v504 = vadd.f32 %v503, %v465
      %vm505 = vcmp.ge.f32.partialorder %v504, 0.0
      %v506 = vmul.f32 %v504, 0.01
      %v507 = vsel %vm505, %v504, %v506
      %v508 = vsel %vm500, 0.0, %v507
      %vm509 = vcmp.eq.s32.totalorder %v483, 0
      %510 = vrot.lane.b32.xlu0 %v490, 1
      %v511 = vpop.permute.xlu0 %510
      %v512 = vsel %vm509, 1, 0
      %vm513 = vcmp.eq.s32.totalorder %v512, 1
      %515 = vset.pattern.permute.xlu0 0
      %516 = vperm.xlu0 %515, %v501
      %v517 = vpop.permute.xlu0 %516
      %v519 = vsel %vm513, %v517, %v511
      %vm520 = vcmp.eq.s32.totalorder %v483, 127
      %521 = vrot.lane.b32.xlu0 %v490, 127
      %v522 = vpop.permute.xlu0 %521
      %v523 = vsel %vm520, 1, 0
      %vm524 = vcmp.eq.s32.totalorder %v523, 1
      %526 = vset.pattern.permute.xlu0 0
      %527 = vperm.xlu0 %526, %v508
      %v528 = vpop.permute.xlu0 %527
      %v530 = vsel %vm524, %v528, %v522
      %v531 = vld [vmem:[%s6] sm:$0xff]
      %v532 = vld [vmem:[%s6 + $0x8] sm:$0xff]
      %v533 = vld [vmem:[%s6 + $0x10] sm:$0xff]
      %v534 = vld [vmem:[%s6 + $0x18] sm:$0xff]
      %v535 = vld [vmem:[%s5] sm:$0xff]
      %v536 = vld [vmem:[%s5 + $0x8] sm:$0xff]
      %v537 = vld [vmem:[%s5 + $0x10] sm:$0xff]
      %v538 = vld [vmem:[%s5 + $0x18] sm:$0xff]
      %vm539 = vcmask 64512
      %v541 = vsel %vm539, %v535, 0
      %v544 = vsel %vm539, %v536, 0
      %v547 = vsel %vm539, %v537, 0
      %v550 = vsel %vm539, %v538, 0
      %552 = vmatprep.subr.mxu0 0.0
      %553 = vmatpush1.msra.mxu0 0.0
      %554 = vmatprep.subr.mxu0 0.0
      %555 = vmatpush1.msra.mxu0 0.0
      %556 = vmatprep.subr.mxu0 0.0
      %557 = vmatpush1.msra.mxu0 0.0
      %558 = vmatprep.subr.mxu0 0.0
      %559 = vmatpush1.msra.mxu0 0.0
      %560 = vmatprep.subr.mxu0 0.0
      %561 = vmatpush1.msra.mxu0 0.0
      %562 = vmatprep.subr.mxu0 0.0
      %563 = vmatpush1.msra.mxu0 0.0
      %564 = vmatprep.subr.mxu0 0.0
      %565 = vmatpush1.msra.mxu0 0.0
      %566 = vmatprep.subr.mxu0 0.0
      %567 = vmatpush1.msra.mxu0 0.0
      %568 = vmatprep.subr.mxu0 0.0
      %569 = vmatpush1.msra.mxu0 0.0
      %570 = vmatprep.subr.mxu0 0.0
      %571 = vmatpush1.msra.mxu0 0.0
      %572 = vmatprep.subr.mxu0 0.0
      %573 = vmatpush1.msra.mxu0 0.0
      %574 = vmatprep.subr.mxu0 0.0
      %575 = vmatpush1.msra.mxu0 0.0
      %576 = vmatprep.subr.mxu0 0.0
      %577 = vmatpush1.msra.mxu0 0.0
      %578 = vmatprep.subr.mxu0 0.0
      %579 = vmatpush1.msra.mxu0 0.0
      %580 = vmatprep.subr.mxu0 0.0
      %581 = vmatpush1.msra.mxu0 0.0
      %582 = vmatprep.subr.mxu0 0.0
      %583 = vmatpush1.msra.mxu0 %v519
      %584 = vmatprep.subr.mxu0 0.0
      %585 = vmatpush2.msra.mxu0 0.0
      %586 = vmatprep.subr.mxu0 0.0
      %587 = vmatpush2.msra.mxu0 0.0
      %588 = vmatprep.subr.mxu0 0.0
      %589 = vmatpush2.msra.mxu0 0.0
      %590 = vmatprep.subr.mxu0 0.0
      %591 = vmatpush2.msra.mxu0 0.0
      %592 = vmatprep.subr.mxu0 0.0
      %593 = vmatpush2.msra.mxu0 0.0
      %594 = vmatprep.subr.mxu0 0.0
      %595 = vmatpush2.msra.mxu0 0.0
      %596 = vmatprep.subr.mxu0 0.0
      %597 = vmatpush2.msra.mxu0 0.0
      %598 = vmatprep.subr.mxu0 0.0
      %599 = vmatpush2.msra.mxu0 0.0
      %600 = vmatprep.subr.mxu0 0.0
      %601 = vmatpush2.msra.mxu0 0.0
      %602 = vmatprep.subr.mxu0 0.0
      %603 = vmatpush2.msra.mxu0 0.0
      %604 = vmatprep.subr.mxu0 0.0
      %605 = vmatpush2.msra.mxu0 0.0
      %606 = vmatprep.subr.mxu0 0.0
      %607 = vmatpush2.msra.mxu0 0.0
      %608 = vmatprep.subr.mxu0 0.0
      %609 = vmatpush2.msra.mxu0 0.0
      %610 = vmatprep.subr.mxu0 0.0
      %611 = vmatpush2.msra.mxu0 0.0
      %612 = vmatprep.subr.mxu0 0.0
      %613 = vmatpush2.msra.mxu0 0.0
      %614 = vmatprep.subr.mxu0 0.0
      %615 = vmatpush2.msra.mxu0 0.0
      %616 = vmatprep.mubr.f32.mxu0 0.0
      %617 = vmatmul.mubr.f32.gmra.mxu0 %v541
      %v618 = vpop.f32.mrf.mxu0
      %v619 = vadd.f32 0.0, %v618
      %v620 = vpop.f32.mrf.mxu0
      %621 = vmatprep.mubr.f32.mxu0 0.0
      %622 = vmatmul.mubr.f32.gmra.mxu0 %v544
      %v623 = vpop.f32.mrf.mxu0
      %v624 = vadd.f32 0.0, %v623
      %v625 = vpop.f32.mrf.mxu0
      %626 = vmatprep.mubr.f32.mxu0 0.0
      %627 = vmatmul.mubr.f32.gmra.mxu0 %v547
      %v628 = vpop.f32.mrf.mxu0
      %v629 = vadd.f32 0.0, %v628
      %v630 = vpop.f32.mrf.mxu0
      %631 = vmatprep.mubr.f32.mxu0 0.0
      %632 = vmatmul.mubr.f32.gmra.mxu0 %v550
      %v633 = vpop.f32.mrf.mxu0
      %v634 = vadd.f32 0.0, %v633
      %v635 = vpop.f32.mrf.mxu0
      %636 = vdwg.mxu0
      %v638 = vsel %vm539, %v531, 0
      %v641 = vsel %vm539, %v532, 0
      %v644 = vsel %vm539, %v533, 0
      %v647 = vsel %vm539, %v534, 0
      %649 = vmatprep.subr.mxu0 0.0
      %650 = vmatpush1.msra.mxu0 0.0
      %651 = vmatprep.subr.mxu0 0.0
      %652 = vmatpush1.msra.mxu0 0.0
      %653 = vmatprep.subr.mxu0 0.0
      %654 = vmatpush1.msra.mxu0 0.0
      %655 = vmatprep.subr.mxu0 0.0
      %656 = vmatpush1.msra.mxu0 0.0
      %657 = vmatprep.subr.mxu0 0.0
      %658 = vmatpush1.msra.mxu0 0.0
      %659 = vmatprep.subr.mxu0 0.0
      %660 = vmatpush1.msra.mxu0 0.0
      %661 = vmatprep.subr.mxu0 0.0
      %662 = vmatpush1.msra.mxu0 0.0
      %663 = vmatprep.subr.mxu0 0.0
      %664 = vmatpush1.msra.mxu0 0.0
      %665 = vmatprep.subr.mxu0 0.0
      %666 = vmatpush1.msra.mxu0 0.0
      %667 = vmatprep.subr.mxu0 0.0
      %668 = vmatpush1.msra.mxu0 0.0
      %669 = vmatprep.subr.mxu0 0.0
      %670 = vmatpush1.msra.mxu0 0.0
      %671 = vmatprep.subr.mxu0 0.0
      %672 = vmatpush1.msra.mxu0 0.0
      %673 = vmatprep.subr.mxu0 0.0
      %674 = vmatpush1.msra.mxu0 0.0
      %675 = vmatprep.subr.mxu0 0.0
      %676 = vmatpush1.msra.mxu0 0.0
      %677 = vmatprep.subr.mxu0 0.0
      %678 = vmatpush1.msra.mxu0 0.0
      %679 = vmatprep.subr.mxu0 0.0
      %680 = vmatpush1.msra.mxu0 %v490
      %681 = vmatprep.subr.mxu0 0.0
      %682 = vmatpush2.msra.mxu0 0.0
      %683 = vmatprep.subr.mxu0 0.0
      %684 = vmatpush2.msra.mxu0 0.0
      %685 = vmatprep.subr.mxu0 0.0
      %686 = vmatpush2.msra.mxu0 0.0
      %687 = vmatprep.subr.mxu0 0.0
      %688 = vmatpush2.msra.mxu0 0.0
      %689 = vmatprep.subr.mxu0 0.0
      %690 = vmatpush2.msra.mxu0 0.0
      %691 = vmatprep.subr.mxu0 0.0
      %692 = vmatpush2.msra.mxu0 0.0
      %693 = vmatprep.subr.mxu0 0.0
      %694 = vmatpush2.msra.mxu0 0.0
      %695 = vmatprep.subr.mxu0 0.0
      %696 = vmatpush2.msra.mxu0 0.0
      %697 = vmatprep.subr.mxu0 0.0
      %698 = vmatpush2.msra.mxu0 0.0
      %699 = vmatprep.subr.mxu0 0.0
      %700 = vmatpush2.msra.mxu0 0.0
      %701 = vmatprep.subr.mxu0 0.0
      %702 = vmatpush2.msra.mxu0 0.0
      %703 = vmatprep.subr.mxu0 0.0
      %704 = vmatpush2.msra.mxu0 0.0
      %705 = vmatprep.subr.mxu0 0.0
      %706 = vmatpush2.msra.mxu0 0.0
      %707 = vmatprep.subr.mxu0 0.0
      %708 = vmatpush2.msra.mxu0 0.0
      %709 = vmatprep.subr.mxu0 0.0
      %710 = vmatpush2.msra.mxu0 0.0
      %711 = vmatprep.subr.mxu0 0.0
      %712 = vmatpush2.msra.mxu0 0.0
      %713 = vmatprep.mubr.f32.mxu0 0.0
      %714 = vmatmul.mubr.f32.gmra.mxu0 %v638
      %v715 = vpop.f32.mrf.mxu0
      %v716 = vadd.f32 %v619, %v715
      %v717 = vpop.f32.mrf.mxu0
      %718 = vmatprep.mubr.f32.mxu0 0.0
      %719 = vmatmul.mubr.f32.gmra.mxu0 %v641
      %v720 = vpop.f32.mrf.mxu0
      %v721 = vadd.f32 %v624, %v720
      %v722 = vpop.f32.mrf.mxu0
      %723 = vmatprep.mubr.f32.mxu0 0.0
      %724 = vmatmul.mubr.f32.gmra.mxu0 %v644
      %v725 = vpop.f32.mrf.mxu0
      %v726 = vadd.f32 %v629, %v725
      %v727 = vpop.f32.mrf.mxu0
      %728 = vmatprep.mubr.f32.mxu0 0.0
      %729 = vmatmul.mubr.f32.gmra.mxu0 %v647
      %v730 = vpop.f32.mrf.mxu0
      %v731 = vadd.f32 %v634, %v730
      %v732 = vpop.f32.mrf.mxu0
      %733 = vdwg.mxu0
      %v734 = vld [vmem:[%s7] sm:$0xff]
      %v735 = vld [vmem:[%s7 + $0x8] sm:$0xff]
      %v736 = vld [vmem:[%s7 + $0x10] sm:$0xff]
      %v737 = vld [vmem:[%s7 + $0x18] sm:$0xff]
      %v739 = vsel %vm539, %v734, 0
      %v742 = vsel %vm539, %v735, 0
      %v745 = vsel %vm539, %v736, 0
      %v748 = vsel %vm539, %v737, 0
      %750 = vmatprep.subr.mxu0 0.0
      %751 = vmatpush1.msra.mxu0 0.0
      %752 = vmatprep.subr.mxu0 0.0
      %753 = vmatpush1.msra.mxu0 0.0
      %754 = vmatprep.subr.mxu0 0.0
      %755 = vmatpush1.msra.mxu0 0.0
      %756 = vmatprep.subr.mxu0 0.0
      %757 = vmatpush1.msra.mxu0 0.0
      %758 = vmatprep.subr.mxu0 0.0
      %759 = vmatpush1.msra.mxu0 0.0
      %760 = vmatprep.subr.mxu0 0.0
      %761 = vmatpush1.msra.mxu0 0.0
      %762 = vmatprep.subr.mxu0 0.0
      %763 = vmatpush1.msra.mxu0 0.0
      %764 = vmatprep.subr.mxu0 0.0
      %765 = vmatpush1.msra.mxu0 0.0
      %766 = vmatprep.subr.mxu0 0.0
      %767 = vmatpush1.msra.mxu0 0.0
      %768 = vmatprep.subr.mxu0 0.0
      %769 = vmatpush1.msra.mxu0 0.0
      %770 = vmatprep.subr.mxu0 0.0
      %771 = vmatpush1.msra.mxu0 0.0
      %772 = vmatprep.subr.mxu0 0.0
      %773 = vmatpush1.msra.mxu0 0.0
      %774 = vmatprep.subr.mxu0 0.0
      %775 = vmatpush1.msra.mxu0 0.0
      %776 = vmatprep.subr.mxu0 0.0
      %777 = vmatpush1.msra.mxu0 0.0
      %778 = vmatprep.subr.mxu0 0.0
      %779 = vmatpush1.msra.mxu0 0.0
      %780 = vmatprep.subr.mxu0 0.0
      %781 = vmatpush1.msra.mxu0 %v530
      %782 = vmatprep.subr.mxu0 0.0
      %783 = vmatpush2.msra.mxu0 0.0
      %784 = vmatprep.subr.mxu0 0.0
      %785 = vmatpush2.msra.mxu0 0.0
      %786 = vmatprep.subr.mxu0 0.0
      %787 = vmatpush2.msra.mxu0 0.0
      %788 = vmatprep.subr.mxu0 0.0
      %789 = vmatpush2.msra.mxu0 0.0
      %790 = vmatprep.subr.mxu0 0.0
      %791 = vmatpush2.msra.mxu0 0.0
      %792 = vmatprep.subr.mxu0 0.0
      %793 = vmatpush2.msra.mxu0 0.0
      %794 = vmatprep.subr.mxu0 0.0
      %795 = vmatpush2.msra.mxu0 0.0
      %796 = vmatprep.subr.mxu0 0.0
      %797 = vmatpush2.msra.mxu0 0.0
      %798 = vmatprep.subr.mxu0 0.0
      %799 = vmatpush2.msra.mxu0 0.0
      %800 = vmatprep.subr.mxu0 0.0
      %801 = vmatpush2.msra.mxu0 0.0
      %802 = vmatprep.subr.mxu0 0.0
      %803 = vmatpush2.msra.mxu0 0.0
      %804 = vmatprep.subr.mxu0 0.0
      %805 = vmatpush2.msra.mxu0 0.0
      %806 = vmatprep.subr.mxu0 0.0
      %807 = vmatpush2.msra.mxu0 0.0
      %808 = vmatprep.subr.mxu0 0.0
      %809 = vmatpush2.msra.mxu0 0.0
      %810 = vmatprep.subr.mxu0 0.0
      %811 = vmatpush2.msra.mxu0 0.0
      %812 = vmatprep.subr.mxu0 0.0
      %813 = vmatpush2.msra.mxu0 0.0
      %814 = vmatprep.mubr.f32.mxu0 0.0
      %815 = vmatmul.mubr.f32.gmra.mxu0 %v739
      %v816 = vpop.f32.mrf.mxu0
      %v817 = vadd.f32 0.0, %v816
      %v818 = vpop.f32.mrf.mxu0
      %819 = vmatprep.mubr.f32.mxu0 0.0
      %820 = vmatmul.mubr.f32.gmra.mxu0 %v742
      %v821 = vpop.f32.mrf.mxu0
      %v822 = vadd.f32 0.0, %v821
      %v823 = vpop.f32.mrf.mxu0
      %824 = vmatprep.mubr.f32.mxu0 0.0
      %825 = vmatmul.mubr.f32.gmra.mxu0 %v745
      %v826 = vpop.f32.mrf.mxu0
      %v827 = vadd.f32 0.0, %v826
      %v828 = vpop.f32.mrf.mxu0
      %829 = vmatprep.mubr.f32.mxu0 0.0
      %830 = vmatmul.mubr.f32.gmra.mxu0 %v748
      %v831 = vpop.f32.mrf.mxu0
      %v832 = vadd.f32 0.0, %v831
      %v833 = vpop.f32.mrf.mxu0
      %834 = vdwg.mxu0
      %v835 = vadd.f32 %v716, %v817
      %v836 = vadd.f32 %v721, %v822
      %v837 = vadd.f32 %v726, %v827
      %v838 = vadd.f32 %v731, %v832
      %v839 = vsel %vm489, %v835, 0.0
      %v840 = vsel %vm489, %v836, 0.0
      %v841 = vsel %vm489, %v837, 0.0
      %v842 = vsel %vm489, %v838, 0.0
      %843 = vadd.xlane.f32.xlu0 %v839
      %v844 = vpop.xlane.xlu0 %843
      %845 = vadd.xlane.f32.xlu0 %v840
      %v846 = vpop.xlane.xlu0 %845
      %847 = vadd.xlane.f32.xlu0 %v841
      %v848 = vpop.xlane.xlu0 %847
      %849 = vadd.xlane.f32.xlu0 %v842
      %v850 = vpop.xlane.xlu0 %849
      %v851 = vmul.f32 %v839, %v839
      %v852 = vmul.f32 %v840, %v840
      %v853 = vmul.f32 %v841, %v841
      %v854 = vmul.f32 %v842, %v842
      %855 = vadd.xlane.f32.xlu0 %v851
      %v856 = vpop.xlane.xlu0 %855
      %857 = vadd.xlane.f32.xlu0 %v852
      %v858 = vpop.xlane.xlu0 %857
      %859 = vadd.xlane.f32.xlu0 %v853
      %v860 = vpop.xlane.xlu0 %859
      %861 = vadd.xlane.f32.xlu0 %v854
      %v862 = vpop.xlane.xlu0 %861
      // Predicated region
      $region53: #{residual_fire.4} parent=51 // pred_check
        %p863 = pneg %p491
      $region54: #{residual_fire.4} parent=51 // pred_check_branch
        %865 = sbr.rel (%p863) target = $region56
      $region55: #{residual_fire.4} parent=51 // pred_region
        %vm866 = vcmask 7168
        %867 = vst.msk [vmem:[#allocation2] sm:$0xff] %vm866, 0.0
        %868 = vst.msk [vmem:[#allocation2 + $0x8] sm:$0xff] %vm866, 0.0
        %869 = vst.msk [vmem:[#allocation2 + $0x10] sm:$0xff] %vm866, 0.0
        %870 = vst.msk [vmem:[#allocation2 + $0x18] sm:$0xff] %vm866, 0.0
        %871 = vst.msk [vmem:[#allocation3] sm:$0xff] %vm866, 0.0
        %872 = vst.msk [vmem:[#allocation3 + $0x8] sm:$0xff] %vm866, 0.0
        %873 = vst.msk [vmem:[#allocation3 + $0x10] sm:$0xff] %vm866, 0.0
        %874 = vst.msk [vmem:[#allocation3 + $0x18] sm:$0xff] %vm866, 0.0
      $region56: #{residual_fire.4} parent=51 // pred_fallthru
        _
      %v875 = vld [vmem:[#allocation2] sm:$0xff]
      %v876 = vld [vmem:[#allocation2 + $0x8] sm:$0xff]
      %v877 = vld [vmem:[#allocation2 + $0x10] sm:$0xff]
      %v878 = vld [vmem:[#allocation2 + $0x18] sm:$0xff]
      %v879 = vadd.f32 %v875, %v844
      %v880 = vadd.f32 %v876, %v846
      %v881 = vadd.f32 %v877, %v848
      %v882 = vadd.f32 %v878, %v850
      %vm883 = vcmask 7168
      %884 = vst.msk [vmem:[#allocation2] sm:$0xff] %vm883, %v879
      %885 = vst.msk [vmem:[#allocation2 + $0x8] sm:$0xff] %vm883, %v880
      %886 = vst.msk [vmem:[#allocation2 + $0x10] sm:$0xff] %vm883, %v881
      %887 = vst.msk [vmem:[#allocation2 + $0x18] sm:$0xff] %vm883, %v882
      %v888 = vld [vmem:[#allocation3] sm:$0xff]
      %v889 = vld [vmem:[#allocation3 + $0x8] sm:$0xff]
      %v890 = vld [vmem:[#allocation3 + $0x10] sm:$0xff]
      %v891 = vld [vmem:[#allocation3 + $0x18] sm:$0xff]
      %v892 = vadd.f32 %v888, %v856
      %v893 = vadd.f32 %v889, %v858
      %v894 = vadd.f32 %v890, %v860
      %v895 = vadd.f32 %v891, %v862
      %896 = vst.msk [vmem:[#allocation3] sm:$0xff] %vm883, %v892
      %897 = vst.msk [vmem:[#allocation3 + $0x8] sm:$0xff] %vm883, %v893
      %898 = vst.msk [vmem:[#allocation3 + $0x10] sm:$0xff] %vm883, %v894
      %899 = vst.msk [vmem:[#allocation3 + $0x18] sm:$0xff] %vm883, %v895
      // Predicated region
      $region57: #{residual_fire.4} parent=51 // pred_check
        %p900 = pneg %p491
      $region58: #{residual_fire.4} parent=51 // pred_check_branch
        %902 = sbr.rel (%p900) target = $region60
      $region59: #{residual_fire.4} parent=51 // pred_region
        %v903 = vld [vmem:[#allocation2] sm:$0xff]
        %v904 = vld [vmem:[#allocation2 + $0x8] sm:$0xff]
        %v905 = vld [vmem:[#allocation2 + $0x10] sm:$0xff]
        %v906 = vld [vmem:[#allocation2 + $0x18] sm:$0xff]
        %907 = vst.msk [vmem:[%s458] sm:$0xff] %vm883, %v903
        %908 = vst.msk [vmem:[%s458 + $0x8] sm:$0xff] %vm883, %v904
        %909 = vst.msk [vmem:[%s458 + $0x10] sm:$0xff] %vm883, %v905
        %910 = vst.msk [vmem:[%s458 + $0x18] sm:$0xff] %vm883, %v906
        %v911 = vld [vmem:[#allocation3] sm:$0xff]
        %v912 = vld [vmem:[#allocation3 + $0x8] sm:$0xff]
        %v913 = vld [vmem:[#allocation3 + $0x10] sm:$0xff]
        %v914 = vld [vmem:[#allocation3 + $0x18] sm:$0xff]
        %915 = vst.msk [vmem:[%s463] sm:$0xff] %vm883, %v911
        %916 = vst.msk [vmem:[%s463 + $0x8] sm:$0xff] %vm883, %v912
        %917 = vst.msk [vmem:[%s463 + $0x10] sm:$0xff] %vm883, %v913
        %918 = vst.msk [vmem:[%s463 + $0x18] sm:$0xff] %vm883, %v914
      $region60: #{residual_fire.4} parent=51 // pred_fallthru
        _
      %p919 = scmp.lt.s32.totalorder %s25, 1
      %s920 = scalar_select %p919, %s25, 1
      %s921 = smul.addr %s920, 4
      %s922 = smul.addr %s921, 8
      %s923 = scalar_lea.vmem %s8, %s922
      %p924 = scmp.lt.s32.totalorder %s25, 1
      %s925 = scalar_select %p924, %s25, 1
      %s926 = smul.addr %s925, 4
      %s927 = smul.addr %s926, 8
      %s928 = scalar_lea.vmem %s9, %s927
      // Predicated region
      $region61: #{residual_fire.4} parent=51 // pred_check
        %p929 = pneg %p252
      $region62: #{residual_fire.4} parent=51 // pred_check_branch
        %931 = sbr.rel (%p929) target = $region64
      $region63: #{residual_fire.4} parent=51 // pred_region
        _
      $region64: #{residual_fire.4} parent=51 // pred_fallthru
        _
      // Predicated region
      $region65: #{residual_fire.4} parent=51 // pred_check
        %p932 = pneg %p278
      $region66: #{residual_fire.4} parent=51 // pred_check_branch
        %934 = sbr.rel (%p932) target = $region68
      $region67: #{residual_fire.4} parent=51 // pred_region
        _
      $region68: #{residual_fire.4} parent=51 // pred_fallthru
        _
    $region52: #{residual_fire.4} parent=5 // pred_fallthru
      _
    %p935 = scmp.le.s32.totalorder 2, %s16
    // Predicated region
    $region69: #{residual_fire.4} parent=5 // pred_check
      %p936 = pneg %p935
    $region70: #{residual_fire.4} parent=5 // pred_check_branch
      %938 = sbr.rel (%p936) target = $region72
    $region71: #{residual_fire.4} parent=5 // pred_region
      %s939 = ssub.s32 %s16, 2
      // Predicated region
      $region73: #{residual_fire.4} parent=71 // pred_check
        %p940 = pneg %p258
      $region74: #{residual_fire.4} parent=71 // pred_check_branch
        %942 = sbr.rel (%p940) target = $region76
      $region75: #{residual_fire.4} parent=71 // pred_region
        %p943 = scmp.lt.s32.totalorder %s27, 1
        %s944 = scalar_select %p943, %s27, 1
        %s945 = smul.addr %s944, 4
        %s946 = smul.addr %s945, 8
        %s947 = scalar_lea.vmem %s8, %s946
      $region76: #{residual_fire.4} parent=71 // pred_fallthru
        _
      // Predicated region
      $region77: #{residual_fire.4} parent=71 // pred_check
        %p948 = pneg %p284
      $region78: #{residual_fire.4} parent=71 // pred_check_branch
        %950 = sbr.rel (%p948) target = $region80
      $region79: #{residual_fire.4} parent=71 // pred_region
        %p951 = scmp.lt.s32.totalorder %s27, 1
        %s952 = scalar_select %p951, %s27, 1
        %s953 = smul.addr %s952, 4
        %s954 = smul.addr %s953, 8
        %s955 = scalar_lea.vmem %s9, %s954
      $region80: #{residual_fire.4} parent=71 // pred_fallthru
        _
    $region72: #{residual_fire.4} parent=5 // pred_fallthru
      _
  $region6: #{residual_fire.4} parent=0 // loop_footer
    %s20 = sadd.s32 1, %s16
  $region7: #{residual_fire.4} parent=0 // loop_footer_branch
    %15 = sbr.rel target = $region3
  $region8: #{residual_fire.4} parent=0 // loop_exit
    _

// kernel: residual_fire.5
$region0: #{residual_fire.5}
  #allocation0 [shape = 'u32[]', space=smem, size = 0x4, offset = 0x4, fixed_abs, tag = 'smem constant byte address 0x4 - core index']
  #allocation1 [shape = 'u32[144,128]{1,0:T(1,128)}', space=vmem, size = 0x12000, scoped, tag = 'internal scratch']
  %s0 = inlined_call_operand.vmem [shape: f32[2,8,128], index: 0, kind: input, shape index: {}]
  %s1 = inlined_call_operand.vmem [shape: f32[2,1,8,1], index: 1, kind: input, shape index: {}]
  %s2 = inlined_call_operand.vmem [shape: f32[2,1,8,1], index: 2, kind: input, shape index: {}]
  %s3 = inlined_call_operand.vmem [shape: f32[2,4,128], index: 3, kind: input, shape index: {}]
  %s4 = inlined_call_operand.vmem [shape: f32[8,1], index: 4, kind: input, shape index: {}]
  %s5 = inlined_call_operand.vmem [shape: f32[8,1], index: 5, kind: input, shape index: {}]
  %s6 = inlined_call_operand.vmem [shape: f32[32,1], index: 6, kind: input, shape index: {}]
  %s7 = inlined_call_operand.vmem [shape: f32[32,1], index: 7, kind: input, shape index: {}]
  %s8 = inlined_call_operand.vmem [shape: f32[32,8], index: 8, kind: input, shape index: {}]
  %s9 = inlined_call_operand.vmem [shape: f32[32,8], index: 9, kind: input, shape index: {}]
  %s10 = inlined_call_operand.vmem [shape: f32[32,8], index: 10, kind: input, shape index: {}]
  %s11 = inlined_call_operand.vmem [shape: f32[32,4], index: 11, kind: input, shape index: {}]
  %s12 = inlined_call_operand.vmem [shape: f32[32,1], index: 12, kind: input, shape index: {}]
  %s13 = inlined_call_operand.vmem [shape: f32[2,32,128], index: 13, kind: output, shape index: {}]
  %s14 = sld [smem:[#allocation0]]
  $region85: #{residual_fire.5} parent=0
    _
  %s16 = ssub.s32 1, %s14
  %s17 = scalar_select 0, %s16, %s14
  loop: start=0, step=1, limit=4
  $region2: #{residual_fire.5} parent=0 // loop_pre_header
    _
  $region3: #{residual_fire.5} parent=0 // loop_header
    %s19 = sphi 0, %s23
    %p20 = scmp.ge.s32.totalorder %s19, 4
    %s26 = sphi 0, %s38
    %s27 = sphi 0, %s34
    %s28 = sphi 0, %s26
    %s29 = sphi 0, %s27
    %s30 = sphi 0, %s28
    %s31 = sphi 0, %s29
    %s43 = sphi 0, %s45
    %s46 = sphi 0, %s43
    %s47 = sphi 0, %s46
    %s63 = sphi 0, %s47
    %s77 = sphi 0, %s79
    %s80 = sphi 0, %s77
    %s81 = sphi 0, %s80
    %s97 = sphi 0, %s81
    %s111 = sphi 0, %s113
    %s114 = sphi 0, %s111
    %s115 = sphi 0, %s114
    %s131 = sphi 0, %s115
    %s139 = sphi 0, %s141
    %s142 = sphi 0, %s139
    %s143 = sphi 0, %s142
    %s159 = sphi 0, %s143
    %s163 = sphi 0, %s163
    %s165 = sphi 0, %s163
    %s166 = sphi 0, %s165
    %s180 = sphi 0, %s166
    %s184 = sphi 0, %s184
    %s186 = sphi 0, %s184
    %s187 = sphi 0, %s186
    %s201 = sphi 0, %s187
    %s205 = sphi 0, %s205
    %s207 = sphi 0, %s205
    %s208 = sphi 0, %s207
    %s222 = sphi 0, %s208
    %s226 = sphi 0, %s226
    %s228 = sphi 0, %s226
    %s229 = sphi 0, %s228
    %s243 = sphi 0, %s229
    %s247 = sphi 0, %s247
    %s249 = sphi 0, %s247
    %s250 = sphi 0, %s249
    %s264 = sphi 0, %s250
    %s268 = sphi 0, %s268
    %s270 = sphi 0, %s268
    %s271 = sphi 0, %s270
    %s285 = sphi 0, %s271
    %s289 = sphi 0, %s289
    %s291 = sphi 0, %s289
    %s292 = sphi 0, %s291
    %s306 = sphi 0, %s292
    %s310 = sphi 0, %s310
    %s312 = sphi 0, %s310
    %s313 = sphi 0, %s312
    %s327 = sphi 0, %s313
    %s331 = sphi 0, %s331
    %s333 = sphi 0, %s331
    %s334 = sphi 0, %s333
    %s348 = sphi 0, %s334
    %s356 = sphi 0, %s358
    %s359 = sphi 0, %s356
    %s360 = sphi 0, %s359
    %s376 = sphi 0, %s360
  $region4: #{residual_fire.5} parent=0 // loop_header_branch
    %22 = sbr.rel (%p20) target = $region8
  $region5: #{residual_fire.5} parent=0 // loop_body
    %s24 = ssub.s32 %s19, 1
    %s25 = ssub.s32 %s19, 2
    %s32 = sadd.s32 1, %s27
    %p33 = scmp.ge.s32.totalorder %s32, 1
    %s34 = scalar_select %p33, 0, %s32
    %s35 = sadd.s32 1, %s26
    %s36 = scalar_select %p33, %s35, %s26
    %p37 = scmp.ge.s32.totalorder %s36, 2
    %s38 = scalar_select %p37, 0, %s36
    %s39 = ssub.s32 %s26, %s38
    %s40 = ssub.s32 %s27, %s34
    %s41 = sor.u32 %s39, %s40
    %p42 = scmp.eq.s32.totalorder %s41, 0
    %s44 = sadd.s32 %s43, 1
    %s45 = scalar_select %p42, %s43, %s44
    %p48 = pneg %p42
    %p49 = scmp.eq.s32.totalorder %s19, 1
    %p50 = por %p48, %p49
    %p51 = scmp.ne.s32.totalorder %s43, %s46
    %p52 = scmp.eq.s32.totalorder %s19, 0
    %p53 = por %p51, %p52
    %p54 = scmp.ne.s32.totalorder %s43, %s46
    %p55 = scmp.eq.s32.totalorder %s24, 1
    %p56 = por %p54, %p55
    %p57 = scmp.ne.s32.totalorder %s46, %s47
    %p58 = scmp.eq.s32.totalorder %s24, 0
    %p59 = por %p57, %p58
    %p60 = scmp.ne.s32.totalorder %s46, %s47
    %p61 = scmp.eq.s32.totalorder %s25, 1
    %p62 = por %p60, %p61
    %p64 = scmp.ne.s32.totalorder %s47, %s63
    %p65 = scmp.eq.s32.totalorder %s25, 0
    %p66 = por %p64, %p65
    %s67 = ssub.s32 %s27, 1
    %p68 = scmp.gt.s32.totalorder %s67, 0
    %s69 = scalar_select %p68, %s67, 0
    %s70 = ssub.s32 %s34, 1
    %p71 = scmp.gt.s32.totalorder %s70, 0
    %s72 = scalar_select %p71, %s70, 0
    %s73 = ssub.s32 %s26, %s38
    %s74 = ssub.s32 %s69, %s72
    %s75 = sor.u32 %s73, %s74
    %p76 = scmp.eq.s32.totalorder %s75, 0
    %s78 = sadd.s32 %s77, 1
    %s79 = scalar_select %p76, %s77, %s78
    %p82 = pneg %p76
    %p83 = scmp.eq.s32.totalorder %s19, 1
    %p84 = por %p82, %p83
    %p85 = scmp.ne.s32.totalorder %s77, %s80
    %p86 = scmp.eq.s32.totalorder %s19, 0
    %p87 = por %p85, %p86
    %p88 = scmp.ne.s32.totalorder %s77, %s80
    %p89 = scmp.eq.s32.totalorder %s24, 1
    %p90 = por %p88, %p89
    %p91 = scmp.ne.s32.totalorder %s80, %s81
    %p92 = scmp.eq.s32.totalorder %s24, 0
    %p93 = por %p91, %p92
    %p94 = scmp.ne.s32.totalorder %s80, %s81
    %p95 = scmp.eq.s32.totalorder %s25, 1
    %p96 = por %p94, %p95
    %p98 = scmp.ne.s32.totalorder %s81, %s97
    %p99 = scmp.eq.s32.totalorder %s25, 0
    %p100 = por %p98, %p99
    %s101 = sadd.s32 %s27, 1
    %p102 = scmp.lt.s32.totalorder %s101, 0
    %s103 = scalar_select %p102, %s101, 0
    %s104 = sadd.s32 %s34, 1
    %p105 = scmp.lt.s32.totalorder %s104, 0
    %s106 = scalar_select %p105, %s104, 0
    %s107 = ssub.s32 %s26, %s38
    %s108 = ssub.s32 %s103, %s106
    %s109 = sor.u32 %s107, %s108
    %p110 = scmp.eq.s32.totalorder %s109, 0
    %s112 = sadd.s32 %s111, 1
    %s113 = scalar_select %p110, %s111, %s112
    %p116 = pneg %p110
    %p117 = scmp.eq.s32.totalorder %s19, 1
    %p118 = por %p116, %p117
    %p119 = scmp.ne.s32.totalorder %s111, %s114
    %p120 = scmp.eq.s32.totalorder %s19, 0
    %p121 = por %p119, %p120
    %p122 = scmp.ne.s32.totalorder %s111, %s114
    %p123 = scmp.eq.s32.totalorder %s24, 1
    %p124 = por %p122, %p123
    %p125 = scmp.ne.s32.totalorder %s114, %s115
    %p126 = scmp.eq.s32.totalorder %s24, 0
    %p127 = por %p125, %p126
    %p128 = scmp.ne.s32.totalorder %s114, %s115
    %p129 = scmp.eq.s32.totalorder %s25, 1
    %p130 = por %p128, %p129
    %p132 = scmp.ne.s32.totalorder %s115, %s131
    %p133 = scmp.eq.s32.totalorder %s25, 0
    %p134 = por %p132, %p133
    %s135 = ssub.s32 %s26, %s38
    %s136 = ssub.s32 %s27, %s34
    %s137 = sor.u32 %s135, %s136
    %p138 = scmp.eq.s32.totalorder %s137, 0
    %s140 = sadd.s32 %s139, 1
    %s141 = scalar_select %p138, %s139, %s140
    %p144 = pneg %p138
    %p145 = scmp.eq.s32.totalorder %s19, 1
    %p146 = por %p144, %p145
    %p147 = scmp.ne.s32.totalorder %s139, %s142
    %p148 = scmp.eq.s32.totalorder %s19, 0
    %p149 = por %p147, %p148
    %p150 = scmp.ne.s32.totalorder %s139, %s142
    %p151 = scmp.eq.s32.totalorder %s24, 1
    %p152 = por %p150, %p151
    %p153 = scmp.ne.s32.totalorder %s142, %s143
    %p154 = scmp.eq.s32.totalorder %s24, 0
    %p155 = por %p153, %p154
    %p156 = scmp.ne.s32.totalorder %s142, %s143
    %p157 = scmp.eq.s32.totalorder %s25, 1
    %p158 = por %p156, %p157
    %p160 = scmp.ne.s32.totalorder %s143, %s159
    %p161 = scmp.eq.s32.totalorder %s25, 0
    %p162 = por %p160, %p161
    %s164 = sadd.s32 %s163, 1
    %p167 = scmp.eq.s32.totalorder %s19, 1
    %p168 = scmp.ne.s32.totalorder %s163, %s165
    %p169 = scmp.eq.s32.totalorder %s19, 0
    %p170 = por %p168, %p169
    %p171 = scmp.ne.s32.totalorder %s163, %s165
    %p172 = scmp.eq.s32.totalorder %s24, 1
    %p173 = por %p171, %p172
    %p174 = scmp.ne.s32.totalorder %s165, %s166
    %p175 = scmp.eq.s32.totalorder %s24, 0
    %p176 = por %p174, %p175
    %p177 = scmp.ne.s32.totalorder %s165, %s166
    %p178 = scmp.eq.s32.totalorder %s25, 1
    %p179 = por %p177, %p178
    %p181 = scmp.ne.s32.totalorder %s166, %s180
    %p182 = scmp.eq.s32.totalorder %s25, 0
    %p183 = por %p181, %p182
    %s185 = sadd.s32 %s184, 1
    %p188 = scmp.eq.s32.totalorder %s19, 1
    %p189 = scmp.ne.s32.totalorder %s184, %s186
    %p190 = scmp.eq.s32.totalorder %s19, 0
    %p191 = por %p189, %p190
    %p192 = scmp.ne.s32.totalorder %s184, %s186
    %p193 = scmp.eq.s32.totalorder %s24, 1
    %p194 = por %p192, %p193
    %p195 = scmp.ne.s32.totalorder %s186, %s187
    %p196 = scmp.eq.s32.totalorder %s24, 0
    %p197 = por %p195, %p196
    %p198 = scmp.ne.s32.totalorder %s186, %s187
    %p199 = scmp.eq.s32.totalorder %s25, 1
    %p200 = por %p198, %p199
    %p202 = scmp.ne.s32.totalorder %s187, %s201
    %p203 = scmp.eq.s32.totalorder %s25, 0
    %p204 = por %p202, %p203
    %s206 = sadd.s32 %s205, 1
    %p209 = scmp.eq.s32.totalorder %s19, 1
    %p210 = scmp.ne.s32.totalorder %s205, %s207
    %p211 = scmp.eq.s32.totalorder %s19, 0
    %p212 = por %p210, %p211
    %p213 = scmp.ne.s32.totalorder %s205, %s207
    %p214 = scmp.eq.s32.totalorder %s24, 1
    %p215 = por %p213, %p214
    %p216 = scmp.ne.s32.totalorder %s207, %s208
    %p217 = scmp.eq.s32.totalorder %s24, 0
    %p218 = por %p216, %p217
    %p219 = scmp.ne.s32.totalorder %s207, %s208
    %p220 = scmp.eq.s32.totalorder %s25, 1
    %p221 = por %p219, %p220
    %p223 = scmp.ne.s32.totalorder %s208, %s222
    %p224 = scmp.eq.s32.totalorder %s25, 0
    %p225 = por %p223, %p224
    %s227 = sadd.s32 %s226, 1
    %p230 = scmp.eq.s32.totalorder %s19, 1
    %p231 = scmp.ne.s32.totalorder %s226, %s228
    %p232 = scmp.eq.s32.totalorder %s19, 0
    %p233 = por %p231, %p232
    %p234 = scmp.ne.s32.totalorder %s226, %s228
    %p235 = scmp.eq.s32.totalorder %s24, 1
    %p236 = por %p234, %p235
    %p237 = scmp.ne.s32.totalorder %s228, %s229
    %p238 = scmp.eq.s32.totalorder %s24, 0
    %p239 = por %p237, %p238
    %p240 = scmp.ne.s32.totalorder %s228, %s229
    %p241 = scmp.eq.s32.totalorder %s25, 1
    %p242 = por %p240, %p241
    %p244 = scmp.ne.s32.totalorder %s229, %s243
    %p245 = scmp.eq.s32.totalorder %s25, 0
    %p246 = por %p244, %p245
    %s248 = sadd.s32 %s247, 1
    %p251 = scmp.eq.s32.totalorder %s19, 1
    %p252 = scmp.ne.s32.totalorder %s247, %s249
    %p253 = scmp.eq.s32.totalorder %s19, 0
    %p254 = por %p252, %p253
    %p255 = scmp.ne.s32.totalorder %s247, %s249
    %p256 = scmp.eq.s32.totalorder %s24, 1
    %p257 = por %p255, %p256
    %p258 = scmp.ne.s32.totalorder %s249, %s250
    %p259 = scmp.eq.s32.totalorder %s24, 0
    %p260 = por %p258, %p259
    %p261 = scmp.ne.s32.totalorder %s249, %s250
    %p262 = scmp.eq.s32.totalorder %s25, 1
    %p263 = por %p261, %p262
    %p265 = scmp.ne.s32.totalorder %s250, %s264
    %p266 = scmp.eq.s32.totalorder %s25, 0
    %p267 = por %p265, %p266
    %s269 = sadd.s32 %s268, 1
    %p272 = scmp.eq.s32.totalorder %s19, 1
    %p273 = scmp.ne.s32.totalorder %s268, %s270
    %p274 = scmp.eq.s32.totalorder %s19, 0
    %p275 = por %p273, %p274
    %p276 = scmp.ne.s32.totalorder %s268, %s270
    %p277 = scmp.eq.s32.totalorder %s24, 1
    %p278 = por %p276, %p277
    %p279 = scmp.ne.s32.totalorder %s270, %s271
    %p280 = scmp.eq.s32.totalorder %s24, 0
    %p281 = por %p279, %p280
    %p282 = scmp.ne.s32.totalorder %s270, %s271
    %p283 = scmp.eq.s32.totalorder %s25, 1
    %p284 = por %p282, %p283
    %p286 = scmp.ne.s32.totalorder %s271, %s285
    %p287 = scmp.eq.s32.totalorder %s25, 0
    %p288 = por %p286, %p287
    %s290 = sadd.s32 %s289, 1
    %p293 = scmp.eq.s32.totalorder %s19, 1
    %p294 = scmp.ne.s32.totalorder %s289, %s291
    %p295 = scmp.eq.s32.totalorder %s19, 0
    %p296 = por %p294, %p295
    %p297 = scmp.ne.s32.totalorder %s289, %s291
    %p298 = scmp.eq.s32.totalorder %s24, 1
    %p299 = por %p297, %p298
    %p300 = scmp.ne.s32.totalorder %s291, %s292
    %p301 = scmp.eq.s32.totalorder %s24, 0
    %p302 = por %p300, %p301
    %p303 = scmp.ne.s32.totalorder %s291, %s292
    %p304 = scmp.eq.s32.totalorder %s25, 1
    %p305 = por %p303, %p304
    %p307 = scmp.ne.s32.totalorder %s292, %s306
    %p308 = scmp.eq.s32.totalorder %s25, 0
    %p309 = por %p307, %p308
    %s311 = sadd.s32 %s310, 1
    %p314 = scmp.eq.s32.totalorder %s19, 1
    %p315 = scmp.ne.s32.totalorder %s310, %s312
    %p316 = scmp.eq.s32.totalorder %s19, 0
    %p317 = por %p315, %p316
    %p318 = scmp.ne.s32.totalorder %s310, %s312
    %p319 = scmp.eq.s32.totalorder %s24, 1
    %p320 = por %p318, %p319
    %p321 = scmp.ne.s32.totalorder %s312, %s313
    %p322 = scmp.eq.s32.totalorder %s24, 0
    %p323 = por %p321, %p322
    %p324 = scmp.ne.s32.totalorder %s312, %s313
    %p325 = scmp.eq.s32.totalorder %s25, 1
    %p326 = por %p324, %p325
    %p328 = scmp.ne.s32.totalorder %s313, %s327
    %p329 = scmp.eq.s32.totalorder %s25, 0
    %p330 = por %p328, %p329
    %s332 = sadd.s32 %s331, 1
    %p335 = scmp.eq.s32.totalorder %s19, 1
    %p336 = scmp.ne.s32.totalorder %s331, %s333
    %p337 = scmp.eq.s32.totalorder %s19, 0
    %p338 = por %p336, %p337
    %p339 = scmp.ne.s32.totalorder %s331, %s333
    %p340 = scmp.eq.s32.totalorder %s24, 1
    %p341 = por %p339, %p340
    %p342 = scmp.ne.s32.totalorder %s333, %s334
    %p343 = scmp.eq.s32.totalorder %s24, 0
    %p344 = por %p342, %p343
    %p345 = scmp.ne.s32.totalorder %s333, %s334
    %p346 = scmp.eq.s32.totalorder %s25, 1
    %p347 = por %p345, %p346
    %p349 = scmp.ne.s32.totalorder %s334, %s348
    %p350 = scmp.eq.s32.totalorder %s25, 0
    %p351 = por %p349, %p350
    %s352 = ssub.s32 %s26, %s38
    %s353 = ssub.s32 %s27, %s34
    %s354 = sor.u32 %s352, %s353
    %p355 = scmp.eq.s32.totalorder %s354, 0
    %s357 = sadd.s32 %s356, 1
    %s358 = scalar_select %p355, %s356, %s357
    %p361 = pneg %p355
    %p362 = scmp.eq.s32.totalorder %s19, 1
    %p363 = por %p361, %p362
    %p364 = scmp.ne.s32.totalorder %s356, %s359
    %p365 = scmp.eq.s32.totalorder %s19, 0
    %p366 = por %p364, %p365
    %p367 = scmp.ne.s32.totalorder %s356, %s359
    %p368 = scmp.eq.s32.totalorder %s24, 1
    %p369 = por %p367, %p368
    %p370 = scmp.ne.s32.totalorder %s359, %s360
    %p371 = scmp.eq.s32.totalorder %s24, 0
    %p372 = por %p370, %p371
    %p373 = scmp.ne.s32.totalorder %s359, %s360
    %p374 = scmp.eq.s32.totalorder %s25, 1
    %p375 = por %p373, %p374
    %p377 = scmp.ne.s32.totalorder %s360, %s376
    %p378 = scmp.eq.s32.totalorder %s25, 0
    %p379 = por %p377, %p378
    %p380 = scmp.le.s32.totalorder 1, %s19
    %p381 = scmp.lt.s32.totalorder %s19, 3
    %p382 = pnand %p380, %p381
    %p383 = pneg %p382
    // Predicated region
    $region9: #{residual_fire.5} parent=5 // pred_check
      _
    $region10: #{residual_fire.5} parent=5 // pred_check_branch
      %385 = sbr.rel (%p382) target = $region12
    $region11: #{residual_fire.5} parent=5 // pred_region
      %s386 = ssub.s32 %s19, 1
      // Predicated region
      $region13: #{residual_fire.5} parent=11 // pred_check
        %p387 = pneg %p176
      $region14: #{residual_fire.5} parent=11 // pred_check_branch
        %389 = sbr.rel (%p387) target = $region16
      $region15: #{residual_fire.5} parent=11 // pred_region
        _
      $region16: #{residual_fire.5} parent=11 // pred_fallthru
        _
      // Predicated region
      $region17: #{residual_fire.5} parent=11 // pred_check
        %p390 = pneg %p197
      $region18: #{residual_fire.5} parent=11 // pred_check_branch
        %392 = sbr.rel (%p390) target = $region20
      $region19: #{residual_fire.5} parent=11 // pred_region
        _
      $region20: #{residual_fire.5} parent=11 // pred_fallthru
        _
      // Predicated region
      $region21: #{residual_fire.5} parent=11 // pred_check
        %p393 = pneg %p218
      $region22: #{residual_fire.5} parent=11 // pred_check_branch
        %395 = sbr.rel (%p393) target = $region24
      $region23: #{residual_fire.5} parent=11 // pred_region
        _
      $region24: #{residual_fire.5} parent=11 // pred_fallthru
        _
      // Predicated region
      $region25: #{residual_fire.5} parent=11 // pred_check
        %p396 = pneg %p239
      $region26: #{residual_fire.5} parent=11 // pred_check_branch
        %398 = sbr.rel (%p396) target = $region28
      $region27: #{residual_fire.5} parent=11 // pred_region
        _
      $region28: #{residual_fire.5} parent=11 // pred_fallthru
        _
      // Predicated region
      $region29: #{residual_fire.5} parent=11 // pred_check
        %p399 = pneg %p260
      $region30: #{residual_fire.5} parent=11 // pred_check_branch
        %401 = sbr.rel (%p399) target = $region32
      $region31: #{residual_fire.5} parent=11 // pred_region
        _
      $region32: #{residual_fire.5} parent=11 // pred_fallthru
        _
      // Predicated region
      $region33: #{residual_fire.5} parent=11 // pred_check
        %p402 = pneg %p281
      $region34: #{residual_fire.5} parent=11 // pred_check_branch
        %404 = sbr.rel (%p402) target = $region36
      $region35: #{residual_fire.5} parent=11 // pred_region
        _
      $region36: #{residual_fire.5} parent=11 // pred_fallthru
        _
      // Predicated region
      $region37: #{residual_fire.5} parent=11 // pred_check
        %p405 = pneg %p302
      $region38: #{residual_fire.5} parent=11 // pred_check_branch
        %407 = sbr.rel (%p405) target = $region40
      $region39: #{residual_fire.5} parent=11 // pred_region
        _
      $region40: #{residual_fire.5} parent=11 // pred_fallthru
        _
      // Predicated region
      $region41: #{residual_fire.5} parent=11 // pred_check
        %p408 = pneg %p323
      $region42: #{residual_fire.5} parent=11 // pred_check_branch
        %410 = sbr.rel (%p408) target = $region44
      $region43: #{residual_fire.5} parent=11 // pred_region
        _
      $region44: #{residual_fire.5} parent=11 // pred_fallthru
        _
      // Predicated region
      $region45: #{residual_fire.5} parent=11 // pred_check
        %p411 = pneg %p344
      $region46: #{residual_fire.5} parent=11 // pred_check_branch
        %413 = sbr.rel (%p411) target = $region48
      $region47: #{residual_fire.5} parent=11 // pred_region
        _
      $region48: #{residual_fire.5} parent=11 // pred_fallthru
        _
    $region12: #{residual_fire.5} parent=5 // pred_fallthru
      _
    %p414 = scmp.lt.s32.totalorder %s19, 2
    // Predicated region
    $region49: #{residual_fire.5} parent=5 // pred_check
      %p415 = pneg %p414
    $region50: #{residual_fire.5} parent=5 // pred_check_branch
      %417 = sbr.rel (%p415) target = $region52
    $region51: #{residual_fire.5} parent=5 // pred_region
      // Predicated region
      $region53: #{residual_fire.5} parent=51 // pred_check
        %p418 = pneg %p53
      $region54: #{residual_fire.5} parent=51 // pred_check_branch
        %420 = sbr.rel (%p418) target = $region56
      $region55: #{residual_fire.5} parent=51 // pred_region
        %p421 = scmp.lt.s32.totalorder %s26, 1
        %s422 = scalar_select %p421, %s26, 1
        %p423 = scmp.lt.s32.totalorder %s27, 0
        %s424 = scalar_select %p423, %s27, 0
        %s425 = sadd.s32 %s424, %s422
        %s426 = smul.addr %s425, 8
        %s427 = scalar_lea.vmem %s0, %s426
      $region56: #{residual_fire.5} parent=51 // pred_fallthru
        _
      // Predicated region
      $region57: #{residual_fire.5} parent=51 // pred_check
        %p428 = pneg %p87
      $region58: #{residual_fire.5} parent=51 // pred_check_branch
        %430 = sbr.rel (%p428) target = $region60
      $region59: #{residual_fire.5} parent=51 // pred_region
        %s431 = ssub.s32 %s27, 1
        %p432 = scmp.gt.s32.totalorder %s431, 0
        %s433 = scalar_select %p432, %s431, 0
        %p434 = scmp.lt.s32.totalorder %s26, 1
        %s435 = scalar_select %p434, %s26, 1
        %p436 = scmp.lt.s32.totalorder %s433, 0
        %s437 = scalar_select %p436, %s433, 0
        %s438 = sadd.s32 %s437, %s435
        %s439 = smul.addr %s438, 8
        %s440 = scalar_lea.vmem %s1, %s439
        %s441 = ssub.s32 %s27, 1
        %p442 = scmp.gt.s32.totalorder %s441, 0
        %s443 = scalar_select %p442, %s441, 0
      $region60: #{residual_fire.5} parent=51 // pred_fallthru
        _
      // Predicated region
      $region61: #{residual_fire.5} parent=51 // pred_check
        %p444 = pneg %p121
      $region62: #{residual_fire.5} parent=51 // pred_check_branch
        %446 = sbr.rel (%p444) target = $region64
      $region63: #{residual_fire.5} parent=51 // pred_region
        %s447 = sadd.s32 %s27, 1
        %p448 = scmp.lt.s32.totalorder %s447, 0
        %s449 = scalar_select %p448, %s447, 0
        %p450 = scmp.lt.s32.totalorder %s26, 1
        %s451 = scalar_select %p450, %s26, 1
        %p452 = scmp.lt.s32.totalorder %s449, 0
        %s453 = scalar_select %p452, %s449, 0
        %s454 = sadd.s32 %s453, %s451
        %s455 = smul.addr %s454, 8
        %s456 = scalar_lea.vmem %s2, %s455
        %s457 = sadd.s32 %s27, 1
        %p458 = scmp.lt.s32.totalorder %s457, 0
        %s459 = scalar_select %p458, %s457, 0
      $region64: #{residual_fire.5} parent=51 // pred_fallthru
        _
      // Predicated region
      $region65: #{residual_fire.5} parent=51 // pred_check
        %p460 = pneg %p149
      $region66: #{residual_fire.5} parent=51 // pred_check_branch
        %462 = sbr.rel (%p460) target = $region68
      $region67: #{residual_fire.5} parent=51 // pred_region
        %p463 = scmp.lt.s32.totalorder %s26, 1
        %s464 = scalar_select %p463, %s26, 1
        %p465 = scmp.lt.s32.totalorder %s27, 0
        %s466 = scalar_select %p465, %s27, 0
        %s467 = sadd.s32 %s466, %s464
        %s468 = smul.addr %s467, 4
        %s469 = scalar_lea.vmem %s3, %s468
      $region68: #{residual_fire.5} parent=51 // pred_fallthru
        _
    $region52: #{residual_fire.5} parent=5 // pred_fallthru
      _
    %p470 = scmp.le.s32.totalorder 1, %s19
    %p471 = scmp.lt.s32.totalorder %s19, 3
    %p472 = pnand %p470, %p471
    %p473 = pneg %p472
    // Predicated region
    $region69: #{residual_fire.5} parent=5 // pred_check
      _
    $region70: #{residual_fire.5} parent=5 // pred_check_branch
      %475 = sbr.rel (%p472) target = $region72
    $region71: #{residual_fire.5} parent=5 // pred_region
      %s476 = ssub.s32 %s19, 1
      %p477 = scmp.lt.s32.totalorder %s28, 1
      %s478 = scalar_select %p477, %s28, 1
      %p479 = scmp.lt.s32.totalorder %s29, 0
      %s480 = scalar_select %p479, %s29, 0
      %s481 = sadd.s32 %s480, %s478
      %s482 = smul.addr %s481, 8
      %s483 = scalar_lea.vmem %s0, %s482
      %p484 = pneg %p59
      %p485 = pneg %p56
      %s486 = ssub.s32 %s29, 1
      %p487 = scmp.gt.s32.totalorder %s486, 0
      %s488 = scalar_select %p487, %s486, 0
      %p489 = scmp.lt.s32.totalorder %s28, 1
      %s490 = scalar_select %p489, %s28, 1
      %p491 = scmp.lt.s32.totalorder %s488, 0
      %s492 = scalar_select %p491, %s488, 0
      %s493 = sadd.s32 %s492, %s490
      %s494 = smul.addr %s493, 8
      %s495 = scalar_lea.vmem %s1, %s494
      %p496 = pneg %p93
      %p497 = pneg %p90
      %s498 = sadd.s32 %s29, 1
      %p499 = scmp.lt.s32.totalorder %s498, 0
      %s500 = scalar_select %p499, %s498, 0
      %p501 = scmp.lt.s32.totalorder %s28, 1
      %s502 = scalar_select %p501, %s28, 1
      %p503 = scmp.lt.s32.totalorder %s500, 0
      %s504 = scalar_select %p503, %s500, 0
      %s505 = sadd.s32 %s504, %s502
      %s506 = smul.addr %s505, 8
      %s507 = scalar_lea.vmem %s2, %s506
      %p508 = pneg %p127
      %p509 = pneg %p124
      %p510 = scmp.lt.s32.totalorder %s28, 1
      %s511 = scalar_select %p510, %s28, 1
      %p512 = scmp.lt.s32.totalorder %s29, 0
      %s513 = scalar_select %p512, %s29, 0
      %s514 = sadd.s32 %s513, %s511
      %s515 = smul.addr %s514, 4
      %s516 = scalar_lea.vmem %s3, %s515
      %p517 = pneg %p155
      %p518 = pneg %p152
      %p519 = pneg %p176
      %p520 = pneg %p173
      %p521 = pneg %p197
      %p522 = pneg %p194
      %p523 = pneg %p218
      %p524 = pneg %p215
      %p525 = pneg %p239
      %p526 = pneg %p236
      %p527 = pneg %p260
      %p528 = pneg %p257
      %p529 = pneg %p281
      %p530 = pneg %p278
      %p531 = pneg %p302
      %p532 = pneg %p299
      %p533 = pneg %p323
      %p534 = pneg %p320
      %p535 = pneg %p344
      %p536 = pneg %p341
      %p537 = pneg %p372
      %p538 = pneg %p369
      %p539 = scmp.lt.s32.totalorder %s28, 1
      %s540 = scalar_select %p539, %s28, 1
      %p541 = scmp.lt.s32.totalorder %s29, 0
      %s542 = scalar_select %p541, %s29, 0
      %s543 = smul.addr %s540, 4
      %s544 = sadd.s32 %s542, %s543
      %s545 = smul.addr %s544, 8
      %s546 = scalar_lea.vmem %s13, %s545
      %p547 = scmp.lt.s32.totalorder %s28, 1
      %s548 = scalar_select %p547, %s28, 1
      %p549 = scmp.lt.s32.totalorder %s29, 0
      %s550 = scalar_select %p549, %s29, 0
      %s551 = sadd.s32 %s550, %s548
      %s552 = smul.addr %s551, 8
      %s553 = scalar_lea.vmem %s0, %s552
      %s554 = ssub.s32 %s29, 1
      %p555 = scmp.gt.s32.totalorder %s554, 0
      %s556 = scalar_select %p555, %s554, 0
      %p557 = scmp.lt.s32.totalorder %s28, 1
      %s558 = scalar_select %p557, %s28, 1
      %p559 = scmp.lt.s32.totalorder %s556, 0
      %s560 = scalar_select %p559, %s556, 0
      %s561 = sadd.s32 %s560, %s558
      %s562 = smul.addr %s561, 8
      %s563 = scalar_lea.vmem %s1, %s562
      %s564 = ssub.s32 %s29, 1
      %p565 = scmp.gt.s32.totalorder %s564, 0
      %s566 = scalar_select %p565, %s564, 0
      %s567 = sadd.s32 %s29, 1
      %p568 = scmp.lt.s32.totalorder %s567, 0
      %s569 = scalar_select %p568, %s567, 0
      %p570 = scmp.lt.s32.totalorder %s28, 1
      %s571 = scalar_select %p570, %s28, 1
      %p572 = scmp.lt.s32.totalorder %s569, 0
      %s573 = scalar_select %p572, %s569, 0
      %s574 = sadd.s32 %s573, %s571
      %s575 = smul.addr %s574, 8
      %s576 = scalar_lea.vmem %s2, %s575
      %s577 = sadd.s32 %s29, 1
      %p578 = scmp.lt.s32.totalorder %s577, 0
      %s579 = scalar_select %p578, %s577, 0
      %p580 = scmp.lt.s32.totalorder %s28, 1
      %s581 = scalar_select %p580, %s28, 1
      %p582 = scmp.lt.s32.totalorder %s29, 0
      %s583 = scalar_select %p582, %s29, 0
      %s584 = sadd.s32 %s583, %s581
      %s585 = smul.addr %s584, 4
      %s586 = scalar_lea.vmem %s3, %s585
      %p587 = scmp.lt.s32.totalorder %s28, 1
      %s588 = scalar_select %p587, %s28, 1
      %p589 = scmp.lt.s32.totalorder %s29, 0
      %s590 = scalar_select %p589, %s29, 0
      %s591 = smul.addr %s588, 4
      %s592 = sadd.s32 %s590, %s591
      %s593 = smul.addr %s592, 8
      %s594 = scalar_lea.vmem %s13, %s593
      %v595 = vld [vmem:[%s4] sm:$0xff]
      %v596 = vld [vmem:[%s5] sm:$0xff]
      %v597 = vld [vmem:[%s553] sm:$0xff]
      %599 = vset.pattern.permute.xlu0 0
      %600 = vperm.xlu0 %599, %v595
      %v601 = vpop.permute.xlu0 %600
      %v603 = vmul.f32 %v597, %v601
      %605 = vset.pattern.permute.xlu0 0
      %606 = vperm.xlu0 %605, %v596
      %v607 = vpop.permute.xlu0 %606
      %v609 = vadd.f32 %v603, %v607
      %vm610 = vcmp.ge.f32.partialorder %v609, 0.0
      %v611 = vmul.f32 %v609, 0.01
      %v612 = vsel %vm610, %v609, %v611
      %v613 = vlaneseq
      %v614 = vand.u32 %v613, 127
      %s615 = smul.u32 %s29, 128
      %v616 = vstv %s615
      %v617 = vadd.s32 %v614, %v616
      %vm618 = vcmp.lt.s32.totalorder %v617, 16
      %v619 = vsel %vm618, 1, 0
      %vm620 = vcmp.eq.s32.totalorder %v619, 1
      %v621 = vsel %vm620, %v612, 0.0
      %p622 = scmp.eq.s32.totalorder %s29, 0
      %v623 = vld [vmem:[%s563] sm:$0xff]
      %v624 = vmul.f32 %v623, %v595
      %v625 = vadd.f32 %v624, %v596
      %vm626 = vcmp.ge.f32.partialorder %v625, 0.0
      %v627 = vmul.f32 %v625, 0.01
      %v628 = vsel %vm626, %v625, %v627
      %s629 = scalar_select %p622, 1, 0
      %v630 = vstv %s629
      %vm631 = vcmp.eq.s32.totalorder %v630, 1
      %v632 = vsel %vm631, 0.0, %v628
      %v633 = vld [vmem:[%s576] sm:$0xff]
      %v634 = vmul.f32 %v633, %v595
      %v635 = vadd.f32 %v634, %v596
      %vm636 = vcmp.ge.f32.partialorder %v635, 0.0
      %v637 = vmul.f32 %v635, 0.01
      %v638 = vsel %vm636, %v635, %v637
      %v639 = vsel %vm631, 0.0, %v638
      %vm640 = vcmp.eq.s32.totalorder %v614, 0
      %641 = vrot.lane.b32.xlu0 %v621, 1
      %v642 = vpop.permute.xlu0 %641
      %v643 = vsel %vm640, 1, 0
      %vm644 = vcmp.eq.s32.totalorder %v643, 1
      %646 = vset.pattern.permute.xlu0 0
      %647 = vperm.xlu0 %646, %v632
      %v648 = vpop.permute.xlu0 %647
      %v650 = vsel %vm644, %v648, %v642
      %vm651 = vcmp.eq.s32.totalorder %v614, 127
      %652 = vrot.lane.b32.xlu0 %v621, 127
      %v653 = vpop.permute.xlu0 %652
      %v654 = vsel %vm651, 1, 0
      %vm655 = vcmp.eq.s32.totalorder %v654, 1
      %657 = vset.pattern.permute.xlu0 0
      %658 = vperm.xlu0 %657, %v639
      %v659 = vpop.permute.xlu0 %658
      %v661 = vsel %vm655, %v659, %v653
      %v662 = vld [vmem:[%s9] sm:$0xff]
      %v663 = vld [vmem:[%s9 + $0x8] sm:$0xff]
      %v664 = vld [vmem:[%s9 + $0x10] sm:$0xff]
      %v665 = vld [vmem:[%s9 + $0x18] sm:$0xff]
      %v666 = vld [vmem:[%s8] sm:$0xff]
      %v667 = vld [vmem:[%s8 + $0x8] sm:$0xff]
      %v668 = vld [vmem:[%s8 + $0x10] sm:$0xff]
      %v669 = vld [vmem:[%s8 + $0x18] sm:$0xff]
      %vm670 = vcmask 64512
      %v672 = vsel %vm670, %v666, 0
      %v675 = vsel %vm670, %v667, 0
      %v678 = vsel %vm670, %v668, 0
      %v681 = vsel %vm670, %v669, 0
      %683 = vmatprep.subr.mxu0 0.0
      %684 = vmatpush1.msra.mxu0 0.0
      %685 = vmatprep.subr.mxu0 0.0
      %686 = vmatpush1.msra.mxu0 0.0
      %687 = vmatprep.subr.mxu0 0.0
      %688 = vmatpush1.msra.mxu0 0.0
      %689 = vmatprep.subr.mxu0 0.0
      %690 = vmatpush1.msra.mxu0 0.0
      %691 = vmatprep.subr.mxu0 0.0
      %692 = vmatpush1.msra.mxu0 0.0
      %693 = vmatprep.subr.mxu0 0.0
      %694 = vmatpush1.msra.mxu0 0.0
      %695 = vmatprep.subr.mxu0 0.0
      %696 = vmatpush1.msra.mxu0 0.0
      %697 = vmatprep.subr.mxu0 0.0
      %698 = vmatpush1.msra.mxu0 0.0
      %699 = vmatprep.subr.mxu0 0.0
      %700 = vmatpush1.msra.mxu0 0.0
      %701 = vmatprep.subr.mxu0 0.0
      %702 = vmatpush1.msra.mxu0 0.0
      %703 = vmatprep.subr.mxu0 0.0
      %704 = vmatpush1.msra.mxu0 0.0
      %705 = vmatprep.subr.mxu0 0.0
      %706 = vmatpush1.msra.mxu0 0.0
      %707 = vmatprep.subr.mxu0 0.0
      %708 = vmatpush1.msra.mxu0 0.0
      %709 = vmatprep.subr.mxu0 0.0
      %710 = vmatpush1.msra.mxu0 0.0
      %711 = vmatprep.subr.mxu0 0.0
      %712 = vmatpush1.msra.mxu0 0.0
      %713 = vmatprep.subr.mxu0 0.0
      %714 = vmatpush1.msra.mxu0 %v650
      %715 = vmatprep.subr.mxu0 0.0
      %716 = vmatpush2.msra.mxu0 0.0
      %717 = vmatprep.subr.mxu0 0.0
      %718 = vmatpush2.msra.mxu0 0.0
      %719 = vmatprep.subr.mxu0 0.0
      %720 = vmatpush2.msra.mxu0 0.0
      %721 = vmatprep.subr.mxu0 0.0
      %722 = vmatpush2.msra.mxu0 0.0
      %723 = vmatprep.subr.mxu0 0.0
      %724 = vmatpush2.msra.mxu0 0.0
      %725 = vmatprep.subr.mxu0 0.0
      %726 = vmatpush2.msra.mxu0 0.0
      %727 = vmatprep.subr.mxu0 0.0
      %728 = vmatpush2.msra.mxu0 0.0
      %729 = vmatprep.subr.mxu0 0.0
      %730 = vmatpush2.msra.mxu0 0.0
      %731 = vmatprep.subr.mxu0 0.0
      %732 = vmatpush2.msra.mxu0 0.0
      %733 = vmatprep.subr.mxu0 0.0
      %734 = vmatpush2.msra.mxu0 0.0
      %735 = vmatprep.subr.mxu0 0.0
      %736 = vmatpush2.msra.mxu0 0.0
      %737 = vmatprep.subr.mxu0 0.0
      %738 = vmatpush2.msra.mxu0 0.0
      %739 = vmatprep.subr.mxu0 0.0
      %740 = vmatpush2.msra.mxu0 0.0
      %741 = vmatprep.subr.mxu0 0.0
      %742 = vmatpush2.msra.mxu0 0.0
      %743 = vmatprep.subr.mxu0 0.0
      %744 = vmatpush2.msra.mxu0 0.0
      %745 = vmatprep.subr.mxu0 0.0
      %746 = vmatpush2.msra.mxu0 0.0
      %747 = vmatprep.mubr.f32.mxu0 0.0
      %748 = vmatmul.mubr.f32.gmra.mxu0 %v672
      %v749 = vpop.f32.mrf.mxu0
      %v750 = vadd.f32 0.0, %v749
      %v751 = vpop.f32.mrf.mxu0
      %752 = vmatprep.mubr.f32.mxu0 0.0
      %753 = vmatmul.mubr.f32.gmra.mxu0 %v675
      %v754 = vpop.f32.mrf.mxu0
      %v755 = vadd.f32 0.0, %v754
      %v756 = vpop.f32.mrf.mxu0
      %757 = vmatprep.mubr.f32.mxu0 0.0
      %758 = vmatmul.mubr.f32.gmra.mxu0 %v678
      %v759 = vpop.f32.mrf.mxu0
      %v760 = vadd.f32 0.0, %v759
      %v761 = vpop.f32.mrf.mxu0
      %762 = vmatprep.mubr.f32.mxu0 0.0
      %763 = vmatmul.mubr.f32.gmra.mxu0 %v681
      %v764 = vpop.f32.mrf.mxu0
      %v765 = vadd.f32 0.0, %v764
      %v766 = vpop.f32.mrf.mxu0
      %767 = vdwg.mxu0
      %v769 = vsel %vm670, %v662, 0
      %v772 = vsel %vm670, %v663, 0
      %v775 = vsel %vm670, %v664, 0
      %v778 = vsel %vm670, %v665, 0
      %780 = vmatprep.subr.mxu0 0.0
      %781 = vmatpush1.msra.mxu0 0.0
      %782 = vmatprep.subr.mxu0 0.0
      %783 = vmatpush1.msra.mxu0 0.0
      %784 = vmatprep.subr.mxu0 0.0
      %785 = vmatpush1.msra.mxu0 0.0
      %786 = vmatprep.subr.mxu0 0.0
      %787 = vmatpush1.msra.mxu0 0.0
      %788 = vmatprep.subr.mxu0 0.0
      %789 = vmatpush1.msra.mxu0 0.0
      %790 = vmatprep.subr.mxu0 0.0
      %791 = vmatpush1.msra.mxu0 0.0
      %792 = vmatprep.subr.mxu0 0.0
      %793 = vmatpush1.msra.mxu0 0.0
      %794 = vmatprep.subr.mxu0 0.0
      %795 = vmatpush1.msra.mxu0 0.0
      %796 = vmatprep.subr.mxu0 0.0
      %797 = vmatpush1.msra.mxu0 0.0
      %798 = vmatprep.subr.mxu0 0.0
      %799 = vmatpush1.msra.mxu0 0.0
      %800 = vmatprep.subr.mxu0 0.0
      %801 = vmatpush1.msra.mxu0 0.0
      %802 = vmatprep.subr.mxu0 0.0
      %803 = vmatpush1.msra.mxu0 0.0
      %804 = vmatprep.subr.mxu0 0.0
      %805 = vmatpush1.msra.mxu0 0.0
      %806 = vmatprep.subr.mxu0 0.0
      %807 = vmatpush1.msra.mxu0 0.0
      %808 = vmatprep.subr.mxu0 0.0
      %809 = vmatpush1.msra.mxu0 0.0
      %810 = vmatprep.subr.mxu0 0.0
      %811 = vmatpush1.msra.mxu0 %v621
      %812 = vmatprep.subr.mxu0 0.0
      %813 = vmatpush2.msra.mxu0 0.0
      %814 = vmatprep.subr.mxu0 0.0
      %815 = vmatpush2.msra.mxu0 0.0
      %816 = vmatprep.subr.mxu0 0.0
      %817 = vmatpush2.msra.mxu0 0.0
      %818 = vmatprep.subr.mxu0 0.0
      %819 = vmatpush2.msra.mxu0 0.0
      %820 = vmatprep.subr.mxu0 0.0
      %821 = vmatpush2.msra.mxu0 0.0
      %822 = vmatprep.subr.mxu0 0.0
      %823 = vmatpush2.msra.mxu0 0.0
      %824 = vmatprep.subr.mxu0 0.0
      %825 = vmatpush2.msra.mxu0 0.0
      %826 = vmatprep.subr.mxu0 0.0
      %827 = vmatpush2.msra.mxu0 0.0
      %828 = vmatprep.subr.mxu0 0.0
      %829 = vmatpush2.msra.mxu0 0.0
      %830 = vmatprep.subr.mxu0 0.0
      %831 = vmatpush2.msra.mxu0 0.0
      %832 = vmatprep.subr.mxu0 0.0
      %833 = vmatpush2.msra.mxu0 0.0
      %834 = vmatprep.subr.mxu0 0.0
      %835 = vmatpush2.msra.mxu0 0.0
      %836 = vmatprep.subr.mxu0 0.0
      %837 = vmatpush2.msra.mxu0 0.0
      %838 = vmatprep.subr.mxu0 0.0
      %839 = vmatpush2.msra.mxu0 0.0
      %840 = vmatprep.subr.mxu0 0.0
      %841 = vmatpush2.msra.mxu0 0.0
      %842 = vmatprep.subr.mxu0 0.0
      %843 = vmatpush2.msra.mxu0 0.0
      %844 = vmatprep.mubr.f32.mxu0 0.0
      %845 = vmatmul.mubr.f32.gmra.mxu0 %v769
      %v846 = vpop.f32.mrf.mxu0
      %v847 = vadd.f32 %v750, %v846
      %v848 = vpop.f32.mrf.mxu0
      %849 = vmatprep.mubr.f32.mxu0 0.0
      %850 = vmatmul.mubr.f32.gmra.mxu0 %v772
      %v851 = vpop.f32.mrf.mxu0
      %v852 = vadd.f32 %v755, %v851
      %v853 = vpop.f32.mrf.mxu0
      %854 = vmatprep.mubr.f32.mxu0 0.0
      %855 = vmatmul.mubr.f32.gmra.mxu0 %v775
      %v856 = vpop.f32.mrf.mxu0
      %v857 = vadd.f32 %v760, %v856
      %v858 = vpop.f32.mrf.mxu0
      %859 = vmatprep.mubr.f32.mxu0 0.0
      %860 = vmatmul.mubr.f32.gmra.mxu0 %v778
      %v861 = vpop.f32.mrf.mxu0
      %v862 = vadd.f32 %v765, %v861
      %v863 = vpop.f32.mrf.mxu0
      %864 = vdwg.mxu0
      %v865 = vld [vmem:[%s10] sm:$0xff]
      %v866 = vld [vmem:[%s10 + $0x8] sm:$0xff]
      %v867 = vld [vmem:[%s10 + $0x10] sm:$0xff]
      %v868 = vld [vmem:[%s10 + $0x18] sm:$0xff]
      %v870 = vsel %vm670, %v865, 0
      %v873 = vsel %vm670, %v866, 0
      %v876 = vsel %vm670, %v867, 0
      %v879 = vsel %vm670, %v868, 0
      %881 = vmatprep.subr.mxu0 0.0
      %882 = vmatpush1.msra.mxu0 0.0
      %883 = vmatprep.subr.mxu0 0.0
      %884 = vmatpush1.msra.mxu0 0.0
      %885 = vmatprep.subr.mxu0 0.0
      %886 = vmatpush1.msra.mxu0 0.0
      %887 = vmatprep.subr.mxu0 0.0
      %888 = vmatpush1.msra.mxu0 0.0
      %889 = vmatprep.subr.mxu0 0.0
      %890 = vmatpush1.msra.mxu0 0.0
      %891 = vmatprep.subr.mxu0 0.0
      %892 = vmatpush1.msra.mxu0 0.0
      %893 = vmatprep.subr.mxu0 0.0
      %894 = vmatpush1.msra.mxu0 0.0
      %895 = vmatprep.subr.mxu0 0.0
      %896 = vmatpush1.msra.mxu0 0.0
      %897 = vmatprep.subr.mxu0 0.0
      %898 = vmatpush1.msra.mxu0 0.0
      %899 = vmatprep.subr.mxu0 0.0
      %900 = vmatpush1.msra.mxu0 0.0
      %901 = vmatprep.subr.mxu0 0.0
      %902 = vmatpush1.msra.mxu0 0.0
      %903 = vmatprep.subr.mxu0 0.0
      %904 = vmatpush1.msra.mxu0 0.0
      %905 = vmatprep.subr.mxu0 0.0
      %906 = vmatpush1.msra.mxu0 0.0
      %907 = vmatprep.subr.mxu0 0.0
      %908 = vmatpush1.msra.mxu0 0.0
      %909 = vmatprep.subr.mxu0 0.0
      %910 = vmatpush1.msra.mxu0 0.0
      %911 = vmatprep.subr.mxu0 0.0
      %912 = vmatpush1.msra.mxu0 %v661
      %913 = vmatprep.subr.mxu0 0.0
      %914 = vmatpush2.msra.mxu0 0.0
      %915 = vmatprep.subr.mxu0 0.0
      %916 = vmatpush2.msra.mxu0 0.0
      %917 = vmatprep.subr.mxu0 0.0
      %918 = vmatpush2.msra.mxu0 0.0
      %919 = vmatprep.subr.mxu0 0.0
      %920 = vmatpush2.msra.mxu0 0.0
      %921 = vmatprep.subr.mxu0 0.0
      %922 = vmatpush2.msra.mxu0 0.0
      %923 = vmatprep.subr.mxu0 0.0
      %924 = vmatpush2.msra.mxu0 0.0
      %925 = vmatprep.subr.mxu0 0.0
      %926 = vmatpush2.msra.mxu0 0.0
      %927 = vmatprep.subr.mxu0 0.0
      %928 = vmatpush2.msra.mxu0 0.0
      %929 = vmatprep.subr.mxu0 0.0
      %930 = vmatpush2.msra.mxu0 0.0
      %931 = vmatprep.subr.mxu0 0.0
      %932 = vmatpush2.msra.mxu0 0.0
      %933 = vmatprep.subr.mxu0 0.0
      %934 = vmatpush2.msra.mxu0 0.0
      %935 = vmatprep.subr.mxu0 0.0
      %936 = vmatpush2.msra.mxu0 0.0
      %937 = vmatprep.subr.mxu0 0.0
      %938 = vmatpush2.msra.mxu0 0.0
      %939 = vmatprep.subr.mxu0 0.0
      %940 = vmatpush2.msra.mxu0 0.0
      %941 = vmatprep.subr.mxu0 0.0
      %942 = vmatpush2.msra.mxu0 0.0
      %943 = vmatprep.subr.mxu0 0.0
      %944 = vmatpush2.msra.mxu0 0.0
      %945 = vmatprep.mubr.f32.mxu0 0.0
      %946 = vmatmul.mubr.f32.gmra.mxu0 %v870
      %v947 = vpop.f32.mrf.mxu0
      %v948 = vadd.f32 0.0, %v947
      %v949 = vpop.f32.mrf.mxu0
      %950 = vmatprep.mubr.f32.mxu0 0.0
      %951 = vmatmul.mubr.f32.gmra.mxu0 %v873
      %v952 = vpop.f32.mrf.mxu0
      %v953 = vadd.f32 0.0, %v952
      %v954 = vpop.f32.mrf.mxu0
      %955 = vmatprep.mubr.f32.mxu0 0.0
      %956 = vmatmul.mubr.f32.gmra.mxu0 %v876
      %v957 = vpop.f32.mrf.mxu0
      %v958 = vadd.f32 0.0, %v957
      %v959 = vpop.f32.mrf.mxu0
      %960 = vmatprep.mubr.f32.mxu0 0.0
      %961 = vmatmul.mubr.f32.gmra.mxu0 %v879
      %v962 = vpop.f32.mrf.mxu0
      %v963 = vadd.f32 0.0, %v962
      %v964 = vpop.f32.mrf.mxu0
      %965 = vdwg.mxu0
      %v966 = vadd.f32 %v847, %v948
      %v967 = vadd.f32 %v852, %v953
      %v968 = vadd.f32 %v857, %v958
      %v969 = vadd.f32 %v862, %v963
      %v970 = vld [vmem:[%s6] sm:$0xff]
      %v971 = vld [vmem:[%s6 + $0x8] sm:$0xff]
      %v972 = vld [vmem:[%s6 + $0x10] sm:$0xff]
      %v973 = vld [vmem:[%s6 + $0x18] sm:$0xff]
      %975 = vset.pattern.permute.xlu0 0
      %976 = vperm.xlu0 %975, %v970
      %v977 = vpop.permute.xlu0 %976
      %980 = vset.pattern.permute.xlu0 0
      %981 = vperm.xlu0 %980, %v971
      %v982 = vpop.permute.xlu0 %981
      %985 = vset.pattern.permute.xlu0 0
      %986 = vperm.xlu0 %985, %v972
      %v987 = vpop.permute.xlu0 %986
      %990 = vset.pattern.permute.xlu0 0
      %991 = vperm.xlu0 %990, %v973
      %v992 = vpop.permute.xlu0 %991
      %v994 = vmul.f32 %v966, %v977
      %v995 = vmul.f32 %v967, %v982
      %v996 = vmul.f32 %v968, %v987
      %v997 = vmul.f32 %v969, %v992
      %v998 = vld [vmem:[%s7] sm:$0xff]
      %v999 = vld [vmem:[%s7 + $0x8] sm:$0xff]
      %v1000 = vld [vmem:[%s7 + $0x10] sm:$0xff]
      %v1001 = vld [vmem:[%s7 + $0x18] sm:$0xff]
      %1003 = vset.pattern.permute.xlu0 0
      %1004 = vperm.xlu0 %1003, %v998
      %v1005 = vpop.permute.xlu0 %1004
      %1008 = vset.pattern.permute.xlu0 0
      %1009 = vperm.xlu0 %1008, %v999
      %v1010 = vpop.permute.xlu0 %1009
      %1013 = vset.pattern.permute.xlu0 0
      %1014 = vperm.xlu0 %1013, %v1000
      %v1015 = vpop.permute.xlu0 %1014
      %1018 = vset.pattern.permute.xlu0 0
      %1019 = vperm.xlu0 %1018, %v1001
      %v1020 = vpop.permute.xlu0 %1019
      %v1022 = vadd.f32 %v994, %v1005
      %v1023 = vadd.f32 %v995, %v1010
      %v1024 = vadd.f32 %v996, %v1015
      %v1025 = vadd.f32 %v997, %v1020
      %vm1026 = vcmp.ge.f32.partialorder %v1022, 0.0
      %vm1027 = vcmp.ge.f32.partialorder %v1023, 0.0
      %vm1028 = vcmp.ge.f32.partialorder %v1024, 0.0
      %vm1029 = vcmp.ge.f32.partialorder %v1025, 0.0
      %v1030 = vmul.f32 %v1022, 0.0001
      %v1031 = vmul.f32 %v1023, 0.0001
      %v1032 = vmul.f32 %v1024, 0.0001
      %v1033 = vmul.f32 %v1025, 0.0001
      %v1034 = vsel %vm1026, %v1022, %v1030
      %v1035 = vsel %vm1027, %v1023, %v1031
      %v1036 = vsel %vm1028, %v1024, %v1032
      %v1037 = vsel %vm1029, %v1025, %v1033
      %v1038 = vld [vmem:[%s11] sm:$0xff]
      %v1039 = vld [vmem:[%s11 + $0x8] sm:$0xff]
      %v1040 = vld [vmem:[%s11 + $0x10] sm:$0xff]
      %v1041 = vld [vmem:[%s11 + $0x18] sm:$0xff]
      %v1042 = vld [vmem:[%s586] sm:$0xf]
      %v1043 = vld [vmem:[%s12] sm:$0xff]
      %v1044 = vld [vmem:[%s12 + $0x8] sm:$0xff]
      %v1045 = vld [vmem:[%s12 + $0x10] sm:$0xff]
      %v1046 = vld [vmem:[%s12 + $0x18] sm:$0xff]
      %1048 = vset.pattern.permute.xlu0 0
      %1049 = vperm.xlu0 %1048, %v1043
      %v1050 = vpop.permute.xlu0 %1049
      %1053 = vset.pattern.permute.xlu0 0
      %1054 = vperm.xlu0 %1053, %v1044
      %v1055 = vpop.permute.xlu0 %1054
      %1058 = vset.pattern.permute.xlu0 0
      %1059 = vperm.xlu0 %1058, %v1045
      %v1060 = vpop.permute.xlu0 %1059
      %1063 = vset.pattern.permute.xlu0 0
      %1064 = vperm.xlu0 %1063, %v1046
      %v1065 = vpop.permute.xlu0 %1064
      %vm1067 = vcmask 31744
      %v1069 = vsel %vm1067, %v1038, 0
      %v1072 = vsel %vm1067, %v1039, 0
      %v1075 = vsel %vm1067, %v1040, 0
      %v1078 = vsel %vm1067, %v1041, 0
      %vm1080 = vcmask 1043456
      %v1082 = vsel %vm1080, %v1042, 0
      %1084 = vmatprep.subr.mxu0 0.0
      %1085 = vmatpush1.msra.mxu0 0.0
      %1086 = vmatprep.subr.mxu0 0.0
      %1087 = vmatpush1.msra.mxu0 0.0
      %1088 = vmatprep.subr.mxu0 0.0
      %1089 = vmatpush1.msra.mxu0 0.0
      %1090 = vmatprep.subr.mxu0 0.0
      %1091 = vmatpush1.msra.mxu0 0.0
      %1092 = vmatprep.subr.mxu0 0.0
      %1093 = vmatpush1.msra.mxu0 0.0
      %1094 = vmatprep.subr.mxu0 0.0
      %1095 = vmatpush1.msra.mxu0 0.0
      %1096 = vmatprep.subr.mxu0 0.0
      %1097 = vmatpush1.msra.mxu0 0.0
      %1098 = vmatprep.subr.mxu0 0.0
      %1099 = vmatpush1.msra.mxu0 0.0
      %1100 = vmatprep.subr.mxu0 0.0
      %1101 = vmatpush1.msra.mxu0 0.0
      %1102 = vmatprep.subr.mxu0 0.0
      %1103 = vmatpush1.msra.mxu0 0.0
      %1104 = vmatprep.subr.mxu0 0.0
      %1105 = vmatpush1.msra.mxu0 0.0
      %1106 = vmatprep.subr.mxu0 0.0
      %1107 = vmatpush1.msra.mxu0 0.0
      %1108 = vmatprep.subr.mxu0 0.0
      %1109 = vmatpush1.msra.mxu0 0.0
      %1110 = vmatprep.subr.mxu0 0.0
      %1111 = vmatpush1.msra.mxu0 0.0
      %1112 = vmatprep.subr.mxu0 0.0
      %1113 = vmatpush1.msra.mxu0 0.0
      %1114 = vmatprep.subr.mxu0 0.0
      %1115 = vmatpush1.msra.mxu0 %v1082
      %1116 = vmatprep.subr.mxu0 0.0
      %1117 = vmatpush2.msra.mxu0 0.0
      %1118 = vmatprep.subr.mxu0 0.0
      %1119 = vmatpush2.msra.mxu0 0.0
      %1120 = vmatprep.subr.mxu0 0.0
      %1121 = vmatpush2.msra.mxu0 0.0
      %1122 = vmatprep.subr.mxu0 0.0
      %1123 = vmatpush2.msra.mxu0 0.0
      %1124 = vmatprep.subr.mxu0 0.0
      %1125 = vmatpush2.msra.mxu0 0.0
      %1126 = vmatprep.subr.mxu0 0.0
      %1127 = vmatpush2.msra.mxu0 0.0
      %1128 = vmatprep.subr.mxu0 0.0
      %1129 = vmatpush2.msra.mxu0 0.0
      %1130 = vmatprep.subr.mxu0 0.0
      %1131 = vmatpush2.msra.mxu0 0.0
      %1132 = vmatprep.subr.mxu0 0.0
      %1133 = vmatpush2.msra.mxu0 0.0
      %1134 = vmatprep.subr.mxu0 0.0
      %1135 = vmatpush2.msra.mxu0 0.0
      %1136 = vmatprep.subr.mxu0 0.0
      %1137 = vmatpush2.msra.mxu0 0.0
      %1138 = vmatprep.subr.mxu0 0.0
      %1139 = vmatpush2.msra.mxu0 0.0
      %1140 = vmatprep.subr.mxu0 0.0
      %1141 = vmatpush2.msra.mxu0 0.0
      %1142 = vmatprep.subr.mxu0 0.0
      %1143 = vmatpush2.msra.mxu0 0.0
      %1144 = vmatprep.subr.mxu0 0.0
      %1145 = vmatpush2.msra.mxu0 0.0
      %1146 = vmatprep.subr.mxu0 0.0
      %1147 = vmatpush2.msra.mxu0 0.0
      %1148 = vmatprep.mubr.f32.mxu0 0.0
      %1149 = vmatmul.mubr.f32.gmra.mxu0 %v1069
      %v1150 = vpop.f32.mrf.mxu0
      %v1151 = vadd.f32 %v1050, %v1150
      %v1152 = vpop.f32.mrf.mxu0
      %1153 = vmatprep.mubr.f32.mxu0 0.0
      %1154 = vmatmul.mubr.f32.gmra.mxu0 %v1072
      %v1155 = vpop.f32.mrf.mxu0
      %v1156 = vadd.f32 %v1055, %v1155
      %v1157 = vpop.f32.mrf.mxu0
      %1158 = vmatprep.mubr.f32.mxu0 0.0
      %1159 = vmatmul.mubr.f32.gmra.mxu0 %v1075
      %v1160 = vpop.f32.mrf.mxu0
      %v1161 = vadd.f32 %v1060, %v1160
      %v1162 = vpop.f32.mrf.mxu0
      %1163 = vmatprep.mubr.f32.mxu0 0.0
      %1164 = vmatmul.mubr.f32.gmra.mxu0 %v1078
      %v1165 = vpop.f32.mrf.mxu0
      %v1166 = vadd.f32 %v1065, %v1165
      %v1167 = vpop.f32.mrf.mxu0
      %1168 = vdwg.mxu0
      %v1169 = vadd.f32 %v1034, %v1151
      %v1170 = vadd.f32 %v1035, %v1156
      %v1171 = vadd.f32 %v1036, %v1161
      %v1172 = vadd.f32 %v1037, %v1166
      %vm1173 = vcmp.ge.f32.partialorder %v1169, 0.0
      %vm1174 = vcmp.ge.f32.partialorder %v1170, 0.0
      %vm1175 = vcmp.ge.f32.partialorder %v1171, 0.0
      %vm1176 = vcmp.ge.f32.partialorder %v1172, 0.0
      %v1177 = vmul.f32 %v1169, 0.01
      %v1178 = vmul.f32 %v1170, 0.01
      %v1179 = vmul.f32 %v1171, 0.01
      %v1180 = vmul.f32 %v1172, 0.01
      %v1181 = vsel %vm1173, %v1169, %v1177
      %v1182 = vsel %vm1174, %v1170, %v1178
      %v1183 = vsel %vm1175, %v1171, %v1179
      %v1184 = vsel %vm1176, %v1172, %v1180
      %1185 = vst [vmem:[%s594] sm:$0xff] %v1181
      %1186 = vst [vmem:[%s594 + $0x8] sm:$0xff] %v1182
      %1187 = vst [vmem:[%s594 + $0x10] sm:$0xff] %v1183
      %1188 = vst [vmem:[%s594 + $0x18] sm:$0xff] %v1184
      %p1189 = scmp.lt.s32.totalorder %s28, 1
      %s1190 = scalar_select %p1189, %s28, 1
      %p1191 = scmp.lt.s32.totalorder %s29, 0
      %s1192 = scalar_select %p1191, %s29, 0
      %s1193 = smul.addr %s1190, 4
      %s1194 = sadd.s32 %s1192, %s1193
      %s1195 = smul.addr %s1194, 8
      %s1196 = scalar_lea.vmem %s13, %s1195
      // Predicated region
      $region73: #{residual_fire.5} parent=71 // pred_check
        %p1197 = pneg %p369
      $region74: #{residual_fire.5} parent=71 // pred_check_branch
        %1199 = sbr.rel (%p1197) target = $region76
      $region75: #{residual_fire.5} parent=71 // pred_region
        _
      $region76: #{residual_fire.5} parent=71 // pred_fallthru
        _
    $region72: #{residual_fire.5} parent=5 // pred_fallthru
      _
    %p1200 = scmp.le.s32.totalorder 2, %s19
    // Predicated region
    $region77: #{residual_fire.5} parent=5 // pred_check
      %p1201 = pneg %p1200
    $region78: #{residual_fire.5} parent=5 // pred_check_branch
      %1203 = sbr.rel (%p1201) target = $region80
    $region79: #{residual_fire.5} parent=5 // pred_region
      %s1204 = ssub.s32 %s19, 2
      // Predicated region
      $region81: #{residual_fire.5} parent=79 // pred_check
        %p1205 = pneg %p375
      $region82: #{residual_fire.5} parent=79 // pred_check_branch
        %1207 = sbr.rel (%p1205) target = $region84
      $region83: #{residual_fire.5} parent=79 // pred_region
        %p1208 = scmp.lt.s32.totalorder %s30, 1
        %s1209 = scalar_select %p1208, %s30, 1
        %p1210 = scmp.lt.s32.totalorder %s31, 0
        %s1211 = scalar_select %p1210, %s31, 0
        %s1212 = smul.addr %s1209, 4
        %s1213 = sadd.s32 %s1211, %s1212
        %s1214 = smul.addr %s1213, 8
        %s1215 = scalar_lea.vmem %s13, %s1214
      $region84: #{residual_fire.5} parent=79 // pred_fallthru
        _
    $region80: #{residual_fire.5} parent=5 // pred_fallthru
      _
  $region6: #{residual_fire.5} parent=0 // loop_footer
    %s23 = sadd.s32 1, %s19
  $region7: #{residual_fire.5} parent=0 // loop_footer_branch
    %18 = sbr.rel target = $region3
  $region8: #{residual_fire.5} parent=0 // loop_exit
    _

</llo_original>
